<compile_context>
chip_gen: v7x
topology: tpu7x:2x2x1
jax: 0.10.0
libtpu: 0.0.40
codegen_flags: <defaults>
</compile_context>

<pallas_src>
import functools

import jax
import jax.numpy as jnp
import numpy as np
from jax import lax
from jax.experimental import pallas as pl
from jax.experimental.pallas import tpu as pltpu


def _round_up(x, m):
    return (x + m - 1) // m * m


def _pick_tile(dim, cap, mult):
    """Largest tile <= cap that divides `dim` and is a multiple of `mult`.

    Falls back to the full dimension (block == array extent is always legal).
    """
    if dim <= cap:
        return dim
    t = (cap // mult) * mult
    while t >= mult:
        if dim % t == 0:
            return t
        t -= mult
    return dim


@functools.lru_cache(maxsize=None)
def _vmem_limit_bytes():
    cap = 128 * 1024 * 1024
    try:
        info = pltpu.get_tpu_info()
        cap = int(getattr(info, "vmem_capacity_bytes", cap)) or cap
    except Exception:
        pass
    # 64 MiB on 128-MiB parts (v5e/v6e), 32 MiB on 64-MiB parts (v7x).
    return max(16 * 1024 * 1024, min(64 * 1024 * 1024, cap // 2))


def fold_bn(gamma, beta, mean, var, eps=1e-5):
    scale = gamma / jnp.sqrt(var + eps)
    return scale, beta - mean * scale


# ----------------------------------------------------------------------------
# Fused 1x1-conv kernel: matmul + BN affine (+ identity residual)
# (+ fused projection shortcut) (+ ReLU).  bf16 operands, f32 accumulation.
# Grid = (M tiles, N tiles, K tiles); K is the reduction axis (last).
# ----------------------------------------------------------------------------
def _mm_bn_kernel(*refs, nk, relu, has_res, has_sc):
    x_ref, w_ref, s_ref, b_ref = refs[:4]
    i = 4
    r_ref = xs_ref = ws_ref = None
    if has_res:
        r_ref = refs[i]
        i += 1
    if has_sc:
        xs_ref, ws_ref = refs[i], refs[i + 1]
        i += 2
    o_ref = refs[i]
    acc_ref = refs[i + 1] if nk > 1 else None

    d = jnp.dot(x_ref[...], w_ref[...], preferred_element_type=jnp.float32)

    def _epilogue(acc):
        y = acc * s_ref[...] + b_ref[...]
        if has_sc:      # projection shortcut: BN scale folded into ws, bias into b
            y = y + jnp.dot(xs_ref[...], ws_ref[...],
                            preferred_element_type=jnp.float32)
        if has_res:     # identity shortcut
            y = y + r_ref[...].astype(jnp.float32)
        if relu:
            y = jnp.maximum(y, 0.0)
        o_ref[...] = y.astype(o_ref.dtype)

    if nk == 1:
        _epilogue(d)
    else:
        k = pl.program_id(2)

        @pl.when(k == 0)
        def _():
            acc_ref[...] = d          # init with first dot (no zero + add pass)

        @pl.when(k > 0)
        def _():
            acc_ref[...] += d

        @pl.when(k == nk - 1)
        def _():
            _epilogue(acc_ref[...])


def matmul_bn_act(x2d, w2d, scale, bias, residual=None, shortcut=None, relu=True,
                  out_dtype=jnp.bfloat16, tm_cap=512, tn_cap=512, tk_cap=512):
    """out = act((x2d @ w2d) * scale + bias [+ residual] [+ xs @ ws_folded])."""
    M, K = x2d.shape
    K2, Nc = w2d.shape
    assert K == K2, (K, K2)

    x2d = x2d.astype(jnp.bfloat16)
    w2d = w2d.astype(jnp.bfloat16)

    tm = tm_cap if M >= tm_cap else _round_up(M, 8)
    Mp = _round_up(M, tm)
    tn = _pick_tile(Nc, tn_cap, 128)
    tk = _pick_tile(K, tk_cap, 128)
    nk = K // tk
    pad_m = Mp - M

    if pad_m:
        x2d = jnp.pad(x2d, ((0, pad_m), (0, 0)))

    scale2 = scale.reshape(1, Nc).astype(jnp.float32)
    bias2 = bias.reshape(1, Nc).astype(jnp.float32)

    in_specs = [
        pl.BlockSpec((tm, tk), lambda i, j, k: (i, k)),   # activation tile
        pl.BlockSpec((tk, tn), lambda i, j, k: (k, j)),   # weight tile
        pl.BlockSpec((1, tn), lambda i, j, k: (0, j)),    # BN scale
        pl.BlockSpec((1, tn), lambda i, j, k: (0, j)),    # BN bias
    ]
    args = [x2d, w2d, scale2, bias2]
    has_res = residual is not None
    has_sc = shortcut is not None

    flops = 2 * Mp * Nc * K
    bytes_accessed = (Mp * K + K * Nc) * 2 + Mp * Nc * np.dtype(out_dtype).itemsize

    if has_res:
        r = residual.astype(jnp.bfloat16)
        if pad_m:
            r = jnp.pad(r, ((0, pad_m), (0, 0)))
        in_specs.append(pl.BlockSpec((tm, tn), lambda i, j, k: (i, j)))
        args.append(r)
        bytes_accessed += Mp * Nc * 2
    if has_sc:
        xs, ws = shortcut
        xs = xs.astype(jnp.bfloat16)
        ws = ws.astype(jnp.bfloat16)
        Ksc = xs.shape[1]
        if pad_m:
            xs = jnp.pad(xs, ((0, pad_m), (0, 0)))
        in_specs += [pl.BlockSpec((tm, Ksc), lambda i, j, k: (i, 0)),
                     pl.BlockSpec((Ksc, tn), lambda i, j, k: (0, j))]
        args += [xs, ws]
        flops += 2 * Mp * Nc * Ksc
        bytes_accessed += (Mp * Ksc + Ksc * Nc) * 2

    kernel = functools.partial(_mm_bn_kernel, nk=nk, relu=relu,
                               has_res=has_res, has_sc=has_sc)
    scratch = [pltpu.VMEM((tm, tn), jnp.float32)] if nk > 1 else []

    out = pl.pallas_call(
        kernel,
        out_shape=jax.ShapeDtypeStruct((Mp, Nc), out_dtype),
        grid_spec=pltpu.PrefetchScalarGridSpec(
            num_scalar_prefetch=0,
            grid=(Mp // tm, Nc // tn, nk),
            in_specs=in_specs,
            out_specs=pl.BlockSpec((tm, tn), lambda i, j, k: (i, j)),
            scratch_shapes=scratch,
        ),
        compiler_params=pltpu.CompilerParams(
            dimension_semantics=("parallel", "parallel", "arbitrary"),
            vmem_limit_bytes=_vmem_limit_bytes(),
        ),
        cost_estimate=pl.CostEstimate(flops=int(flops), transcendentals=0,
                                      bytes_accessed=int(bytes_accessed)),
    )(*args)
    return out[:M] if pad_m else out


# ----------------------------------------------------------------------------
# Fused 3x3 conv kernel: merged-tap accumulation over a row-window of the
# padded/packed input, VMEM scratch accumulator, BN affine + ReLU epilogue.
# ----------------------------------------------------------------------------
def _conv3x3_groups(stride, cin, ws_cols):
    """Merge taps sharing a (row, col) offset whose packed channels are
    contiguous into a single wider-K dot.  Returns (groups, taps) where
    groups = ((row_off, ch_off, klen), ...) and taps is the (kh, kw) order of
    the stacked weight rows."""
    s = stride
    by_off = {}
    for kh in range(3):
        for kw in range(3):
            qh, rh = divmod(kh, s)
            qw, rw = divmod(kw, s)
            by_off.setdefault((qh, qw), []).append(rh * s + rw)
    groups, taps = [], []
    for (qh, qw) in sorted(by_off):
        codes = sorted(by_off[(qh, qw)])
        runs, run = [], [codes[0]]
        for c in codes[1:]:
            if c == run[-1] + 1:
                run.append(c)
            else:
                runs.append(run)
                run = [c]
        runs.append(run)
        for run in runs:
            groups.append((qh * ws_cols + qw, run[0] * cin, len(run) * cin))
            for code in run:
                rh, rw = divmod(code, s)
                taps.append((qh * s + rh, qw * s + rw))
    return tuple(groups), tuple(taps)


def _conv3x3_kernel(x_ref, w_ref, s_ref, b_ref, o_ref, acc_ref, *,
                    groups, nrows, tr, ws_cols, wo, relu):
    # x_ref: (1, 1, Lw, Cp) packed/padded row window, w_ref: (9*Cin, tn),
    # o_ref: (1, tr, Wo, tn), acc_ref: (tr*Ws, tn) f32 VMEM scratch.
    wk = 0
    for gi, (row_off, ch_off, klen) in enumerate(groups):   # static unroll
        xt = x_ref[0, 0, row_off:row_off + nrows, ch_off:ch_off + klen]
        d = jnp.dot(xt, w_ref[wk:wk + klen, :], preferred_element_type=jnp.float32)
        if gi == 0:
            acc_ref[...] = d        # init with first tap group
        else:
            acc_ref[...] += d
        wk += klen
    y = acc_ref[...] * s_ref[...] + b_ref[...]
    if relu:
        y = jnp.maximum(y, 0.0)
    y = y.reshape(tr, ws_cols, y.shape[-1])[:, :wo, :]   # drop junk columns in-kernel
    o_ref[0] = y.astype(o_ref.dtype)


def conv3x3_bn_act(x_nhwc, w_oihw, scale, bias, stride, relu=True,
                   out_dtype=jnp.bfloat16, tn_cap=512, row_cap=512):
    """3x3 conv (pad=1, stride) + BN + ReLU, merged taps fused in the kernel."""
    N, H, W, Cin = x_nhwc.shape
    Cout = w_oihw.shape[0]
    s = stride
    Ho = (H - 1) // s + 1
    Wo = (W - 1) // s + 1
    qmax = 2 // s          # max (qh, qw) tap offset after stride folding

    xp = jnp.pad(x_nhwc.astype(jnp.bfloat16), ((0, 0), (1, 1), (1, 1), (0, 0)))
    if s == 1:
        P, Cp = xp, Cin
    else:
        # space-to-depth: fold the stride into channels so every tap becomes a
        # (row-shift, channel-slice) window of one packed array.
        Hp, Wp = xp.shape[1], xp.shape[2]
        Hp2, Wp2 = _round_up(Hp, s), _round_up(Wp, s)
        xp = jnp.pad(xp, ((0, 0), (0, Hp2 - Hp), (0, Wp2 - Wp), (0, 0)))
        P = xp.reshape(N, Hp2 // s, s, Wp2 // s, s, Cin)
        P = P.transpose(0, 1, 3, 2, 4, 5).reshape(N, Hp2 // s, Wp2 // s, s * s * Cin)
        Cp = s * s * Cin
    Hs, Ws = P.shape[1], P.shape[2]

    tr = max(1, min(Ho, row_cap // Ws))            # output image rows per grid step
    n_rt = -(-Ho // tr)
    Ho_pad = n_rt * tr
    window = tr + qmax + 1                         # +1 halo row keeps tap slices in-bounds
    need_rows = (n_rt - 1) * tr + window
    if Hs < need_rows:
        P = jnp.pad(P, ((0, 0), (0, need_rows - Hs), (0, 0), (0, 0)))

    # overlapping row windows (one pipelined block per row tile), flattened (row, col)
    ridx = jnp.arange(n_rt)[:, None] * tr + jnp.arange(window)[None, :]
    Lw = window * Ws
    Pw = P[:, ridx].reshape(N, n_rt, Lw, Cp)

    groups, taps = _conv3x3_groups(s, Cin, Ws)
    w_stack = jnp.concatenate(
        [jnp.transpose(w_oihw[:, :, kh, kw]) for kh, kw in taps], axis=0
    ).astype(jnp.bfloat16)                         # (9*Cin, Cout), merged-tap K order
    Ktot = w_stack.shape[0]

    scale2 = scale.reshape(1, Cout).astype(jnp.float32)
    bias2 = bias.reshape(1, Cout).astype(jnp.float32)

    tn = _pick_tile(Cout, tn_cap, 128)
    nrows = tr * Ws
    kernel = functools.partial(_conv3x3_kernel, groups=groups, nrows=nrows,
                               tr=tr, ws_cols=Ws, wo=Wo, relu=relu)

    flops = 2 * N * n_rt * nrows * Cout * Ktot
    bytes_accessed = (N * n_rt * Lw * Cp * (Cout // tn) + Ktot * Cout) * 2 \
        + N * Ho_pad * Wo * Cout * np.dtype(out_dtype).itemsize

    out = pl.pallas_call(
        kernel,
        out_shape=jax.ShapeDtypeStruct((N, Ho_pad, Wo, Cout), out_dtype),
        grid_spec=pltpu.PrefetchScalarGridSpec(
            num_scalar_prefetch=0,
            grid=(N, n_rt, Cout // tn),
            in_specs=[
                pl.BlockSpec((1, 1, Lw, Cp), lambda n, r, j: (n, r, 0, 0)),
                pl.BlockSpec((Ktot, tn), lambda n, r, j: (0, j)),
                pl.BlockSpec((1, tn), lambda n, r, j: (0, j)),
                pl.BlockSpec((1, tn), lambda n, r, j: (0, j)),
            ],
            out_specs=pl.BlockSpec((1, tr, Wo, tn), lambda n, r, j: (n, r, 0, j)),
            scratch_shapes=[pltpu.VMEM((nrows, tn), jnp.float32)],
        ),
        compiler_params=pltpu.CompilerParams(
            dimension_semantics=("parallel", "parallel", "parallel"),
            vmem_limit_bytes=_vmem_limit_bytes(),
        ),
        cost_estimate=pl.CostEstimate(flops=int(flops), transcendentals=0,
                                      bytes_accessed=int(bytes_accessed)),
    )(Pw, w_stack, scale2, bias2)

    if Ho_pad != Ho:
        out = out[:, :Ho]
    return out, Ho, Wo


# ----------------------------------------------------------------------------
# Bottleneck forward
# ----------------------------------------------------------------------------
def bottleneck_forward(x_nchw, p, stride):
    x = jnp.transpose(x_nchw, (0, 2, 3, 1)).astype(jnp.bfloat16)   # NCHW -> NHWC
    N, H, W, Cin = x.shape
    planes = p["conv1_w"].shape[0]
    Cexp = p["conv3_w"].shape[0]

    # conv1 (1x1) + bn1 + relu
    w1 = p["conv1_w"][:, :, 0, 0].T
    s1, b1 = fold_bn(p["bn1_g"], p["bn1_b"], p["bn1_m"], p["bn1_v"])
    out = matmul_bn_act(x.reshape(N * H * W, Cin), w1, s1, b1, relu=True)
    out = out.reshape(N, H, W, planes)

    # conv2 (3x3, stride, pad=1) + bn2 + relu (merged-tap fused kernel)
    s2, b2 = fold_bn(p["bn2_g"], p["bn2_b"], p["bn2_m"], p["bn2_v"])
    out, Ho, Wo = conv3x3_bn_act(out, p["conv2_w"], s2, b2, stride, relu=True)
    out2d = out.reshape(N * Ho * Wo, planes)

    # conv3 (1x1) + bn3 + shortcut + relu, all fused in a single kernel
    w3 = p["conv3_w"][:, :, 0, 0].T
    s3, b3 = fold_bn(p["bn3_g"], p["bn3_b"], p["bn3_m"], p["bn3_v"])
    if "sc_conv_w" in p:
        # projection shortcut: fold its BN into weights/bias and fuse the 1x1
        # matmul into the conv3 kernel epilogue (no shortcut tensor in HBM).
        # TODO(synk): the strided shortcut-input gather is still an XLA pass.
        xs = x[:, ::stride, ::stride, :].reshape(N * Ho * Wo, Cin)
        ss, bs = fold_bn(p["sc_bn_g"], p["sc_bn_b"], p["sc_bn_m"], p["sc_bn_v"])
        ws = p["sc_conv_w"][:, :, 0, 0].T * ss[None, :]
        y = matmul_bn_act(out2d, w3, s3, b3 + bs, shortcut=(xs, ws), relu=True)
    else:
        y = matmul_bn_act(out2d, w3, s3, b3,
                          residual=x.reshape(N * Ho * Wo, Cin), relu=True)

    # bf16 NHWC -> f32 NCHW (single fused transpose+convert pass)
    y = y.reshape(N, Ho, Wo, Cexp)
    return jnp.transpose(y, (0, 3, 1, 2)).astype(jnp.float32)


# ----------------------------------------------------------------------------
# Pure-JAX reference (lax conv, NCHW, f32) for a correctness check
# ----------------------------------------------------------------------------
def ref_forward(x, p, stride):
    dn = ("NCHW", "OIHW", "NCHW")

    def conv(x, w, s, pad):
        return lax.conv_general_dilated(x, w, (s, s), [(pad, pad), (pad, pad)],
                                        dimension_numbers=dn)

    def bn(x, g, b, m, v, eps=1e-5):
        shp = (1, -1, 1, 1)
        return (x - m.reshape(shp)) / jnp.sqrt(v.reshape(shp) + eps) * \
            g.reshape(shp) + b.reshape(shp)

    relu = lambda t: jnp.maximum(t, 0.0)
    out = relu(bn(conv(x, p["conv1_w"], 1, 0), p["bn1_g"], p["bn1_b"], p["bn1_m"], p["bn1_v"]))
    out = relu(bn(conv(out, p["conv2_w"], stride, 1), p["bn2_g"], p["bn2_b"], p["bn2_m"], p["bn2_v"]))
    out = bn(conv(out, p["conv3_w"], 1, 0), p["bn3_g"], p["bn3_b"], p["bn3_m"], p["bn3_v"])
    if "sc_conv_w" in p:
        sc = bn(conv(x, p["sc_conv_w"], stride, 0),
                p["sc_bn_g"], p["sc_bn_b"], p["sc_bn_m"], p["sc_bn_v"])
    else:
        sc = x
    return relu(out + sc)


# ----------------------------------------------------------------------------
def init_params(key, in_planes, planes, stride, expansion=4):
    ks = jax.random.split(key, 16)
    c_exp = expansion * planes

    def bn_params(k, c):
        k1, k2, k3, k4 = jax.random.split(k, 4)
        return (1.0 + 0.1 * jax.random.normal(k1, (c,), jnp.float32),
                0.1 * jax.random.normal(k2, (c,), jnp.float32),
                0.1 * jax.random.normal(k3, (c,), jnp.float32),
                jax.random.uniform(k4, (c,), jnp.float32, 0.5, 1.5))

    p = {}
    p["conv1_w"] = 0.1 * jax.random.normal(ks[0], (planes, in_planes, 1, 1), jnp.float32)
    p["bn1_g"], p["bn1_b"], p["bn1_m"], p["bn1_v"] = bn_params(ks[1], planes)
    p["conv2_w"] = 0.1 * jax.random.normal(ks[2], (planes, planes, 3, 3), jnp.float32)
    p["bn2_g"], p["bn2_b"], p["bn2_m"], p["bn2_v"] = bn_params(ks[3], planes)
    p["conv3_w"] = 0.1 * jax.random.normal(ks[4], (c_exp, planes, 1, 1), jnp.float32)
    p["bn3_g"], p["bn3_b"], p["bn3_m"], p["bn3_v"] = bn_params(ks[5], c_exp)
    if stride != 1 or in_planes != c_exp:
        p["sc_conv_w"] = 0.1 * jax.random.normal(ks[6], (c_exp, in_planes, 1, 1), jnp.float32)
        p["sc_bn_g"], p["sc_bn_b"], p["sc_bn_m"], p["sc_bn_v"] = bn_params(ks[7], c_exp)
    return p


if __name__ == "__main__":
    key = jax.random.PRNGKey(0)
    fwd = jax.jit(bottleneck_forward, static_argnames=("stride",))

    configs = [
        # (batch, in_planes, planes, stride, spatial)
        (2, 16, 8, 2, 16),   # projection shortcut, strided conv2 (merged taps)
        (2, 32, 8, 1, 16),   # identity shortcut, stride-1 conv2
    ]
    for ci, (batch, in_planes, planes, stride, spatial) in enumerate(configs):
        k_x, k_p = jax.random.split(jax.random.fold_in(key, ci))
        x = jax.random.normal(k_x, (batch, in_planes, spatial, spatial), jnp.float32)  # NCHW
        params = init_params(k_p, in_planes, planes, stride)

        out = jax.block_until_ready(fwd(x, params, stride=stride))
        ref = jax.block_until_ready(ref_forward(x, params, stride))

        # bf16 operands (f32 accumulation) -> loosened tolerance vs the f32 reference.
        np.testing.assert_allclose(np.asarray(out), np.asarray(ref), rtol=5e-2, atol=5e-2)
        so = spatial // stride
        assert out.shape == (batch, 4 * planes, so, so)

    print("KERNEL_OK")
</pallas_src>

<mosaic_0001>
module attributes {stable_mosaic.version = 11 : i64} {
  func.func @_mm_bn_kernel(%arg0: i32, %arg1: i32, %arg2: i32, %arg3: memref<512x16xbf16, #tpu.memory_space<vmem>>, %arg4: memref<16x8xbf16, #tpu.memory_space<vmem>>, %arg5: memref<1x8xf32, #tpu.memory_space<vmem>>, %arg6: memref<1x8xf32, #tpu.memory_space<vmem>>, %arg7: memref<512x8xbf16, #tpu.memory_space<vmem>>) attributes {dimension_semantics = [#tpu.dimension_semantics<parallel>, #tpu.dimension_semantics<parallel>, #tpu.dimension_semantics<arbitrary>], iteration_bounds = array<i64: 1, 1, 1>, scalar_prefetch = 0 : i64, scratch_operands = 0 : i64, tpu.core_type = #tpu.core_type<tc>, window_params = [{transform_indices = @transform_0, window_bounds = array<i64: 512, 16>}, {transform_indices = @transform_1, window_bounds = array<i64: 16, 8>}, {transform_indices = @transform_2, window_bounds = array<i64: 1, 8>}, {transform_indices = @transform_3, window_bounds = array<i64: 1, 8>}, {transform_indices = @transform_4, window_bounds = array<i64: 512, 8>}]} {
    %c0 = arith.constant 0 : index
    %c0_0 = arith.constant 0 : index
    %0 = vector.load %arg3[%c0, %c0_0] : memref<512x16xbf16, #tpu.memory_space<vmem>>, vector<512x16xbf16>
    %c0_1 = arith.constant 0 : index
    %c0_2 = arith.constant 0 : index
    %1 = vector.load %arg4[%c0_1, %c0_2] : memref<16x8xbf16, #tpu.memory_space<vmem>>, vector<16x8xbf16>
    %cst = arith.constant dense<0.000000e+00> : vector<512x8xf32>
    %2 = tpu.matmul %0, %1, %cst {dimension_numbers = #tpu.dot_dimension_numbers<[1], [0], [0], [1], [0, 0, 1, 1], [], []>} : vector<512x16xbf16>, vector<16x8xbf16>, vector<512x8xf32> -> vector<512x8xf32>
    %c0_3 = arith.constant 0 : index
    %c0_4 = arith.constant 0 : index
    %3 = vector.load %arg5[%c0_3, %c0_4] : memref<1x8xf32, #tpu.memory_space<vmem>>, vector<1x8xf32>
    %4 = vector.broadcast %3 : vector<1x8xf32> to vector<512x8xf32>
    %5 = arith.mulf %2, %4 : vector<512x8xf32>
    %c0_5 = arith.constant 0 : index
    %c0_6 = arith.constant 0 : index
    %6 = vector.load %arg6[%c0_5, %c0_6] : memref<1x8xf32, #tpu.memory_space<vmem>>, vector<1x8xf32>
    %7 = vector.broadcast %6 : vector<1x8xf32> to vector<512x8xf32>
    %8 = arith.addf %5, %7 : vector<512x8xf32>
    %cst_7 = arith.constant 0.000000e+00 : f32
    %9 = vector.broadcast %cst_7 : f32 to vector<512x8xf32>
    %10 = arith.maximumf %8, %9 : vector<512x8xf32>
    %11 = arith.truncf %10 : vector<512x8xf32> to vector<512x8xbf16>
    %c0_8 = arith.constant 0 : index
    %c0_9 = arith.constant 0 : index
    %12 = vector.load %arg7[%c0_8, %c0_9] : memref<512x8xbf16, #tpu.memory_space<vmem>>, vector<512x8xbf16>
    tpu.vector_store %arg7[%c0_8, %c0_9], %11 {strides = array<i32>} : memref<512x8xbf16, #tpu.memory_space<vmem>>, vector<512x8xbf16>,
    return
  }
  func.func @transform_0(%arg0: i32, %arg1: i32, %arg2: i32) -> (i32, i32) {
    %c0_i32 = arith.constant 0 : i32
    return %arg0, %arg2 : i32, i32
  }
  func.func @transform_1(%arg0: i32, %arg1: i32, %arg2: i32) -> (i32, i32) {
    %c0_i32 = arith.constant 0 : i32
    return %arg2, %arg1 : i32, i32
  }
  func.func @transform_2(%arg0: i32, %arg1: i32, %arg2: i32) -> (i32, i32) {
    %c0_i32 = arith.constant 0 : i32
    %c0_i32_0 = arith.constant 0 : i32
    return %c0_i32, %arg1 : i32, i32
  }
  func.func @transform_3(%arg0: i32, %arg1: i32, %arg2: i32) -> (i32, i32) {
    %c0_i32 = arith.constant 0 : i32
    %c0_i32_0 = arith.constant 0 : i32
    return %c0_i32, %arg1 : i32, i32
  }
  func.func @transform_4(%arg0: i32, %arg1: i32, %arg2: i32) -> (i32, i32) {
    %c0_i32 = arith.constant 0 : i32
    return %arg0, %arg1 : i32, i32
  }
}

module attributes {stable_mosaic.version = 11 : i64} {
  func.func @_mm_bn_kernel(%arg0: i32, %arg1: i32, %arg2: i32, %arg3: memref<128x8xbf16, #tpu.memory_space<vmem>>, %arg4: memref<8x32xbf16, #tpu.memory_space<vmem>>, %arg5: memref<1x32xf32, #tpu.memory_space<vmem>>, %arg6: memref<1x32xf32, #tpu.memory_space<vmem>>, %arg7: memref<128x16xbf16, #tpu.memory_space<vmem>>, %arg8: memref<16x32xbf16, #tpu.memory_space<vmem>>, %arg9: memref<128x32xbf16, #tpu.memory_space<vmem>>) attributes {dimension_semantics = [#tpu.dimension_semantics<parallel>, #tpu.dimension_semantics<parallel>, #tpu.dimension_semantics<arbitrary>], iteration_bounds = array<i64: 1, 1, 1>, scalar_prefetch = 0 : i64, scratch_operands = 0 : i64, tpu.core_type = #tpu.core_type<tc>, window_params = [{transform_indices = @transform_0, window_bounds = array<i64: 128, 8>}, {transform_indices = @transform_1, window_bounds = array<i64: 8, 32>}, {transform_indices = @transform_2, window_bounds = array<i64: 1, 32>}, {transform_indices = @transform_3, window_bounds = array<i64: 1, 32>}, {transform_indices = @transform_4, window_bounds = array<i64: 128, 16>}, {transform_indices = @transform_5, window_bounds = array<i64: 16, 32>}, {transform_indices = @transform_6, window_bounds = array<i64: 128, 32>}]} {
    %c0 = arith.constant 0 : index
    %c0_0 = arith.constant 0 : index
    %0 = vector.load %arg3[%c0, %c0_0] : memref<128x8xbf16, #tpu.memory_space<vmem>>, vector<128x8xbf16>
    %c0_1 = arith.constant 0 : index
    %c0_2 = arith.constant 0 : index
    %1 = vector.load %arg4[%c0_1, %c0_2] : memref<8x32xbf16, #tpu.memory_space<vmem>>, vector<8x32xbf16>
    %cst = arith.constant dense<0.000000e+00> : vector<128x32xf32>
    %2 = tpu.matmul %0, %1, %cst {dimension_numbers = #tpu.dot_dimension_numbers<[1], [0], [0], [1], [0, 0, 1, 1], [], []>} : vector<128x8xbf16>, vector<8x32xbf16>, vector<128x32xf32> -> vector<128x32xf32>
    %c0_3 = arith.constant 0 : index
    %c0_4 = arith.constant 0 : index
    %3 = vector.load %arg5[%c0_3, %c0_4] : memref<1x32xf32, #tpu.memory_space<vmem>>, vector<1x32xf32>
    %4 = vector.broadcast %3 : vector<1x32xf32> to vector<128x32xf32>
    %5 = arith.mulf %2, %4 : vector<128x32xf32>
    %c0_5 = arith.constant 0 : index
    %c0_6 = arith.constant 0 : index
    %6 = vector.load %arg6[%c0_5, %c0_6] : memref<1x32xf32, #tpu.memory_space<vmem>>, vector<1x32xf32>
    %7 = vector.broadcast %6 : vector<1x32xf32> to vector<128x32xf32>
    %8 = arith.addf %5, %7 : vector<128x32xf32>
    %c0_7 = arith.constant 0 : index
    %c0_8 = arith.constant 0 : index
    %9 = vector.load %arg7[%c0_7, %c0_8] : memref<128x16xbf16, #tpu.memory_space<vmem>>, vector<128x16xbf16>
    %c0_9 = arith.constant 0 : index
    %c0_10 = arith.constant 0 : index
    %10 = vector.load %arg8[%c0_9, %c0_10] : memref<16x32xbf16, #tpu.memory_space<vmem>>, vector<16x32xbf16>
    %cst_11 = arith.constant dense<0.000000e+00> : vector<128x32xf32>
    %11 = tpu.matmul %9, %10, %cst_11 {dimension_numbers = #tpu.dot_dimension_numbers<[1], [0], [0], [1], [0, 0, 1, 1], [], []>} : vector<128x16xbf16>, vector<16x32xbf16>, vector<128x32xf32> -> vector<128x32xf32>
    %12 = arith.addf %8, %11 : vector<128x32xf32>
    %cst_12 = arith.constant 0.000000e+00 : f32
    %13 = vector.broadcast %cst_12 : f32 to vector<128x32xf32>
    %14 = arith.maximumf %12, %13 : vector<128x32xf32>
    %15 = arith.truncf %14 : vector<128x32xf32> to vector<128x32xbf16>
    %c0_13 = arith.constant 0 : index
    %c0_14 = arith.constant 0 : index
    %16 = vector.load %arg9[%c0_13, %c0_14] : memref<128x32xbf16, #tpu.memory_space<vmem>>, vector<128x32xbf16>
    tpu.vector_store %arg9[%c0_13, %c0_14], %15 {strides = array<i32>} : memref<128x32xbf16, #tpu.memory_space<vmem>>, vector<128x32xbf16>,
    return
  }
  func.func @transform_0(%arg0: i32, %arg1: i32, %arg2: i32) -> (i32, i32) {
    %c0_i32 = arith.constant 0 : i32
    return %arg0, %arg2 : i32, i32
  }
  func.func @transform_1(%arg0: i32, %arg1: i32, %arg2: i32) -> (i32, i32) {
    %c0_i32 = arith.constant 0 : i32
    return %arg2, %arg1 : i32, i32
  }
  func.func @transform_2(%arg0: i32, %arg1: i32, %arg2: i32) -> (i32, i32) {
    %c0_i32 = arith.constant 0 : i32
    %c0_i32_0 = arith.constant 0 : i32
    return %c0_i32, %arg1 : i32, i32
  }
  func.func @transform_3(%arg0: i32, %arg1: i32, %arg2: i32) -> (i32, i32) {
    %c0_i32 = arith.constant 0 : i32
    %c0_i32_0 = arith.constant 0 : i32
    return %c0_i32, %arg1 : i32, i32
  }
  func.func @transform_4(%arg0: i32, %arg1: i32, %arg2: i32) -> (i32, i32) {
    %c0_i32 = arith.constant 0 : i32
    %c0_i32_0 = arith.constant 0 : i32
    return %arg0, %c0_i32 : i32, i32
  }
  func.func @transform_5(%arg0: i32, %arg1: i32, %arg2: i32) -> (i32, i32) {
    %c0_i32 = arith.constant 0 : i32
    %c0_i32_0 = arith.constant 0 : i32
    return %c0_i32, %arg1 : i32, i32
  }
  func.func @transform_6(%arg0: i32, %arg1: i32, %arg2: i32) -> (i32, i32) {
    %c0_i32 = arith.constant 0 : i32
    return %arg0, %arg1 : i32, i32
  }
}

module attributes {stable_mosaic.version = 11 : i64} {
  func.func @_conv3x3_kernel(%arg0: i32, %arg1: i32, %arg2: i32, %arg3: memref<1x1x90x32xbf16, #tpu.memory_space<vmem>>, %arg4: memref<72x8xbf16, #tpu.memory_space<vmem>>, %arg5: memref<1x8xf32, #tpu.memory_space<vmem>>, %arg6: memref<1x8xf32, #tpu.memory_space<vmem>>, %arg7: memref<1x8x8x8xbf16, #tpu.memory_space<vmem>>, %arg8: memref<72x8xf32, #tpu.memory_space<vmem>>) attributes {dimension_semantics = [#tpu.dimension_semantics<parallel>, #tpu.dimension_semantics<parallel>, #tpu.dimension_semantics<parallel>], iteration_bounds = array<i64: 2, 1, 1>, scalar_prefetch = 0 : i64, scratch_operands = 1 : i64, tpu.core_type = #tpu.core_type<tc>, window_params = [{transform_indices = @transform_0, window_bounds = array<i64: 1, 1, 90, 32>}, {transform_indices = @transform_1, window_bounds = array<i64: 72, 8>}, {transform_indices = @transform_2, window_bounds = array<i64: 1, 8>}, {transform_indices = @transform_3, window_bounds = array<i64: 1, 8>}, {transform_indices = @transform_4, window_bounds = array<i64: 1, 8, 8, 8>}]} {
    %c0 = arith.constant 0 : index
    %c0_0 = arith.constant 0 : index
    %c0_1 = arith.constant 0 : index
    %c0_2 = arith.constant 0 : index
    %0 = vector.load %arg3[%c0, %c0_0, %c0_1, %c0_2] : memref<1x1x90x32xbf16, #tpu.memory_space<vmem>>, vector<1x1x72x32xbf16>
    %1 = vector.shape_cast %0 : vector<1x1x72x32xbf16> to vector<72x32xbf16>
    %c0_3 = arith.constant 0 : index
    %c0_4 = arith.constant 0 : index
    %2 = vector.load %arg4[%c0_3, %c0_4] : memref<72x8xbf16, #tpu.memory_space<vmem>>, vector<32x8xbf16>
    %cst = arith.constant dense<0.000000e+00> : vector<72x8xf32>
    %3 = tpu.matmul %1, %2, %cst {dimension_numbers = #tpu.dot_dimension_numbers<[1], [0], [0], [1], [0, 0, 1, 1], [], []>} : vector<72x32xbf16>, vector<32x8xbf16>, vector<72x8xf32> -> vector<72x8xf32>
    %c0_5 = arith.constant 0 : index
    %c0_6 = arith.constant 0 : index
    %4 = vector.load %arg8[%c0_5, %c0_6] : memref<72x8xf32, #tpu.memory_space<vmem>>, vector<72x8xf32>
    tpu.vector_store %arg8[%c0_5, %c0_6], %3 {strides = array<i32>} : memref<72x8xf32, #tpu.memory_space<vmem>>, vector<72x8xf32>,
    %c0_7 = arith.constant 0 : index
    %c0_8 = arith.constant 0 : index
    %c1 = arith.constant 1 : index
    %c0_9 = arith.constant 0 : index
    %5 = vector.load %arg3[%c0_7, %c0_8, %c1, %c0_9] : memref<1x1x90x32xbf16, #tpu.memory_space<vmem>>, vector<1x1x72x8xbf16>
    %6 = vector.shape_cast %5 : vector<1x1x72x8xbf16> to vector<72x8xbf16>
    %c32 = arith.constant 32 : index
    %c0_10 = arith.constant 0 : index
    %7 = vector.load %arg4[%c32, %c0_10] : memref<72x8xbf16, #tpu.memory_space<vmem>>, vector<8x8xbf16>
    %cst_11 = arith.constant dense<0.000000e+00> : vector<72x8xf32>
    %8 = tpu.matmul %6, %7, %cst_11 {dimension_numbers = #tpu.dot_dimension_numbers<[1], [0], [0], [1], [0, 0, 1, 1], [], []>} : vector<72x8xbf16>, vector<8x8xbf16>, vector<72x8xf32> -> vector<72x8xf32>
    %c0_12 = arith.constant 0 : index
    %c0_13 = arith.constant 0 : index
    %9 = vector.load %arg8[%c0_12, %c0_13] : memref<72x8xf32, #tpu.memory_space<vmem>>, vector<72x8xf32>
    %10 = arith.addf %9, %8 : vector<72x8xf32>
    %c0_14 = arith.constant 0 : index
    %c0_15 = arith.constant 0 : index
    %11 = vector.load %arg8[%c0_14, %c0_15] : memref<72x8xf32, #tpu.memory_space<vmem>>, vector<72x8xf32>
    tpu.vector_store %arg8[%c0_14, %c0_15], %10 {strides = array<i32>} : memref<72x8xf32, #tpu.memory_space<vmem>>, vector<72x8xf32>,
    %c0_16 = arith.constant 0 : index
    %c0_17 = arith.constant 0 : index
    %c1_18 = arith.constant 1 : index
    %c16 = arith.constant 16 : index
    %12 = vector.load %arg3[%c0_16, %c0_17, %c1_18, %c16] : memref<1x1x90x32xbf16, #tpu.memory_space<vmem>>, vector<1x1x72x8xbf16>
    %13 = vector.shape_cast %12 : vector<1x1x72x8xbf16> to vector<72x8xbf16>
    %c40 = arith.constant 40 : index
    %c0_19 = arith.constant 0 : index
    %14 = vector.load %arg4[%c40, %c0_19] : memref<72x8xbf16, #tpu.memory_space<vmem>>, vector<8x8xbf16>
    %cst_20 = arith.constant dense<0.000000e+00> : vector<72x8xf32>
    %15 = tpu.matmul %13, %14, %cst_20 {dimension_numbers = #tpu.dot_dimension_numbers<[1], [0], [0], [1], [0, 0, 1, 1], [], []>} : vector<72x8xbf16>, vector<8x8xbf16>, vector<72x8xf32> -> vector<72x8xf32>
    %c0_21 = arith.constant 0 : index
    %c0_22 = arith.constant 0 : index
    %16 = vector.load %arg8[%c0_21, %c0_22] : memref<72x8xf32, #tpu.memory_space<vmem>>, vector<72x8xf32>
    %17 = arith.addf %16, %15 : vector<72x8xf32>
    %c0_23 = arith.constant 0 : index
    %c0_24 = arith.constant 0 : index
    %18 = vector.load %arg8[%c0_23, %c0_24] : memref<72x8xf32, #tpu.memory_space<vmem>>, vector<72x8xf32>
    tpu.vector_store %arg8[%c0_23, %c0_24], %17 {strides = array<i32>} : memref<72x8xf32, #tpu.memory_space<vmem>>, vector<72x8xf32>,
    %c0_25 = arith.constant 0 : index
    %c0_26 = arith.constant 0 : index
    %c9 = arith.constant 9 : index
    %c0_27 = arith.constant 0 : index
    %19 = vector.load %arg3[%c0_25, %c0_26, %c9, %c0_27] : memref<1x1x90x32xbf16, #tpu.memory_space<vmem>>, vector<1x1x72x16xbf16>
    %20 = vector.shape_cast %19 : vector<1x1x72x16xbf16> to vector<72x16xbf16>
    %c48 = arith.constant 48 : index
    %c0_28 = arith.constant 0 : index
    %21 = vector.load %arg4[%c48, %c0_28] : memref<72x8xbf16, #tpu.memory_space<vmem>>, vector<16x8xbf16>
    %cst_29 = arith.constant dense<0.000000e+00> : vector<72x8xf32>
    %22 = tpu.matmul %20, %21, %cst_29 {dimension_numbers = #tpu.dot_dimension_numbers<[1], [0], [0], [1], [0, 0, 1, 1], [], []>} : vector<72x16xbf16>, vector<16x8xbf16>, vector<72x8xf32> -> vector<72x8xf32>
    %c0_30 = arith.constant 0 : index
    %c0_31 = arith.constant 0 : index
    %23 = vector.load %arg8[%c0_30, %c0_31] : memref<72x8xf32, #tpu.memory_space<vmem>>, vector<72x8xf32>
    %24 = arith.addf %23, %22 : vector<72x8xf32>
    %c0_32 = arith.constant 0 : index
    %c0_33 = arith.constant 0 : index
    %25 = vector.load %arg8[%c0_32, %c0_33] : memref<72x8xf32, #tpu.memory_space<vmem>>, vector<72x8xf32>
    tpu.vector_store %arg8[%c0_32, %c0_33], %24 {strides = array<i32>} : memref<72x8xf32, #tpu.memory_space<vmem>>, vector<72x8xf32>,
    %c0_34 = arith.constant 0 : index
    %c0_35 = arith.constant 0 : index
    %c10 = arith.constant 10 : index
    %c0_36 = arith.constant 0 : index
    %26 = vector.load %arg3[%c0_34, %c0_35, %c10, %c0_36] : memref<1x1x90x32xbf16, #tpu.memory_space<vmem>>, vector<1x1x72x8xbf16>
    %27 = vector.shape_cast %26 : vector<1x1x72x8xbf16> to vector<72x8xbf16>
    %c64 = arith.constant 64 : index
    %c0_37 = arith.constant 0 : index
    %28 = vector.load %arg4[%c64, %c0_37] : memref<72x8xbf16, #tpu.memory_space<vmem>>, vector<8x8xbf16>
    %cst_38 = arith.constant dense<0.000000e+00> : vector<72x8xf32>
    %29 = tpu.matmul %27, %28, %cst_38 {dimension_numbers = #tpu.dot_dimension_numbers<[1], [0], [0], [1], [0, 0, 1, 1], [], []>} : vector<72x8xbf16>, vector<8x8xbf16>, vector<72x8xf32> -> vector<72x8xf32>
    %c0_39 = arith.constant 0 : index
    %c0_40 = arith.constant 0 : index
    %30 = vector.load %arg8[%c0_39, %c0_40] : memref<72x8xf32, #tpu.memory_space<vmem>>, vector<72x8xf32>
    %31 = arith.addf %30, %29 : vector<72x8xf32>
    %c0_41 = arith.constant 0 : index
    %c0_42 = arith.constant 0 : index
    %32 = vector.load %arg8[%c0_41, %c0_42] : memref<72x8xf32, #tpu.memory_space<vmem>>, vector<72x8xf32>
    tpu.vector_store %arg8[%c0_41, %c0_42], %31 {strides = array<i32>} : memref<72x8xf32, #tpu.memory_space<vmem>>, vector<72x8xf32>,
    %c0_43 = arith.constant 0 : index
    %c0_44 = arith.constant 0 : index
    %33 = vector.load %arg8[%c0_43, %c0_44] : memref<72x8xf32, #tpu.memory_space<vmem>>, vector<72x8xf32>
    %c0_45 = arith.constant 0 : index
    %c0_46 = arith.constant 0 : index
    %34 = vector.load %arg5[%c0_45, %c0_46] : memref<1x8xf32, #tpu.memory_space<vmem>>, vector<1x8xf32>
    %35 = vector.broadcast %34 : vector<1x8xf32> to vector<72x8xf32>
    %36 = arith.mulf %33, %35 : vector<72x8xf32>
    %c0_47 = arith.constant 0 : index
    %c0_48 = arith.constant 0 : index
    %37 = vector.load %arg6[%c0_47, %c0_48] : memref<1x8xf32, #tpu.memory_space<vmem>>, vector<1x8xf32>
    %38 = vector.broadcast %37 : vector<1x8xf32> to vector<72x8xf32>
    %39 = arith.addf %36, %38 : vector<72x8xf32>
    %cst_49 = arith.constant 0.000000e+00 : f32
    %40 = vector.broadcast %cst_49 : f32 to vector<72x8xf32>
    %41 = arith.maximumf %39, %40 : vector<72x8xf32>
    %42 = vector.shape_cast %41 : vector<72x8xf32> to vector<8x9x8xf32>
    %43 = vector.extract_strided_slice %42 {offsets = [0, 0, 0], sizes = [8, 8, 8], strides = [1, 1, 1]} : vector<8x9x8xf32> to vector<8x8x8xf32>
    %44 = arith.truncf %43 : vector<8x8x8xf32> to vector<8x8x8xbf16>
    %c0_50 = arith.constant 0 : index
    %c0_51 = arith.constant 0 : index
    %c0_52 = arith.constant 0 : index
    %c0_53 = arith.constant 0 : index
    %45 = vector.load %arg7[%c0_50, %c0_51, %c0_52, %c0_53] : memref<1x8x8x8xbf16, #tpu.memory_space<vmem>>, vector<1x8x8x8xbf16>
    %46 = vector.shape_cast %45 : vector<1x8x8x8xbf16> to vector<8x8x8xbf16>
    %47 = vector.shape_cast %44 : vector<8x8x8xbf16> to vector<1x8x8x8xbf16>
    tpu.vector_store %arg7[%c0_50, %c0_51, %c0_52, %c0_53], %47 {strides = array<i32>} : memref<1x8x8x8xbf16, #tpu.memory_space<vmem>>, vector<1x8x8x8xbf16>,
    return
  }
  func.func @transform_0(%arg0: i32, %arg1: i32, %arg2: i32) -> (i32, i32, i32, i32) {
    %c0_i32 = arith.constant 0 : i32
    %c0_i32_0 = arith.constant 0 : i32
    %c0_i32_1 = arith.constant 0 : i32
    return %arg0, %arg1, %c0_i32, %c0_i32_0 : i32, i32, i32, i32
  }
  func.func @transform_1(%arg0: i32, %arg1: i32, %arg2: i32) -> (i32, i32) {
    %c0_i32 = arith.constant 0 : i32
    %c0_i32_0 = arith.constant 0 : i32
    return %c0_i32, %arg2 : i32, i32
  }
  func.func @transform_2(%arg0: i32, %arg1: i32, %arg2: i32) -> (i32, i32) {
    %c0_i32 = arith.constant 0 : i32
    %c0_i32_0 = arith.constant 0 : i32
    return %c0_i32, %arg2 : i32, i32
  }
  func.func @transform_3(%arg0: i32, %arg1: i32, %arg2: i32) -> (i32, i32) {
    %c0_i32 = arith.constant 0 : i32
    %c0_i32_0 = arith.constant 0 : i32
    return %c0_i32, %arg2 : i32, i32
  }
  func.func @transform_4(%arg0: i32, %arg1: i32, %arg2: i32) -> (i32, i32, i32, i32) {
    %c0_i32 = arith.constant 0 : i32
    %c0_i32_0 = arith.constant 0 : i32
    return %arg0, %arg1, %c0_i32, %arg2 : i32, i32, i32, i32
  }
}

</mosaic_0001>

<llo_original>
// kernel: bottleneck_forward.3
$region0: #{bottleneck_forward.3}
  #allocation0 [shape = 'u32[]', space=smem, size = 0x4, offset = 0x4, fixed_abs, tag = 'smem constant byte address 0x4 - core index']
  #allocation1 [shape = 'u32[144,128]{1,0:T(1,128)}', space=vmem, size = 0x12000, scoped, tag = 'internal scratch']
  %s0 = inlined_call_operand.hbm [shape: bf16[512,16], index: 0, kind: input, shape index: {}]
  %s1 = inlined_call_operand.hbm [shape: bf16[16,8], index: 1, kind: input, shape index: {}]
  %s2 = inlined_call_operand.hbm [shape: f32[1,8], index: 2, kind: input, shape index: {}]
  %s3 = inlined_call_operand.hbm [shape: f32[1,8], index: 3, kind: input, shape index: {}]
  %s4 = inlined_call_operand.hbm [shape: bf16[512,8], index: 4, kind: output, shape index: {}]
  %s5 = sld [smem:[#allocation0]]
  $region42: #{bottleneck_forward.3} parent=0
    _
  %s7 = ssub.s32 1, %s5
  %s8 = scalar_select 0, %s7, %s5
  $region1: #{bottleneck_forward.3} parent=0
    #allocation2 [shape = 'u8[131072]{0}', space=vmem, size = 0x20000, scoped, tag = 'input window, operand 0, single buffered']
    #allocation3 [shape = 's32[1]{0}', space=sflag, size = 0x4, scoped, tag = 'scoped memory for bottleneck_forward.3']
    #allocation4 [shape = 's32[1]{0}', space=sflag, size = 0x4, scoped, tag = 'scoped memory for bottleneck_forward.3']
    #allocation5 [shape = 'u8[4096]{0}', space=vmem, size = 0x1000, scoped, tag = 'input window, operand 1, single buffered']
    #allocation6 [shape = 's32[1]{0}', space=sflag, size = 0x4, scoped, tag = 'scoped memory for bottleneck_forward.3']
    #allocation7 [shape = 'u8[512]{0}', space=vmem, size = 0x400, scoped, tag = 'input window, operand 2, single buffered']
    #allocation8 [shape = 'u8[512]{0}', space=vmem, size = 0x400, scoped, tag = 'input window, operand 3, single buffered']
    #allocation9 [shape = 's32[1]{0}', space=sflag, size = 0x4, scoped, tag = 'scoped memory for bottleneck_forward.3']
    #allocation10 [shape = 'u8[131072]{0}', space=vmem, size = 0x20000, scoped, tag = 'output window, operand 0, single buffered']
    %9 = vsyncpa [#allocation3], 0
    %10 = vsyncpa [#allocation6], 0
    %11 = vsyncpa [#allocation9], 0
    %12 = vsyncpa [#allocation4], 0
    // Predicated region
    $region2: #{bottleneck_forward.3} parent=1 // pred_check
      _
    $region3: #{bottleneck_forward.3} parent=1 // pred_check_branch
      %14 = sbr.rel (0) target = $region5
    $region4: #{bottleneck_forward.3} parent=1 // pred_region
      %s16 = ssub.s32 4096, 4096
      %17 = vsyncadd [#allocation3], %s16
      %s18 = sshll.u32 [#allocation2], 4
      %s19 = int_to_ptr.vmem [resolvable:$true] %s18
      %24 = dma.hbm_to_vmem [thread:$0]  %s0, 4096, %s19, [#allocation3], 64, 64, 4
    $region5: #{bottleneck_forward.3} parent=1 // pred_fallthru
      _
    // Predicated region
    $region6: #{bottleneck_forward.3} parent=1 // pred_check
      _
    $region7: #{bottleneck_forward.3} parent=1 // pred_check_branch
      %26 = sbr.rel (0) target = $region9
    $region8: #{bottleneck_forward.3} parent=1 // pred_region
      %s28 = ssub.s32 128, 128
      %29 = vsyncadd [#allocation6], %s28
      %s30 = sshll.u32 [#allocation5], 4
      %s31 = int_to_ptr.vmem [resolvable:$true] %s30
      %36 = dma.hbm_to_vmem [thread:$0]  %s1, 128, %s31, [#allocation6], 64, 64, 4
    $region9: #{bottleneck_forward.3} parent=1 // pred_fallthru
      _
    // Predicated region
    $region10: #{bottleneck_forward.3} parent=1 // pred_check
      _
    $region11: #{bottleneck_forward.3} parent=1 // pred_check_branch
      %38 = sbr.rel (0) target = $region13
    $region12: #{bottleneck_forward.3} parent=1 // pred_region
      %s40 = ssub.s32 16, 16
      %41 = vsyncadd [#allocation6], %s40
      %s43 = sshll.u32 [#allocation7], 4
      %s44 = int_to_ptr.vmem [resolvable:$true] %s43
      %46 = dma.hbm_to_vmem [thread:$0]  %s2, 16, %s44, [#allocation6]
    $region13: #{bottleneck_forward.3} parent=1 // pred_fallthru
      _
    // Predicated region
    $region14: #{bottleneck_forward.3} parent=1 // pred_check
      _
    $region15: #{bottleneck_forward.3} parent=1 // pred_check_branch
      %48 = sbr.rel (0) target = $region17
    $region16: #{bottleneck_forward.3} parent=1 // pred_region
      %s50 = ssub.s32 16, 16
      %51 = vsyncadd [#allocation9], %s50
      %s53 = sshll.u32 [#allocation8], 4
      %s54 = int_to_ptr.vmem [resolvable:$true] %s53
      %56 = dma.hbm_to_vmem [thread:$0]  %s3, 16, %s54, [#allocation9]
    $region17: #{bottleneck_forward.3} parent=1 // pred_fallthru
      _
    // Predicated region
    $region18: #{bottleneck_forward.3} parent=1 // pred_check
      _
    $region19: #{bottleneck_forward.3} parent=1 // pred_check_branch
      %58 = sbr.rel (0) target = $region21
    $region20: #{bottleneck_forward.3} parent=1 // pred_region
      %59 = dma.done [#allocation3], 4096
    $region21: #{bottleneck_forward.3} parent=1 // pred_fallthru
      _
    // Predicated region
    $region22: #{bottleneck_forward.3} parent=1 // pred_check
      _
    $region23: #{bottleneck_forward.3} parent=1 // pred_check_branch
      %61 = sbr.rel (0) target = $region25
    $region24: #{bottleneck_forward.3} parent=1 // pred_region
      %62 = dma.done [#allocation6], 128
    $region25: #{bottleneck_forward.3} parent=1 // pred_fallthru
      _
    // Predicated region
    $region26: #{bottleneck_forward.3} parent=1 // pred_check
      _
    $region27: #{bottleneck_forward.3} parent=1 // pred_check_branch
      %64 = sbr.rel (0) target = $region29
    $region28: #{bottleneck_forward.3} parent=1 // pred_region
      %65 = dma.done [#allocation6], 16
    $region29: #{bottleneck_forward.3} parent=1 // pred_fallthru
      _
    // Predicated region
    $region30: #{bottleneck_forward.3} parent=1 // pred_check
      _
    $region31: #{bottleneck_forward.3} parent=1 // pred_check_branch
      %67 = sbr.rel (0) target = $region33
    $region32: #{bottleneck_forward.3} parent=1 // pred_region
      %68 = dma.done [#allocation9], 16
    $region33: #{bottleneck_forward.3} parent=1 // pred_fallthru
      _
    %v70 = vld [vmem:[#allocation2] sm:$0xf]
    %v71 = vld [vmem:[#allocation2 + $0x4] sm:$0xf]
    %v72 = vld [vmem:[#allocation2 + $0x8] sm:$0xf]
    %v73 = vld [vmem:[#allocation2 + $0xc] sm:$0xf]
    %v74 = vld [vmem:[#allocation2 + $0x10] sm:$0xf]
    %v75 = vld [vmem:[#allocation2 + $0x14] sm:$0xf]
    %v76 = vld [vmem:[#allocation2 + $0x18] sm:$0xf]
    %v77 = vld [vmem:[#allocation2 + $0x1c] sm:$0xf]
    %v78 = vld [vmem:[#allocation2 + $0x20] sm:$0xf]
    %v79 = vld [vmem:[#allocation2 + $0x24] sm:$0xf]
    %v80 = vld [vmem:[#allocation2 + $0x28] sm:$0xf]
    %v81 = vld [vmem:[#allocation2 + $0x2c] sm:$0xf]
    %v82 = vld [vmem:[#allocation2 + $0x30] sm:$0xf]
    %v83 = vld [vmem:[#allocation2 + $0x34] sm:$0xf]
    %v84 = vld [vmem:[#allocation2 + $0x38] sm:$0xf]
    %v85 = vld [vmem:[#allocation2 + $0x3c] sm:$0xf]
    %v86 = vld [vmem:[#allocation2 + $0x40] sm:$0xf]
    %v87 = vld [vmem:[#allocation2 + $0x44] sm:$0xf]
    %v88 = vld [vmem:[#allocation2 + $0x48] sm:$0xf]
    %v89 = vld [vmem:[#allocation2 + $0x4c] sm:$0xf]
    %v90 = vld [vmem:[#allocation2 + $0x50] sm:$0xf]
    %v91 = vld [vmem:[#allocation2 + $0x54] sm:$0xf]
    %v92 = vld [vmem:[#allocation2 + $0x58] sm:$0xf]
    %v93 = vld [vmem:[#allocation2 + $0x5c] sm:$0xf]
    %v94 = vld [vmem:[#allocation2 + $0x60] sm:$0xf]
    %v95 = vld [vmem:[#allocation2 + $0x64] sm:$0xf]
    %v96 = vld [vmem:[#allocation2 + $0x68] sm:$0xf]
    %v97 = vld [vmem:[#allocation2 + $0x6c] sm:$0xf]
    %v98 = vld [vmem:[#allocation2 + $0x70] sm:$0xf]
    %v99 = vld [vmem:[#allocation2 + $0x74] sm:$0xf]
    %v100 = vld [vmem:[#allocation2 + $0x78] sm:$0xf]
    %v101 = vld [vmem:[#allocation2 + $0x7c] sm:$0xf]
    %v102 = vld [vmem:[#allocation2 + $0x80] sm:$0xf]
    %v103 = vld [vmem:[#allocation2 + $0x84] sm:$0xf]
    %v104 = vld [vmem:[#allocation2 + $0x88] sm:$0xf]
    %v105 = vld [vmem:[#allocation2 + $0x8c] sm:$0xf]
    %v106 = vld [vmem:[#allocation2 + $0x90] sm:$0xf]
    %v107 = vld [vmem:[#allocation2 + $0x94] sm:$0xf]
    %v108 = vld [vmem:[#allocation2 + $0x98] sm:$0xf]
    %v109 = vld [vmem:[#allocation2 + $0x9c] sm:$0xf]
    %v110 = vld [vmem:[#allocation2 + $0xa0] sm:$0xf]
    %v111 = vld [vmem:[#allocation2 + $0xa4] sm:$0xf]
    %v112 = vld [vmem:[#allocation2 + $0xa8] sm:$0xf]
    %v113 = vld [vmem:[#allocation2 + $0xac] sm:$0xf]
    %v114 = vld [vmem:[#allocation2 + $0xb0] sm:$0xf]
    %v115 = vld [vmem:[#allocation2 + $0xb4] sm:$0xf]
    %v116 = vld [vmem:[#allocation2 + $0xb8] sm:$0xf]
    %v117 = vld [vmem:[#allocation2 + $0xbc] sm:$0xf]
    %v118 = vld [vmem:[#allocation2 + $0xc0] sm:$0xf]
    %v119 = vld [vmem:[#allocation2 + $0xc4] sm:$0xf]
    %v120 = vld [vmem:[#allocation2 + $0xc8] sm:$0xf]
    %v121 = vld [vmem:[#allocation2 + $0xcc] sm:$0xf]
    %v122 = vld [vmem:[#allocation2 + $0xd0] sm:$0xf]
    %v123 = vld [vmem:[#allocation2 + $0xd4] sm:$0xf]
    %v124 = vld [vmem:[#allocation2 + $0xd8] sm:$0xf]
    %v125 = vld [vmem:[#allocation2 + $0xdc] sm:$0xf]
    %v126 = vld [vmem:[#allocation2 + $0xe0] sm:$0xf]
    %v127 = vld [vmem:[#allocation2 + $0xe4] sm:$0xf]
    %v128 = vld [vmem:[#allocation2 + $0xe8] sm:$0xf]
    %v129 = vld [vmem:[#allocation2 + $0xec] sm:$0xf]
    %v130 = vld [vmem:[#allocation2 + $0xf0] sm:$0xf]
    %v131 = vld [vmem:[#allocation2 + $0xf4] sm:$0xf]
    %v132 = vld [vmem:[#allocation2 + $0xf8] sm:$0xf]
    %v133 = vld [vmem:[#allocation2 + $0xfc] sm:$0xf]
    %v134 = vld [vmem:[#allocation5] sm:$0xf]
    %v135 = vld [vmem:[#allocation5 + $0x4] sm:$0xf]
    %v200 = vunpack.c.l.b16 %v70
    %v201 = vunpack.c.l.b16 %v71
    %v202 = vunpack.c.l.b16 %v72
    %v203 = vunpack.c.l.b16 %v73
    %v204 = vunpack.c.l.b16 %v74
    %v205 = vunpack.c.l.b16 %v75
    %v206 = vunpack.c.l.b16 %v76
    %v207 = vunpack.c.l.b16 %v77
    %v208 = vunpack.c.l.b16 %v78
    %v209 = vunpack.c.l.b16 %v79
    %v210 = vunpack.c.l.b16 %v80
    %v211 = vunpack.c.l.b16 %v81
    %v212 = vunpack.c.l.b16 %v82
    %v213 = vunpack.c.l.b16 %v83
    %v214 = vunpack.c.l.b16 %v84
    %v215 = vunpack.c.l.b16 %v85
    %v216 = vunpack.c.l.b16 %v86
    %v217 = vunpack.c.l.b16 %v87
    %v218 = vunpack.c.l.b16 %v88
    %v219 = vunpack.c.l.b16 %v89
    %v220 = vunpack.c.l.b16 %v90
    %v221 = vunpack.c.l.b16 %v91
    %v222 = vunpack.c.l.b16 %v92
    %v223 = vunpack.c.l.b16 %v93
    %v224 = vunpack.c.l.b16 %v94
    %v225 = vunpack.c.l.b16 %v95
    %v226 = vunpack.c.l.b16 %v96
    %v227 = vunpack.c.l.b16 %v97
    %v228 = vunpack.c.l.b16 %v98
    %v229 = vunpack.c.l.b16 %v99
    %v230 = vunpack.c.l.b16 %v100
    %v231 = vunpack.c.l.b16 %v101
    %v232 = vunpack.c.l.b16 %v102
    %v233 = vunpack.c.l.b16 %v103
    %v234 = vunpack.c.l.b16 %v104
    %v235 = vunpack.c.l.b16 %v105
    %v236 = vunpack.c.l.b16 %v106
    %v237 = vunpack.c.l.b16 %v107
    %v238 = vunpack.c.l.b16 %v108
    %v239 = vunpack.c.l.b16 %v109
    %v240 = vunpack.c.l.b16 %v110
    %v241 = vunpack.c.l.b16 %v111
    %v242 = vunpack.c.l.b16 %v112
    %v243 = vunpack.c.l.b16 %v113
    %v244 = vunpack.c.l.b16 %v114
    %v245 = vunpack.c.l.b16 %v115
    %v246 = vunpack.c.l.b16 %v116
    %v247 = vunpack.c.l.b16 %v117
    %v248 = vunpack.c.l.b16 %v118
    %v249 = vunpack.c.l.b16 %v119
    %v250 = vunpack.c.l.b16 %v120
    %v251 = vunpack.c.l.b16 %v121
    %v252 = vunpack.c.l.b16 %v122
    %v253 = vunpack.c.l.b16 %v123
    %v254 = vunpack.c.l.b16 %v124
    %v255 = vunpack.c.l.b16 %v125
    %v256 = vunpack.c.l.b16 %v126
    %v257 = vunpack.c.l.b16 %v127
    %v258 = vunpack.c.l.b16 %v128
    %v259 = vunpack.c.l.b16 %v129
    %v260 = vunpack.c.l.b16 %v130
    %v261 = vunpack.c.l.b16 %v131
    %v262 = vunpack.c.l.b16 %v132
    %v263 = vunpack.c.l.b16 %v133
    %v264 = vpack.c.b16 %v201, %v200
    %v265 = vpack.c.b16 %v203, %v202
    %v266 = vpack.c.b16 %v205, %v204
    %v267 = vpack.c.b16 %v207, %v206
    %v268 = vpack.c.b16 %v209, %v208
    %v269 = vpack.c.b16 %v211, %v210
    %v270 = vpack.c.b16 %v213, %v212
    %v271 = vpack.c.b16 %v215, %v214
    %v272 = vpack.c.b16 %v217, %v216
    %v273 = vpack.c.b16 %v219, %v218
    %v274 = vpack.c.b16 %v221, %v220
    %v275 = vpack.c.b16 %v223, %v222
    %v276 = vpack.c.b16 %v225, %v224
    %v277 = vpack.c.b16 %v227, %v226
    %v278 = vpack.c.b16 %v229, %v228
    %v279 = vpack.c.b16 %v231, %v230
    %v280 = vpack.c.b16 %v233, %v232
    %v281 = vpack.c.b16 %v235, %v234
    %v282 = vpack.c.b16 %v237, %v236
    %v283 = vpack.c.b16 %v239, %v238
    %v284 = vpack.c.b16 %v241, %v240
    %v285 = vpack.c.b16 %v243, %v242
    %v286 = vpack.c.b16 %v245, %v244
    %v287 = vpack.c.b16 %v247, %v246
    %v288 = vpack.c.b16 %v249, %v248
    %v289 = vpack.c.b16 %v251, %v250
    %v290 = vpack.c.b16 %v253, %v252
    %v291 = vpack.c.b16 %v255, %v254
    %v292 = vpack.c.b16 %v257, %v256
    %v293 = vpack.c.b16 %v259, %v258
    %v294 = vpack.c.b16 %v261, %v260
    %v295 = vpack.c.b16 %v263, %v262
    %v298 = vunpack.c.l.b16 %v134
    %v299 = vunpack.c.l.b16 %v135
    %v300 = vpack.c.b16 %v299, %v298
    %vm302 = vcmask 130048
    %v304 = vsel %vm302, %v264, 0
    %v307 = vsel %vm302, %v265, 0
    %v310 = vsel %vm302, %v266, 0
    %v313 = vsel %vm302, %v267, 0
    %v316 = vsel %vm302, %v268, 0
    %v319 = vsel %vm302, %v269, 0
    %v322 = vsel %vm302, %v270, 0
    %v325 = vsel %vm302, %v271, 0
    %v328 = vsel %vm302, %v272, 0
    %v331 = vsel %vm302, %v273, 0
    %v334 = vsel %vm302, %v274, 0
    %v337 = vsel %vm302, %v275, 0
    %v340 = vsel %vm302, %v276, 0
    %v343 = vsel %vm302, %v277, 0
    %v346 = vsel %vm302, %v278, 0
    %v349 = vsel %vm302, %v279, 0
    %v352 = vsel %vm302, %v280, 0
    %v355 = vsel %vm302, %v281, 0
    %v358 = vsel %vm302, %v282, 0
    %v361 = vsel %vm302, %v283, 0
    %v364 = vsel %vm302, %v284, 0
    %v367 = vsel %vm302, %v285, 0
    %v370 = vsel %vm302, %v286, 0
    %v373 = vsel %vm302, %v287, 0
    %v376 = vsel %vm302, %v288, 0
    %v379 = vsel %vm302, %v289, 0
    %v382 = vsel %vm302, %v290, 0
    %v385 = vsel %vm302, %v291, 0
    %v388 = vsel %vm302, %v292, 0
    %v391 = vsel %vm302, %v293, 0
    %v394 = vsel %vm302, %v294, 0
    %v397 = vsel %vm302, %v295, 0
    %399 = vmatprep.subr.bf16.mxu0 0
    %400 = vmatpush1.bf16.msra.mxu0 %v300
    %401 = vmatprep.subr.bf16.mxu0 0
    %402 = vmatpush1.bf16.msra.mxu0 0
    %403 = vmatprep.subr.bf16.mxu0 0
    %404 = vmatpush1.bf16.msra.mxu0 0
    %405 = vmatprep.subr.bf16.mxu0 0
    %406 = vmatpush1.bf16.msra.mxu0 0
    %407 = vmatprep.subr.bf16.mxu0 0
    %408 = vmatpush1.bf16.msra.mxu0 0
    %409 = vmatprep.subr.bf16.mxu0 0
    %410 = vmatpush1.bf16.msra.mxu0 0
    %411 = vmatprep.subr.bf16.mxu0 0
    %412 = vmatpush1.bf16.msra.mxu0 0
    %413 = vmatprep.subr.bf16.mxu0 0
    %414 = vmatpush1.bf16.msra.mxu0 0
    %415 = vmatprep.subr.bf16.mxu0 0
    %416 = vmatpush1.bf16.msra.mxu0 0
    %417 = vmatprep.subr.bf16.mxu0 0
    %418 = vmatpush1.bf16.msra.mxu0 0
    %419 = vmatprep.subr.bf16.mxu0 0
    %420 = vmatpush1.bf16.msra.mxu0 0
    %421 = vmatprep.subr.bf16.mxu0 0
    %422 = vmatpush1.bf16.msra.mxu0 0
    %423 = vmatprep.subr.bf16.mxu0 0
    %424 = vmatpush1.bf16.msra.mxu0 0
    %425 = vmatprep.subr.bf16.mxu0 0
    %426 = vmatpush1.bf16.msra.mxu0 0
    %427 = vmatprep.subr.bf16.mxu0 0
    %428 = vmatpush1.bf16.msra.mxu0 0
    %429 = vmatprep.subr.bf16.mxu0 0
    %430 = vmatpush1.bf16.msra.mxu0 0
    %431 = vmatprep.mubr.bf16.mxu0 0
    %432 = vmatmul.mubr.bf16.gmra.mrb[0].mxu0 %v304
    %v433 = vpop.f32.mrb[0].mxu0
    %v434 = vadd.f32 0.0, %v433
    %v435 = vpop.f32.mrb[0].mxu0
    %v436 = vpop.f32.mrb[0].mxu0
    %v437 = vadd.f32 0.0, %v436
    %v438 = vpop.f32.mrb[0].mxu0
    %439 = vmatprep.mubr.bf16.mxu0 0
    %440 = vmatmul.mubr.bf16.gmra.mrb[0].mxu0 %v307
    %v441 = vpop.f32.mrb[0].mxu0
    %v442 = vadd.f32 0.0, %v441
    %v443 = vpop.f32.mrb[0].mxu0
    %v444 = vpop.f32.mrb[0].mxu0
    %v445 = vadd.f32 0.0, %v444
    %v446 = vpop.f32.mrb[0].mxu0
    %447 = vmatprep.mubr.bf16.mxu0 0
    %448 = vmatmul.mubr.bf16.gmra.mrb[0].mxu0 %v310
    %v449 = vpop.f32.mrb[0].mxu0
    %v450 = vadd.f32 0.0, %v449
    %v451 = vpop.f32.mrb[0].mxu0
    %v452 = vpop.f32.mrb[0].mxu0
    %v453 = vadd.f32 0.0, %v452
    %v454 = vpop.f32.mrb[0].mxu0
    %455 = vmatprep.mubr.bf16.mxu0 0
    %456 = vmatmul.mubr.bf16.gmra.mrb[0].mxu0 %v313
    %v457 = vpop.f32.mrb[0].mxu0
    %v458 = vadd.f32 0.0, %v457
    %v459 = vpop.f32.mrb[0].mxu0
    %v460 = vpop.f32.mrb[0].mxu0
    %v461 = vadd.f32 0.0, %v460
    %v462 = vpop.f32.mrb[0].mxu0
    %463 = vmatprep.mubr.bf16.mxu0 0
    %464 = vmatmul.mubr.bf16.gmra.mrb[0].mxu0 %v316
    %v465 = vpop.f32.mrb[0].mxu0
    %v466 = vadd.f32 0.0, %v465
    %v467 = vpop.f32.mrb[0].mxu0
    %v468 = vpop.f32.mrb[0].mxu0
    %v469 = vadd.f32 0.0, %v468
    %v470 = vpop.f32.mrb[0].mxu0
    %471 = vmatprep.mubr.bf16.mxu0 0
    %472 = vmatmul.mubr.bf16.gmra.mrb[0].mxu0 %v319
    %v473 = vpop.f32.mrb[0].mxu0
    %v474 = vadd.f32 0.0, %v473
    %v475 = vpop.f32.mrb[0].mxu0
    %v476 = vpop.f32.mrb[0].mxu0
    %v477 = vadd.f32 0.0, %v476
    %v478 = vpop.f32.mrb[0].mxu0
    %479 = vmatprep.mubr.bf16.mxu0 0
    %480 = vmatmul.mubr.bf16.gmra.mrb[0].mxu0 %v322
    %v481 = vpop.f32.mrb[0].mxu0
    %v482 = vadd.f32 0.0, %v481
    %v483 = vpop.f32.mrb[0].mxu0
    %v484 = vpop.f32.mrb[0].mxu0
    %v485 = vadd.f32 0.0, %v484
    %v486 = vpop.f32.mrb[0].mxu0
    %487 = vmatprep.mubr.bf16.mxu0 0
    %488 = vmatmul.mubr.bf16.gmra.mrb[0].mxu0 %v325
    %v489 = vpop.f32.mrb[0].mxu0
    %v490 = vadd.f32 0.0, %v489
    %v491 = vpop.f32.mrb[0].mxu0
    %v492 = vpop.f32.mrb[0].mxu0
    %v493 = vadd.f32 0.0, %v492
    %v494 = vpop.f32.mrb[0].mxu0
    %495 = vmatprep.mubr.bf16.mxu0 0
    %496 = vmatmul.mubr.bf16.gmra.mrb[0].mxu0 %v328
    %v497 = vpop.f32.mrb[0].mxu0
    %v498 = vadd.f32 0.0, %v497
    %v499 = vpop.f32.mrb[0].mxu0
    %v500 = vpop.f32.mrb[0].mxu0
    %v501 = vadd.f32 0.0, %v500
    %v502 = vpop.f32.mrb[0].mxu0
    %503 = vmatprep.mubr.bf16.mxu0 0
    %504 = vmatmul.mubr.bf16.gmra.mrb[0].mxu0 %v331
    %v505 = vpop.f32.mrb[0].mxu0
    %v506 = vadd.f32 0.0, %v505
    %v507 = vpop.f32.mrb[0].mxu0
    %v508 = vpop.f32.mrb[0].mxu0
    %v509 = vadd.f32 0.0, %v508
    %v510 = vpop.f32.mrb[0].mxu0
    %511 = vmatprep.mubr.bf16.mxu0 0
    %512 = vmatmul.mubr.bf16.gmra.mrb[0].mxu0 %v334
    %v513 = vpop.f32.mrb[0].mxu0
    %v514 = vadd.f32 0.0, %v513
    %v515 = vpop.f32.mrb[0].mxu0
    %v516 = vpop.f32.mrb[0].mxu0
    %v517 = vadd.f32 0.0, %v516
    %v518 = vpop.f32.mrb[0].mxu0
    %519 = vmatprep.mubr.bf16.mxu0 0
    %520 = vmatmul.mubr.bf16.gmra.mrb[0].mxu0 %v337
    %v521 = vpop.f32.mrb[0].mxu0
    %v522 = vadd.f32 0.0, %v521
    %v523 = vpop.f32.mrb[0].mxu0
    %v524 = vpop.f32.mrb[0].mxu0
    %v525 = vadd.f32 0.0, %v524
    %v526 = vpop.f32.mrb[0].mxu0
    %527 = vmatprep.mubr.bf16.mxu0 0
    %528 = vmatmul.mubr.bf16.gmra.mrb[0].mxu0 %v340
    %v529 = vpop.f32.mrb[0].mxu0
    %v530 = vadd.f32 0.0, %v529
    %v531 = vpop.f32.mrb[0].mxu0
    %v532 = vpop.f32.mrb[0].mxu0
    %v533 = vadd.f32 0.0, %v532
    %v534 = vpop.f32.mrb[0].mxu0
    %535 = vmatprep.mubr.bf16.mxu0 0
    %536 = vmatmul.mubr.bf16.gmra.mrb[0].mxu0 %v343
    %v537 = vpop.f32.mrb[0].mxu0
    %v538 = vadd.f32 0.0, %v537
    %v539 = vpop.f32.mrb[0].mxu0
    %v540 = vpop.f32.mrb[0].mxu0
    %v541 = vadd.f32 0.0, %v540
    %v542 = vpop.f32.mrb[0].mxu0
    %543 = vmatprep.mubr.bf16.mxu0 0
    %544 = vmatmul.mubr.bf16.gmra.mrb[0].mxu0 %v346
    %v545 = vpop.f32.mrb[0].mxu0
    %v546 = vadd.f32 0.0, %v545
    %v547 = vpop.f32.mrb[0].mxu0
    %v548 = vpop.f32.mrb[0].mxu0
    %v549 = vadd.f32 0.0, %v548
    %v550 = vpop.f32.mrb[0].mxu0
    %551 = vmatprep.mubr.bf16.mxu0 0
    %552 = vmatmul.mubr.bf16.gmra.mrb[0].mxu0 %v349
    %v553 = vpop.f32.mrb[0].mxu0
    %v554 = vadd.f32 0.0, %v553
    %v555 = vpop.f32.mrb[0].mxu0
    %v556 = vpop.f32.mrb[0].mxu0
    %v557 = vadd.f32 0.0, %v556
    %v558 = vpop.f32.mrb[0].mxu0
    %559 = vmatprep.mubr.bf16.mxu0 0
    %560 = vmatmul.mubr.bf16.gmra.mrb[0].mxu0 %v352
    %v561 = vpop.f32.mrb[0].mxu0
    %v562 = vadd.f32 0.0, %v561
    %v563 = vpop.f32.mrb[0].mxu0
    %v564 = vpop.f32.mrb[0].mxu0
    %v565 = vadd.f32 0.0, %v564
    %v566 = vpop.f32.mrb[0].mxu0
    %567 = vmatprep.mubr.bf16.mxu0 0
    %568 = vmatmul.mubr.bf16.gmra.mrb[0].mxu0 %v355
    %v569 = vpop.f32.mrb[0].mxu0
    %v570 = vadd.f32 0.0, %v569
    %v571 = vpop.f32.mrb[0].mxu0
    %v572 = vpop.f32.mrb[0].mxu0
    %v573 = vadd.f32 0.0, %v572
    %v574 = vpop.f32.mrb[0].mxu0
    %575 = vmatprep.mubr.bf16.mxu0 0
    %576 = vmatmul.mubr.bf16.gmra.mrb[0].mxu0 %v358
    %v577 = vpop.f32.mrb[0].mxu0
    %v578 = vadd.f32 0.0, %v577
    %v579 = vpop.f32.mrb[0].mxu0
    %v580 = vpop.f32.mrb[0].mxu0
    %v581 = vadd.f32 0.0, %v580
    %v582 = vpop.f32.mrb[0].mxu0
    %583 = vmatprep.mubr.bf16.mxu0 0
    %584 = vmatmul.mubr.bf16.gmra.mrb[0].mxu0 %v361
    %v585 = vpop.f32.mrb[0].mxu0
    %v586 = vadd.f32 0.0, %v585
    %v587 = vpop.f32.mrb[0].mxu0
    %v588 = vpop.f32.mrb[0].mxu0
    %v589 = vadd.f32 0.0, %v588
    %v590 = vpop.f32.mrb[0].mxu0
    %591 = vmatprep.mubr.bf16.mxu0 0
    %592 = vmatmul.mubr.bf16.gmra.mrb[0].mxu0 %v364
    %v593 = vpop.f32.mrb[0].mxu0
    %v594 = vadd.f32 0.0, %v593
    %v595 = vpop.f32.mrb[0].mxu0
    %v596 = vpop.f32.mrb[0].mxu0
    %v597 = vadd.f32 0.0, %v596
    %v598 = vpop.f32.mrb[0].mxu0
    %599 = vmatprep.mubr.bf16.mxu0 0
    %600 = vmatmul.mubr.bf16.gmra.mrb[0].mxu0 %v367
    %v601 = vpop.f32.mrb[0].mxu0
    %v602 = vadd.f32 0.0, %v601
    %v603 = vpop.f32.mrb[0].mxu0
    %v604 = vpop.f32.mrb[0].mxu0
    %v605 = vadd.f32 0.0, %v604
    %v606 = vpop.f32.mrb[0].mxu0
    %607 = vmatprep.mubr.bf16.mxu0 0
    %608 = vmatmul.mubr.bf16.gmra.mrb[0].mxu0 %v370
    %v609 = vpop.f32.mrb[0].mxu0
    %v610 = vadd.f32 0.0, %v609
    %v611 = vpop.f32.mrb[0].mxu0
    %v612 = vpop.f32.mrb[0].mxu0
    %v613 = vadd.f32 0.0, %v612
    %v614 = vpop.f32.mrb[0].mxu0
    %615 = vmatprep.mubr.bf16.mxu0 0
    %616 = vmatmul.mubr.bf16.gmra.mrb[0].mxu0 %v373
    %v617 = vpop.f32.mrb[0].mxu0
    %v618 = vadd.f32 0.0, %v617
    %v619 = vpop.f32.mrb[0].mxu0
    %v620 = vpop.f32.mrb[0].mxu0
    %v621 = vadd.f32 0.0, %v620
    %v622 = vpop.f32.mrb[0].mxu0
    %623 = vmatprep.mubr.bf16.mxu0 0
    %624 = vmatmul.mubr.bf16.gmra.mrb[0].mxu0 %v376
    %v625 = vpop.f32.mrb[0].mxu0
    %v626 = vadd.f32 0.0, %v625
    %v627 = vpop.f32.mrb[0].mxu0
    %v628 = vpop.f32.mrb[0].mxu0
    %v629 = vadd.f32 0.0, %v628
    %v630 = vpop.f32.mrb[0].mxu0
    %631 = vmatprep.mubr.bf16.mxu0 0
    %632 = vmatmul.mubr.bf16.gmra.mrb[0].mxu0 %v379
    %v633 = vpop.f32.mrb[0].mxu0
    %v634 = vadd.f32 0.0, %v633
    %v635 = vpop.f32.mrb[0].mxu0
    %v636 = vpop.f32.mrb[0].mxu0
    %v637 = vadd.f32 0.0, %v636
    %v638 = vpop.f32.mrb[0].mxu0
    %639 = vmatprep.mubr.bf16.mxu0 0
    %640 = vmatmul.mubr.bf16.gmra.mrb[0].mxu0 %v382
    %v641 = vpop.f32.mrb[0].mxu0
    %v642 = vadd.f32 0.0, %v641
    %v643 = vpop.f32.mrb[0].mxu0
    %v644 = vpop.f32.mrb[0].mxu0
    %v645 = vadd.f32 0.0, %v644
    %v646 = vpop.f32.mrb[0].mxu0
    %647 = vmatprep.mubr.bf16.mxu0 0
    %648 = vmatmul.mubr.bf16.gmra.mrb[0].mxu0 %v385
    %v649 = vpop.f32.mrb[0].mxu0
    %v650 = vadd.f32 0.0, %v649
    %v651 = vpop.f32.mrb[0].mxu0
    %v652 = vpop.f32.mrb[0].mxu0
    %v653 = vadd.f32 0.0, %v652
    %v654 = vpop.f32.mrb[0].mxu0
    %655 = vmatprep.mubr.bf16.mxu0 0
    %656 = vmatmul.mubr.bf16.gmra.mrb[0].mxu0 %v388
    %v657 = vpop.f32.mrb[0].mxu0
    %v658 = vadd.f32 0.0, %v657
    %v659 = vpop.f32.mrb[0].mxu0
    %v660 = vpop.f32.mrb[0].mxu0
    %v661 = vadd.f32 0.0, %v660
    %v662 = vpop.f32.mrb[0].mxu0
    %663 = vmatprep.mubr.bf16.mxu0 0
    %664 = vmatmul.mubr.bf16.gmra.mrb[0].mxu0 %v391
    %v665 = vpop.f32.mrb[0].mxu0
    %v666 = vadd.f32 0.0, %v665
    %v667 = vpop.f32.mrb[0].mxu0
    %v668 = vpop.f32.mrb[0].mxu0
    %v669 = vadd.f32 0.0, %v668
    %v670 = vpop.f32.mrb[0].mxu0
    %671 = vmatprep.mubr.bf16.mxu0 0
    %672 = vmatmul.mubr.bf16.gmra.mrb[0].mxu0 %v394
    %v673 = vpop.f32.mrb[0].mxu0
    %v674 = vadd.f32 0.0, %v673
    %v675 = vpop.f32.mrb[0].mxu0
    %v676 = vpop.f32.mrb[0].mxu0
    %v677 = vadd.f32 0.0, %v676
    %v678 = vpop.f32.mrb[0].mxu0
    %679 = vmatprep.mubr.bf16.mxu0 0
    %680 = vmatmul.mubr.bf16.gmra.mrb[0].mxu0 %v397
    %v681 = vpop.f32.mrb[0].mxu0
    %v682 = vadd.f32 0.0, %v681
    %v683 = vpop.f32.mrb[0].mxu0
    %v684 = vpop.f32.mrb[0].mxu0
    %v685 = vadd.f32 0.0, %v684
    %v686 = vpop.f32.mrb[0].mxu0
    %687 = vdwg.mxu0
    %v688 = vld [vmem:[#allocation7] sm:$0x1]
    %v690 = vlaneseq
    %v691 = vshrl.u32 %v690, 7
    %v692 = vsub.s32 0, %v691
    %v693 = vrot.slane %v688, %v692
    %v695 = vmul.f32 %v434, %v693
    %v696 = vmul.f32 %v437, %v693
    %v697 = vmul.f32 %v442, %v693
    %v698 = vmul.f32 %v445, %v693
    %v699 = vmul.f32 %v450, %v693
    %v700 = vmul.f32 %v453, %v693
    %v701 = vmul.f32 %v458, %v693
    %v702 = vmul.f32 %v461, %v693
    %v703 = vmul.f32 %v466, %v693
    %v704 = vmul.f32 %v469, %v693
    %v705 = vmul.f32 %v474, %v693
    %v706 = vmul.f32 %v477, %v693
    %v707 = vmul.f32 %v482, %v693
    %v708 = vmul.f32 %v485, %v693
    %v709 = vmul.f32 %v490, %v693
    %v710 = vmul.f32 %v493, %v693
    %v711 = vmul.f32 %v498, %v693
    %v712 = vmul.f32 %v501, %v693
    %v713 = vmul.f32 %v506, %v693
    %v714 = vmul.f32 %v509, %v693
    %v715 = vmul.f32 %v514, %v693
    %v716 = vmul.f32 %v517, %v693
    %v717 = vmul.f32 %v522, %v693
    %v718 = vmul.f32 %v525, %v693
    %v719 = vmul.f32 %v530, %v693
    %v720 = vmul.f32 %v533, %v693
    %v721 = vmul.f32 %v538, %v693
    %v722 = vmul.f32 %v541, %v693
    %v723 = vmul.f32 %v546, %v693
    %v724 = vmul.f32 %v549, %v693
    %v725 = vmul.f32 %v554, %v693
    %v726 = vmul.f32 %v557, %v693
    %v727 = vmul.f32 %v562, %v693
    %v728 = vmul.f32 %v565, %v693
    %v729 = vmul.f32 %v570, %v693
    %v730 = vmul.f32 %v573, %v693
    %v731 = vmul.f32 %v578, %v693
    %v732 = vmul.f32 %v581, %v693
    %v733 = vmul.f32 %v586, %v693
    %v734 = vmul.f32 %v589, %v693
    %v735 = vmul.f32 %v594, %v693
    %v736 = vmul.f32 %v597, %v693
    %v737 = vmul.f32 %v602, %v693
    %v738 = vmul.f32 %v605, %v693
    %v739 = vmul.f32 %v610, %v693
    %v740 = vmul.f32 %v613, %v693
    %v741 = vmul.f32 %v618, %v693
    %v742 = vmul.f32 %v621, %v693
    %v743 = vmul.f32 %v626, %v693
    %v744 = vmul.f32 %v629, %v693
    %v745 = vmul.f32 %v634, %v693
    %v746 = vmul.f32 %v637, %v693
    %v747 = vmul.f32 %v642, %v693
    %v748 = vmul.f32 %v645, %v693
    %v749 = vmul.f32 %v650, %v693
    %v750 = vmul.f32 %v653, %v693
    %v751 = vmul.f32 %v658, %v693
    %v752 = vmul.f32 %v661, %v693
    %v753 = vmul.f32 %v666, %v693
    %v754 = vmul.f32 %v669, %v693
    %v755 = vmul.f32 %v674, %v693
    %v756 = vmul.f32 %v677, %v693
    %v757 = vmul.f32 %v682, %v693
    %v758 = vmul.f32 %v685, %v693
    %v759 = vld [vmem:[#allocation8] sm:$0x1]
    %v761 = vlaneseq
    %v762 = vshrl.u32 %v761, 7
    %v763 = vsub.s32 0, %v762
    %v764 = vrot.slane %v759, %v763
    %v766 = vadd.f32 %v695, %v764
    %v767 = vadd.f32 %v696, %v764
    %v768 = vadd.f32 %v697, %v764
    %v769 = vadd.f32 %v698, %v764
    %v770 = vadd.f32 %v699, %v764
    %v771 = vadd.f32 %v700, %v764
    %v772 = vadd.f32 %v701, %v764
    %v773 = vadd.f32 %v702, %v764
    %v774 = vadd.f32 %v703, %v764
    %v775 = vadd.f32 %v704, %v764
    %v776 = vadd.f32 %v705, %v764
    %v777 = vadd.f32 %v706, %v764
    %v778 = vadd.f32 %v707, %v764
    %v779 = vadd.f32 %v708, %v764
    %v780 = vadd.f32 %v709, %v764
    %v781 = vadd.f32 %v710, %v764
    %v782 = vadd.f32 %v711, %v764
    %v783 = vadd.f32 %v712, %v764
    %v784 = vadd.f32 %v713, %v764
    %v785 = vadd.f32 %v714, %v764
    %v786 = vadd.f32 %v715, %v764
    %v787 = vadd.f32 %v716, %v764
    %v788 = vadd.f32 %v717, %v764
    %v789 = vadd.f32 %v718, %v764
    %v790 = vadd.f32 %v719, %v764
    %v791 = vadd.f32 %v720, %v764
    %v792 = vadd.f32 %v721, %v764
    %v793 = vadd.f32 %v722, %v764
    %v794 = vadd.f32 %v723, %v764
    %v795 = vadd.f32 %v724, %v764
    %v796 = vadd.f32 %v725, %v764
    %v797 = vadd.f32 %v726, %v764
    %v798 = vadd.f32 %v727, %v764
    %v799 = vadd.f32 %v728, %v764
    %v800 = vadd.f32 %v729, %v764
    %v801 = vadd.f32 %v730, %v764
    %v802 = vadd.f32 %v731, %v764
    %v803 = vadd.f32 %v732, %v764
    %v804 = vadd.f32 %v733, %v764
    %v805 = vadd.f32 %v734, %v764
    %v806 = vadd.f32 %v735, %v764
    %v807 = vadd.f32 %v736, %v764
    %v808 = vadd.f32 %v737, %v764
    %v809 = vadd.f32 %v738, %v764
    %v810 = vadd.f32 %v739, %v764
    %v811 = vadd.f32 %v740, %v764
    %v812 = vadd.f32 %v741, %v764
    %v813 = vadd.f32 %v742, %v764
    %v814 = vadd.f32 %v743, %v764
    %v815 = vadd.f32 %v744, %v764
    %v816 = vadd.f32 %v745, %v764
    %v817 = vadd.f32 %v746, %v764
    %v818 = vadd.f32 %v747, %v764
    %v819 = vadd.f32 %v748, %v764
    %v820 = vadd.f32 %v749, %v764
    %v821 = vadd.f32 %v750, %v764
    %v822 = vadd.f32 %v751, %v764
    %v823 = vadd.f32 %v752, %v764
    %v824 = vadd.f32 %v753, %v764
    %v825 = vadd.f32 %v754, %v764
    %v826 = vadd.f32 %v755, %v764
    %v827 = vadd.f32 %v756, %v764
    %v828 = vadd.f32 %v757, %v764
    %v829 = vadd.f32 %v758, %v764
    %v830 = vmax.f32 %v766, 0.0
    %v831 = vmax.f32 %v767, 0.0
    %v832 = vmax.f32 %v768, 0.0
    %v833 = vmax.f32 %v769, 0.0
    %v834 = vmax.f32 %v770, 0.0
    %v835 = vmax.f32 %v771, 0.0
    %v836 = vmax.f32 %v772, 0.0
    %v837 = vmax.f32 %v773, 0.0
    %v838 = vmax.f32 %v774, 0.0
    %v839 = vmax.f32 %v775, 0.0
    %v840 = vmax.f32 %v776, 0.0
    %v841 = vmax.f32 %v777, 0.0
    %v842 = vmax.f32 %v778, 0.0
    %v843 = vmax.f32 %v779, 0.0
    %v844 = vmax.f32 %v780, 0.0
    %v845 = vmax.f32 %v781, 0.0
    %v846 = vmax.f32 %v782, 0.0
    %v847 = vmax.f32 %v783, 0.0
    %v848 = vmax.f32 %v784, 0.0
    %v849 = vmax.f32 %v785, 0.0
    %v850 = vmax.f32 %v786, 0.0
    %v851 = vmax.f32 %v787, 0.0
    %v852 = vmax.f32 %v788, 0.0
    %v853 = vmax.f32 %v789, 0.0
    %v854 = vmax.f32 %v790, 0.0
    %v855 = vmax.f32 %v791, 0.0
    %v856 = vmax.f32 %v792, 0.0
    %v857 = vmax.f32 %v793, 0.0
    %v858 = vmax.f32 %v794, 0.0
    %v859 = vmax.f32 %v795, 0.0
    %v860 = vmax.f32 %v796, 0.0
    %v861 = vmax.f32 %v797, 0.0
    %v862 = vmax.f32 %v798, 0.0
    %v863 = vmax.f32 %v799, 0.0
    %v864 = vmax.f32 %v800, 0.0
    %v865 = vmax.f32 %v801, 0.0
    %v866 = vmax.f32 %v802, 0.0
    %v867 = vmax.f32 %v803, 0.0
    %v868 = vmax.f32 %v804, 0.0
    %v869 = vmax.f32 %v805, 0.0
    %v870 = vmax.f32 %v806, 0.0
    %v871 = vmax.f32 %v807, 0.0
    %v872 = vmax.f32 %v808, 0.0
    %v873 = vmax.f32 %v809, 0.0
    %v874 = vmax.f32 %v810, 0.0
    %v875 = vmax.f32 %v811, 0.0
    %v876 = vmax.f32 %v812, 0.0
    %v877 = vmax.f32 %v813, 0.0
    %v878 = vmax.f32 %v814, 0.0
    %v879 = vmax.f32 %v815, 0.0
    %v880 = vmax.f32 %v816, 0.0
    %v881 = vmax.f32 %v817, 0.0
    %v882 = vmax.f32 %v818, 0.0
    %v883 = vmax.f32 %v819, 0.0
    %v884 = vmax.f32 %v820, 0.0
    %v885 = vmax.f32 %v821, 0.0
    %v886 = vmax.f32 %v822, 0.0
    %v887 = vmax.f32 %v823, 0.0
    %v888 = vmax.f32 %v824, 0.0
    %v889 = vmax.f32 %v825, 0.0
    %v890 = vmax.f32 %v826, 0.0
    %v891 = vmax.f32 %v827, 0.0
    %v892 = vmax.f32 %v828, 0.0
    %v893 = vmax.f32 %v829, 0.0
    %v894 = vpack.c.bf16 %v831, %v830
    %v895 = vpack.c.bf16 %v833, %v832
    %v896 = vpack.c.bf16 %v835, %v834
    %v897 = vpack.c.bf16 %v837, %v836
    %v898 = vpack.c.bf16 %v839, %v838
    %v899 = vpack.c.bf16 %v841, %v840
    %v900 = vpack.c.bf16 %v843, %v842
    %v901 = vpack.c.bf16 %v845, %v844
    %v902 = vpack.c.bf16 %v847, %v846
    %v903 = vpack.c.bf16 %v849, %v848
    %v904 = vpack.c.bf16 %v851, %v850
    %v905 = vpack.c.bf16 %v853, %v852
    %v906 = vpack.c.bf16 %v855, %v854
    %v907 = vpack.c.bf16 %v857, %v856
    %v908 = vpack.c.bf16 %v859, %v858
    %v909 = vpack.c.bf16 %v861, %v860
    %v910 = vpack.c.bf16 %v863, %v862
    %v911 = vpack.c.bf16 %v865, %v864
    %v912 = vpack.c.bf16 %v867, %v866
    %v913 = vpack.c.bf16 %v869, %v868
    %v914 = vpack.c.bf16 %v871, %v870
    %v915 = vpack.c.bf16 %v873, %v872
    %v916 = vpack.c.bf16 %v875, %v874
    %v917 = vpack.c.bf16 %v877, %v876
    %v918 = vpack.c.bf16 %v879, %v878
    %v919 = vpack.c.bf16 %v881, %v880
    %v920 = vpack.c.bf16 %v883, %v882
    %v921 = vpack.c.bf16 %v885, %v884
    %v922 = vpack.c.bf16 %v887, %v886
    %v923 = vpack.c.bf16 %v889, %v888
    %v924 = vpack.c.bf16 %v891, %v890
    %v925 = vpack.c.bf16 %v893, %v892
    %v958 = vunpack.c.l.b16 %v894
    %v959 = vunpack.c.h.b16 %v894
    %v960 = vunpack.c.l.b16 %v895
    %v961 = vunpack.c.h.b16 %v895
    %v962 = vunpack.c.l.b16 %v896
    %v963 = vunpack.c.h.b16 %v896
    %v964 = vunpack.c.l.b16 %v897
    %v965 = vunpack.c.h.b16 %v897
    %v966 = vunpack.c.l.b16 %v898
    %v967 = vunpack.c.h.b16 %v898
    %v968 = vunpack.c.l.b16 %v899
    %v969 = vunpack.c.h.b16 %v899
    %v970 = vunpack.c.l.b16 %v900
    %v971 = vunpack.c.h.b16 %v900
    %v972 = vunpack.c.l.b16 %v901
    %v973 = vunpack.c.h.b16 %v901
    %v974 = vunpack.c.l.b16 %v902
    %v975 = vunpack.c.h.b16 %v902
    %v976 = vunpack.c.l.b16 %v903
    %v977 = vunpack.c.h.b16 %v903
    %v978 = vunpack.c.l.b16 %v904
    %v979 = vunpack.c.h.b16 %v904
    %v980 = vunpack.c.l.b16 %v905
    %v981 = vunpack.c.h.b16 %v905
    %v982 = vunpack.c.l.b16 %v906
    %v983 = vunpack.c.h.b16 %v906
    %v984 = vunpack.c.l.b16 %v907
    %v985 = vunpack.c.h.b16 %v907
    %v986 = vunpack.c.l.b16 %v908
    %v987 = vunpack.c.h.b16 %v908
    %v988 = vunpack.c.l.b16 %v909
    %v989 = vunpack.c.h.b16 %v909
    %v990 = vunpack.c.l.b16 %v910
    %v991 = vunpack.c.h.b16 %v910
    %v992 = vunpack.c.l.b16 %v911
    %v993 = vunpack.c.h.b16 %v911
    %v994 = vunpack.c.l.b16 %v912
    %v995 = vunpack.c.h.b16 %v912
    %v996 = vunpack.c.l.b16 %v913
    %v997 = vunpack.c.h.b16 %v913
    %v998 = vunpack.c.l.b16 %v914
    %v999 = vunpack.c.h.b16 %v914
    %v1000 = vunpack.c.l.b16 %v915
    %v1001 = vunpack.c.h.b16 %v915
    %v1002 = vunpack.c.l.b16 %v916
    %v1003 = vunpack.c.h.b16 %v916
    %v1004 = vunpack.c.l.b16 %v917
    %v1005 = vunpack.c.h.b16 %v917
    %v1006 = vunpack.c.l.b16 %v918
    %v1007 = vunpack.c.h.b16 %v918
    %v1008 = vunpack.c.l.b16 %v919
    %v1009 = vunpack.c.h.b16 %v919
    %v1010 = vunpack.c.l.b16 %v920
    %v1011 = vunpack.c.h.b16 %v920
    %v1012 = vunpack.c.l.b16 %v921
    %v1013 = vunpack.c.h.b16 %v921
    %v1014 = vunpack.c.l.b16 %v922
    %v1015 = vunpack.c.h.b16 %v922
    %v1016 = vunpack.c.l.b16 %v923
    %v1017 = vunpack.c.h.b16 %v923
    %v1018 = vunpack.c.l.b16 %v924
    %v1019 = vunpack.c.h.b16 %v924
    %v1020 = vunpack.c.l.b16 %v925
    %v1021 = vunpack.c.h.b16 %v925
    %v1022 = vpack.c.b16 %v958, %v958
    %v1023 = vpack.c.b16 %v959, %v959
    %v1024 = vpack.c.b16 %v960, %v960
    %v1025 = vpack.c.b16 %v961, %v961
    %v1026 = vpack.c.b16 %v962, %v962
    %v1027 = vpack.c.b16 %v963, %v963
    %v1028 = vpack.c.b16 %v964, %v964
    %v1029 = vpack.c.b16 %v965, %v965
    %v1030 = vpack.c.b16 %v966, %v966
    %v1031 = vpack.c.b16 %v967, %v967
    %v1032 = vpack.c.b16 %v968, %v968
    %v1033 = vpack.c.b16 %v969, %v969
    %v1034 = vpack.c.b16 %v970, %v970
    %v1035 = vpack.c.b16 %v971, %v971
    %v1036 = vpack.c.b16 %v972, %v972
    %v1037 = vpack.c.b16 %v973, %v973
    %v1038 = vpack.c.b16 %v974, %v974
    %v1039 = vpack.c.b16 %v975, %v975
    %v1040 = vpack.c.b16 %v976, %v976
    %v1041 = vpack.c.b16 %v977, %v977
    %v1042 = vpack.c.b16 %v978, %v978
    %v1043 = vpack.c.b16 %v979, %v979
    %v1044 = vpack.c.b16 %v980, %v980
    %v1045 = vpack.c.b16 %v981, %v981
    %v1046 = vpack.c.b16 %v982, %v982
    %v1047 = vpack.c.b16 %v983, %v983
    %v1048 = vpack.c.b16 %v984, %v984
    %v1049 = vpack.c.b16 %v985, %v985
    %v1050 = vpack.c.b16 %v986, %v986
    %v1051 = vpack.c.b16 %v987, %v987
    %v1052 = vpack.c.b16 %v988, %v988
    %v1053 = vpack.c.b16 %v989, %v989
    %v1054 = vpack.c.b16 %v990, %v990
    %v1055 = vpack.c.b16 %v991, %v991
    %v1056 = vpack.c.b16 %v992, %v992
    %v1057 = vpack.c.b16 %v993, %v993
    %v1058 = vpack.c.b16 %v994, %v994
    %v1059 = vpack.c.b16 %v995, %v995
    %v1060 = vpack.c.b16 %v996, %v996
    %v1061 = vpack.c.b16 %v997, %v997
    %v1062 = vpack.c.b16 %v998, %v998
    %v1063 = vpack.c.b16 %v999, %v999
    %v1064 = vpack.c.b16 %v1000, %v1000
    %v1065 = vpack.c.b16 %v1001, %v1001
    %v1066 = vpack.c.b16 %v1002, %v1002
    %v1067 = vpack.c.b16 %v1003, %v1003
    %v1068 = vpack.c.b16 %v1004, %v1004
    %v1069 = vpack.c.b16 %v1005, %v1005
    %v1070 = vpack.c.b16 %v1006, %v1006
    %v1071 = vpack.c.b16 %v1007, %v1007
    %v1072 = vpack.c.b16 %v1008, %v1008
    %v1073 = vpack.c.b16 %v1009, %v1009
    %v1074 = vpack.c.b16 %v1010, %v1010
    %v1075 = vpack.c.b16 %v1011, %v1011
    %v1076 = vpack.c.b16 %v1012, %v1012
    %v1077 = vpack.c.b16 %v1013, %v1013
    %v1078 = vpack.c.b16 %v1014, %v1014
    %v1079 = vpack.c.b16 %v1015, %v1015
    %v1080 = vpack.c.b16 %v1016, %v1016
    %v1081 = vpack.c.b16 %v1017, %v1017
    %v1082 = vpack.c.b16 %v1018, %v1018
    %v1083 = vpack.c.b16 %v1019, %v1019
    %v1084 = vpack.c.b16 %v1020, %v1020
    %v1085 = vpack.c.b16 %v1021, %v1021
    %vm1150 = vcmask 60416
    %1151 = vst.msk [vmem:[#allocation10] sm:$0xf] %vm1150, %v1022
    %1152 = vst.msk [vmem:[#allocation10 + $0x4] sm:$0xf] %vm1150, %v1023
    %1153 = vst.msk [vmem:[#allocation10 + $0x8] sm:$0xf] %vm1150, %v1024
    %1154 = vst.msk [vmem:[#allocation10 + $0xc] sm:$0xf] %vm1150, %v1025
    %1155 = vst.msk [vmem:[#allocation10 + $0x10] sm:$0xf] %vm1150, %v1026
    %1156 = vst.msk [vmem:[#allocation10 + $0x14] sm:$0xf] %vm1150, %v1027
    %1157 = vst.msk [vmem:[#allocation10 + $0x18] sm:$0xf] %vm1150, %v1028
    %1158 = vst.msk [vmem:[#allocation10 + $0x1c] sm:$0xf] %vm1150, %v1029
    %1159 = vst.msk [vmem:[#allocation10 + $0x20] sm:$0xf] %vm1150, %v1030
    %1160 = vst.msk [vmem:[#allocation10 + $0x24] sm:$0xf] %vm1150, %v1031
    %1161 = vst.msk [vmem:[#allocation10 + $0x28] sm:$0xf] %vm1150, %v1032
    %1162 = vst.msk [vmem:[#allocation10 + $0x2c] sm:$0xf] %vm1150, %v1033
    %1163 = vst.msk [vmem:[#allocation10 + $0x30] sm:$0xf] %vm1150, %v1034
    %1164 = vst.msk [vmem:[#allocation10 + $0x34] sm:$0xf] %vm1150, %v1035
    %1165 = vst.msk [vmem:[#allocation10 + $0x38] sm:$0xf] %vm1150, %v1036
    %1166 = vst.msk [vmem:[#allocation10 + $0x3c] sm:$0xf] %vm1150, %v1037
    %1167 = vst.msk [vmem:[#allocation10 + $0x40] sm:$0xf] %vm1150, %v1038
    %1168 = vst.msk [vmem:[#allocation10 + $0x44] sm:$0xf] %vm1150, %v1039
    %1169 = vst.msk [vmem:[#allocation10 + $0x48] sm:$0xf] %vm1150, %v1040
    %1170 = vst.msk [vmem:[#allocation10 + $0x4c] sm:$0xf] %vm1150, %v1041
    %1171 = vst.msk [vmem:[#allocation10 + $0x50] sm:$0xf] %vm1150, %v1042
    %1172 = vst.msk [vmem:[#allocation10 + $0x54] sm:$0xf] %vm1150, %v1043
    %1173 = vst.msk [vmem:[#allocation10 + $0x58] sm:$0xf] %vm1150, %v1044
    %1174 = vst.msk [vmem:[#allocation10 + $0x5c] sm:$0xf] %vm1150, %v1045
    %1175 = vst.msk [vmem:[#allocation10 + $0x60] sm:$0xf] %vm1150, %v1046
    %1176 = vst.msk [vmem:[#allocation10 + $0x64] sm:$0xf] %vm1150, %v1047
    %1177 = vst.msk [vmem:[#allocation10 + $0x68] sm:$0xf] %vm1150, %v1048
    %1178 = vst.msk [vmem:[#allocation10 + $0x6c] sm:$0xf] %vm1150, %v1049
    %1179 = vst.msk [vmem:[#allocation10 + $0x70] sm:$0xf] %vm1150, %v1050
    %1180 = vst.msk [vmem:[#allocation10 + $0x74] sm:$0xf] %vm1150, %v1051
    %1181 = vst.msk [vmem:[#allocation10 + $0x78] sm:$0xf] %vm1150, %v1052
    %1182 = vst.msk [vmem:[#allocation10 + $0x7c] sm:$0xf] %vm1150, %v1053
    %1183 = vst.msk [vmem:[#allocation10 + $0x80] sm:$0xf] %vm1150, %v1054
    %1184 = vst.msk [vmem:[#allocation10 + $0x84] sm:$0xf] %vm1150, %v1055
    %1185 = vst.msk [vmem:[#allocation10 + $0x88] sm:$0xf] %vm1150, %v1056
    %1186 = vst.msk [vmem:[#allocation10 + $0x8c] sm:$0xf] %vm1150, %v1057
    %1187 = vst.msk [vmem:[#allocation10 + $0x90] sm:$0xf] %vm1150, %v1058
    %1188 = vst.msk [vmem:[#allocation10 + $0x94] sm:$0xf] %vm1150, %v1059
    %1189 = vst.msk [vmem:[#allocation10 + $0x98] sm:$0xf] %vm1150, %v1060
    %1190 = vst.msk [vmem:[#allocation10 + $0x9c] sm:$0xf] %vm1150, %v1061
    %1191 = vst.msk [vmem:[#allocation10 + $0xa0] sm:$0xf] %vm1150, %v1062
    %1192 = vst.msk [vmem:[#allocation10 + $0xa4] sm:$0xf] %vm1150, %v1063
    %1193 = vst.msk [vmem:[#allocation10 + $0xa8] sm:$0xf] %vm1150, %v1064
    %1194 = vst.msk [vmem:[#allocation10 + $0xac] sm:$0xf] %vm1150, %v1065
    %1195 = vst.msk [vmem:[#allocation10 + $0xb0] sm:$0xf] %vm1150, %v1066
    %1196 = vst.msk [vmem:[#allocation10 + $0xb4] sm:$0xf] %vm1150, %v1067
    %1197 = vst.msk [vmem:[#allocation10 + $0xb8] sm:$0xf] %vm1150, %v1068
    %1198 = vst.msk [vmem:[#allocation10 + $0xbc] sm:$0xf] %vm1150, %v1069
    %1199 = vst.msk [vmem:[#allocation10 + $0xc0] sm:$0xf] %vm1150, %v1070
    %1200 = vst.msk [vmem:[#allocation10 + $0xc4] sm:$0xf] %vm1150, %v1071
    %1201 = vst.msk [vmem:[#allocation10 + $0xc8] sm:$0xf] %vm1150, %v1072
    %1202 = vst.msk [vmem:[#allocation10 + $0xcc] sm:$0xf] %vm1150, %v1073
    %1203 = vst.msk [vmem:[#allocation10 + $0xd0] sm:$0xf] %vm1150, %v1074
    %1204 = vst.msk [vmem:[#allocation10 + $0xd4] sm:$0xf] %vm1150, %v1075
    %1205 = vst.msk [vmem:[#allocation10 + $0xd8] sm:$0xf] %vm1150, %v1076
    %1206 = vst.msk [vmem:[#allocation10 + $0xdc] sm:$0xf] %vm1150, %v1077
    %1207 = vst.msk [vmem:[#allocation10 + $0xe0] sm:$0xf] %vm1150, %v1078
    %1208 = vst.msk [vmem:[#allocation10 + $0xe4] sm:$0xf] %vm1150, %v1079
    %1209 = vst.msk [vmem:[#allocation10 + $0xe8] sm:$0xf] %vm1150, %v1080
    %1210 = vst.msk [vmem:[#allocation10 + $0xec] sm:$0xf] %vm1150, %v1081
    %1211 = vst.msk [vmem:[#allocation10 + $0xf0] sm:$0xf] %vm1150, %v1082
    %1212 = vst.msk [vmem:[#allocation10 + $0xf4] sm:$0xf] %vm1150, %v1083
    %1213 = vst.msk [vmem:[#allocation10 + $0xf8] sm:$0xf] %vm1150, %v1084
    %1214 = vst.msk [vmem:[#allocation10 + $0xfc] sm:$0xf] %vm1150, %v1085
    // Predicated region
    $region34: #{bottleneck_forward.3} parent=1 // pred_check
      _
    $region35: #{bottleneck_forward.3} parent=1 // pred_check_branch
      %1216 = sbr.rel (0) target = $region37
    $region36: #{bottleneck_forward.3} parent=1 // pred_region
      %s1218 = ssub.s32 4096, 4096
      %1219 = vsyncadd [#allocation4], %s1218
      %s1220 = sshll.u32 [#allocation10], 4
      %s1221 = int_to_ptr.vmem [resolvable:$true] %s1220
      %1226 = dma.vmem_to_hbm [thread:$0]  %s1221, 4096, %s4, [#allocation4], 64, 64, 4
    $region37: #{bottleneck_forward.3} parent=1 // pred_fallthru
      _
    // Predicated region
    $region38: #{bottleneck_forward.3} parent=1 // pred_check
      _
    $region39: #{bottleneck_forward.3} parent=1 // pred_check_branch
      %1228 = sbr.rel (0) target = $region41
    $region40: #{bottleneck_forward.3} parent=1 // pred_region
      %1229 = dma.done [#allocation4], 4096
    $region41: #{bottleneck_forward.3} parent=1 // pred_fallthru
      _
    %1230 = vsyncpa [#allocation3], 1
    %1231 = vsyncpa [#allocation6], 1
    %1232 = vsyncpa [#allocation9], 1
    %1233 = vsyncpa [#allocation4], 1

// kernel: bottleneck_forward.5
$region0: #{bottleneck_forward.5}
  #allocation0 [shape = 'u32[]', space=smem, size = 0x4, offset = 0x4, fixed_abs, tag = 'smem constant byte address 0x4 - core index']
  #allocation1 [shape = 'u32[144,128]{1,0:T(1,128)}', space=vmem, size = 0x12000, scoped, tag = 'internal scratch']
  %s0 = inlined_call_operand.hbm [shape: bf16[128,8], index: 0, kind: input, shape index: {}]
  %s1 = inlined_call_operand.hbm [shape: bf16[8,32], index: 1, kind: input, shape index: {}]
  %s2 = inlined_call_operand.hbm [shape: f32[1,32], index: 2, kind: input, shape index: {}]
  %s3 = inlined_call_operand.hbm [shape: f32[1,32], index: 3, kind: input, shape index: {}]
  %s4 = inlined_call_operand.hbm [shape: bf16[128,16], index: 4, kind: input, shape index: {}]
  %s5 = inlined_call_operand.hbm [shape: bf16[16,32], index: 5, kind: input, shape index: {}]
  %s6 = inlined_call_operand.hbm [shape: bf16[128,32], index: 6, kind: output, shape index: {}]
  %s7 = sld [smem:[#allocation0]]
  $region58: #{bottleneck_forward.5} parent=0
    _
  %s9 = ssub.s32 1, %s7
  %s10 = scalar_select 0, %s9, %s7
  $region1: #{bottleneck_forward.5} parent=0
    #allocation2 [shape = 'u8[32768]{0}', space=vmem, size = 0x8000, scoped, tag = 'input window, operand 0, single buffered']
    #allocation3 [shape = 's32[1]{0}', space=sflag, size = 0x4, scoped, tag = 'scoped memory for bottleneck_forward.5']
    #allocation4 [shape = 's32[1]{0}', space=sflag, size = 0x4, scoped, tag = 'scoped memory for bottleneck_forward.5']
    #allocation5 [shape = 'u8[2048]{0}', space=vmem, size = 0x800, scoped, tag = 'input window, operand 1, single buffered']
    #allocation6 [shape = 's32[1]{0}', space=sflag, size = 0x4, scoped, tag = 'scoped memory for bottleneck_forward.5']
    #allocation7 [shape = 'u8[512]{0}', space=vmem, size = 0x400, scoped, tag = 'input window, operand 2, single buffered']
    #allocation8 [shape = 'u8[512]{0}', space=vmem, size = 0x400, scoped, tag = 'input window, operand 3, single buffered']
    #allocation9 [shape = 's32[1]{0}', space=sflag, size = 0x4, scoped, tag = 'scoped memory for bottleneck_forward.5']
    #allocation10 [shape = 'u8[32768]{0}', space=vmem, size = 0x8000, scoped, tag = 'input window, operand 4, single buffered']
    #allocation11 [shape = 'u8[4096]{0}', space=vmem, size = 0x1000, scoped, tag = 'input window, operand 5, single buffered']
    #allocation12 [shape = 's32[1]{0}', space=sflag, size = 0x4, scoped, tag = 'scoped memory for bottleneck_forward.5']
    #allocation13 [shape = 'u8[32768]{0}', space=vmem, size = 0x8000, scoped, tag = 'output window, operand 0, single buffered']
    %11 = vsyncpa [#allocation3], 0
    %12 = vsyncpa [#allocation6], 0
    %13 = vsyncpa [#allocation9], 0
    %14 = vsyncpa [#allocation12], 0
    %15 = vsyncpa [#allocation4], 0
    // Predicated region
    $region2: #{bottleneck_forward.5} parent=1 // pred_check
      _
    $region3: #{bottleneck_forward.5} parent=1 // pred_check_branch
      %17 = sbr.rel (0) target = $region5
    $region4: #{bottleneck_forward.5} parent=1 // pred_region
      %s19 = ssub.s32 1024, 1024
      %20 = vsyncadd [#allocation3], %s19
      %s21 = sshll.u32 [#allocation2], 4
      %s22 = int_to_ptr.vmem [resolvable:$true] %s21
      %27 = dma.hbm_to_vmem [thread:$0]  %s0, 1024, %s22, [#allocation3], 64, 64, 4
    $region5: #{bottleneck_forward.5} parent=1 // pred_fallthru
      _
    // Predicated region
    $region6: #{bottleneck_forward.5} parent=1 // pred_check
      _
    $region7: #{bottleneck_forward.5} parent=1 // pred_check_branch
      %29 = sbr.rel (0) target = $region9
    $region8: #{bottleneck_forward.5} parent=1 // pred_region
      %s31 = ssub.s32 64, 64
      %32 = vsyncadd [#allocation6], %s31
      %s34 = sshll.u32 [#allocation5], 4
      %s35 = int_to_ptr.vmem [resolvable:$true] %s34
      %37 = dma.hbm_to_vmem [thread:$0]  %s1, 64, %s35, [#allocation6]
    $region9: #{bottleneck_forward.5} parent=1 // pred_fallthru
      _
    // Predicated region
    $region10: #{bottleneck_forward.5} parent=1 // pred_check
      _
    $region11: #{bottleneck_forward.5} parent=1 // pred_check_branch
      %39 = sbr.rel (0) target = $region13
    $region12: #{bottleneck_forward.5} parent=1 // pred_region
      %s41 = ssub.s32 16, 16
      %42 = vsyncadd [#allocation6], %s41
      %s44 = sshll.u32 [#allocation7], 4
      %s45 = int_to_ptr.vmem [resolvable:$true] %s44
      %47 = dma.hbm_to_vmem [thread:$0]  %s2, 16, %s45, [#allocation6]
    $region13: #{bottleneck_forward.5} parent=1 // pred_fallthru
      _
    // Predicated region
    $region14: #{bottleneck_forward.5} parent=1 // pred_check
      _
    $region15: #{bottleneck_forward.5} parent=1 // pred_check_branch
      %49 = sbr.rel (0) target = $region17
    $region16: #{bottleneck_forward.5} parent=1 // pred_region
      %s51 = ssub.s32 16, 16
      %52 = vsyncadd [#allocation9], %s51
      %s54 = sshll.u32 [#allocation8], 4
      %s55 = int_to_ptr.vmem [resolvable:$true] %s54
      %57 = dma.hbm_to_vmem [thread:$0]  %s3, 16, %s55, [#allocation9]
    $region17: #{bottleneck_forward.5} parent=1 // pred_fallthru
      _
    // Predicated region
    $region18: #{bottleneck_forward.5} parent=1 // pred_check
      _
    $region19: #{bottleneck_forward.5} parent=1 // pred_check_branch
      %59 = sbr.rel (0) target = $region21
    $region20: #{bottleneck_forward.5} parent=1 // pred_region
      %s61 = ssub.s32 1024, 1024
      %62 = vsyncadd [#allocation9], %s61
      %s63 = sshll.u32 [#allocation10], 4
      %s64 = int_to_ptr.vmem [resolvable:$true] %s63
      %69 = dma.hbm_to_vmem [thread:$0]  %s4, 1024, %s64, [#allocation9], 64, 64, 4
    $region21: #{bottleneck_forward.5} parent=1 // pred_fallthru
      _
    // Predicated region
    $region22: #{bottleneck_forward.5} parent=1 // pred_check
      _
    $region23: #{bottleneck_forward.5} parent=1 // pred_check_branch
      %71 = sbr.rel (0) target = $region25
    $region24: #{bottleneck_forward.5} parent=1 // pred_region
      %s73 = ssub.s32 128, 128
      %74 = vsyncadd [#allocation12], %s73
      %s75 = sshll.u32 [#allocation11], 4
      %s76 = int_to_ptr.vmem [resolvable:$true] %s75
      %81 = dma.hbm_to_vmem [thread:$0]  %s5, 128, %s76, [#allocation12], 64, 64, 4
    $region25: #{bottleneck_forward.5} parent=1 // pred_fallthru
      _
    // Predicated region
    $region26: #{bottleneck_forward.5} parent=1 // pred_check
      _
    $region27: #{bottleneck_forward.5} parent=1 // pred_check_branch
      %83 = sbr.rel (0) target = $region29
    $region28: #{bottleneck_forward.5} parent=1 // pred_region
      %84 = dma.done [#allocation3], 1024
    $region29: #{bottleneck_forward.5} parent=1 // pred_fallthru
      _
    // Predicated region
    $region30: #{bottleneck_forward.5} parent=1 // pred_check
      _
    $region31: #{bottleneck_forward.5} parent=1 // pred_check_branch
      %86 = sbr.rel (0) target = $region33
    $region32: #{bottleneck_forward.5} parent=1 // pred_region
      %87 = dma.done [#allocation6], 64
    $region33: #{bottleneck_forward.5} parent=1 // pred_fallthru
      _
    // Predicated region
    $region34: #{bottleneck_forward.5} parent=1 // pred_check
      _
    $region35: #{bottleneck_forward.5} parent=1 // pred_check_branch
      %89 = sbr.rel (0) target = $region37
    $region36: #{bottleneck_forward.5} parent=1 // pred_region
      %90 = dma.done [#allocation6], 16
    $region37: #{bottleneck_forward.5} parent=1 // pred_fallthru
      _
    // Predicated region
    $region38: #{bottleneck_forward.5} parent=1 // pred_check
      _
    $region39: #{bottleneck_forward.5} parent=1 // pred_check_branch
      %92 = sbr.rel (0) target = $region41
    $region40: #{bottleneck_forward.5} parent=1 // pred_region
      %93 = dma.done [#allocation9], 16
    $region41: #{bottleneck_forward.5} parent=1 // pred_fallthru
      _
    // Predicated region
    $region42: #{bottleneck_forward.5} parent=1 // pred_check
      _
    $region43: #{bottleneck_forward.5} parent=1 // pred_check_branch
      %95 = sbr.rel (0) target = $region45
    $region44: #{bottleneck_forward.5} parent=1 // pred_region
      %96 = dma.done [#allocation9], 1024
    $region45: #{bottleneck_forward.5} parent=1 // pred_fallthru
      _
    // Predicated region
    $region46: #{bottleneck_forward.5} parent=1 // pred_check
      _
    $region47: #{bottleneck_forward.5} parent=1 // pred_check_branch
      %98 = sbr.rel (0) target = $region49
    $region48: #{bottleneck_forward.5} parent=1 // pred_region
      %99 = dma.done [#allocation12], 128
    $region49: #{bottleneck_forward.5} parent=1 // pred_fallthru
      _
    %v101 = vld [vmem:[#allocation2] sm:$0xf]
    %v102 = vld [vmem:[#allocation2 + $0x4] sm:$0xf]
    %v103 = vld [vmem:[#allocation2 + $0x8] sm:$0xf]
    %v104 = vld [vmem:[#allocation2 + $0xc] sm:$0xf]
    %v105 = vld [vmem:[#allocation2 + $0x10] sm:$0xf]
    %v106 = vld [vmem:[#allocation2 + $0x14] sm:$0xf]
    %v107 = vld [vmem:[#allocation2 + $0x18] sm:$0xf]
    %v108 = vld [vmem:[#allocation2 + $0x1c] sm:$0xf]
    %v109 = vld [vmem:[#allocation2 + $0x20] sm:$0xf]
    %v110 = vld [vmem:[#allocation2 + $0x24] sm:$0xf]
    %v111 = vld [vmem:[#allocation2 + $0x28] sm:$0xf]
    %v112 = vld [vmem:[#allocation2 + $0x2c] sm:$0xf]
    %v113 = vld [vmem:[#allocation2 + $0x30] sm:$0xf]
    %v114 = vld [vmem:[#allocation2 + $0x34] sm:$0xf]
    %v115 = vld [vmem:[#allocation2 + $0x38] sm:$0xf]
    %v116 = vld [vmem:[#allocation2 + $0x3c] sm:$0xf]
    %v117 = vld [vmem:[#allocation5] sm:$0xf]
    %v134 = vunpack.c.l.b16 %v101
    %v135 = vunpack.c.l.b16 %v102
    %v136 = vunpack.c.l.b16 %v103
    %v137 = vunpack.c.l.b16 %v104
    %v138 = vunpack.c.l.b16 %v105
    %v139 = vunpack.c.l.b16 %v106
    %v140 = vunpack.c.l.b16 %v107
    %v141 = vunpack.c.l.b16 %v108
    %v142 = vunpack.c.l.b16 %v109
    %v143 = vunpack.c.l.b16 %v110
    %v144 = vunpack.c.l.b16 %v111
    %v145 = vunpack.c.l.b16 %v112
    %v146 = vunpack.c.l.b16 %v113
    %v147 = vunpack.c.l.b16 %v114
    %v148 = vunpack.c.l.b16 %v115
    %v149 = vunpack.c.l.b16 %v116
    %v150 = vpack.c.b16 %v135, %v134
    %v151 = vpack.c.b16 %v137, %v136
    %v152 = vpack.c.b16 %v139, %v138
    %v153 = vpack.c.b16 %v141, %v140
    %v154 = vpack.c.b16 %v143, %v142
    %v155 = vpack.c.b16 %v145, %v144
    %v156 = vpack.c.b16 %v147, %v146
    %v157 = vpack.c.b16 %v149, %v148
    %vm158 = vcmask 64512
    %v160 = vsel %vm158, %v150, 0
    %v163 = vsel %vm158, %v151, 0
    %v166 = vsel %vm158, %v152, 0
    %v169 = vsel %vm158, %v153, 0
    %v172 = vsel %vm158, %v154, 0
    %v175 = vsel %vm158, %v155, 0
    %v178 = vsel %vm158, %v156, 0
    %v181 = vsel %vm158, %v157, 0
    %vm183 = vcmask 1043456
    %v185 = vsel %vm183, %v117, 0
    %187 = vmatprep.subr.bf16.mxu0 0
    %188 = vmatpush1.bf16.msra.mxu0 %v185
    %189 = vmatprep.subr.bf16.mxu0 0
    %190 = vmatpush1.bf16.msra.mxu0 0
    %191 = vmatprep.subr.bf16.mxu0 0
    %192 = vmatpush1.bf16.msra.mxu0 0
    %193 = vmatprep.subr.bf16.mxu0 0
    %194 = vmatpush1.bf16.msra.mxu0 0
    %195 = vmatprep.subr.bf16.mxu0 0
    %196 = vmatpush1.bf16.msra.mxu0 0
    %197 = vmatprep.subr.bf16.mxu0 0
    %198 = vmatpush1.bf16.msra.mxu0 0
    %199 = vmatprep.subr.bf16.mxu0 0
    %200 = vmatpush1.bf16.msra.mxu0 0
    %201 = vmatprep.subr.bf16.mxu0 0
    %202 = vmatpush1.bf16.msra.mxu0 0
    %203 = vmatprep.subr.bf16.mxu0 0
    %204 = vmatpush1.bf16.msra.mxu0 0
    %205 = vmatprep.subr.bf16.mxu0 0
    %206 = vmatpush1.bf16.msra.mxu0 0
    %207 = vmatprep.subr.bf16.mxu0 0
    %208 = vmatpush1.bf16.msra.mxu0 0
    %209 = vmatprep.subr.bf16.mxu0 0
    %210 = vmatpush1.bf16.msra.mxu0 0
    %211 = vmatprep.subr.bf16.mxu0 0
    %212 = vmatpush1.bf16.msra.mxu0 0
    %213 = vmatprep.subr.bf16.mxu0 0
    %214 = vmatpush1.bf16.msra.mxu0 0
    %215 = vmatprep.subr.bf16.mxu0 0
    %216 = vmatpush1.bf16.msra.mxu0 0
    %217 = vmatprep.subr.bf16.mxu0 0
    %218 = vmatpush1.bf16.msra.mxu0 0
    %219 = vmatprep.mubr.bf16.mxu0 0
    %220 = vmatmul.mubr.bf16.gmra.mrb[0].mxu0 %v160
    %v221 = vpop.f32.mrb[0].mxu0
    %v222 = vadd.f32 0.0, %v221
    %v223 = vpop.f32.mrb[0].mxu0
    %v224 = vpop.f32.mrb[0].mxu0
    %v225 = vadd.f32 0.0, %v224
    %v226 = vpop.f32.mrb[0].mxu0
    %227 = vmatprep.mubr.bf16.mxu0 0
    %228 = vmatmul.mubr.bf16.gmra.mrb[0].mxu0 %v163
    %v229 = vpop.f32.mrb[0].mxu0
    %v230 = vadd.f32 0.0, %v229
    %v231 = vpop.f32.mrb[0].mxu0
    %v232 = vpop.f32.mrb[0].mxu0
    %v233 = vadd.f32 0.0, %v232
    %v234 = vpop.f32.mrb[0].mxu0
    %235 = vmatprep.mubr.bf16.mxu0 0
    %236 = vmatmul.mubr.bf16.gmra.mrb[0].mxu0 %v166
    %v237 = vpop.f32.mrb[0].mxu0
    %v238 = vadd.f32 0.0, %v237
    %v239 = vpop.f32.mrb[0].mxu0
    %v240 = vpop.f32.mrb[0].mxu0
    %v241 = vadd.f32 0.0, %v240
    %v242 = vpop.f32.mrb[0].mxu0
    %243 = vmatprep.mubr.bf16.mxu0 0
    %244 = vmatmul.mubr.bf16.gmra.mrb[0].mxu0 %v169
    %v245 = vpop.f32.mrb[0].mxu0
    %v246 = vadd.f32 0.0, %v245
    %v247 = vpop.f32.mrb[0].mxu0
    %v248 = vpop.f32.mrb[0].mxu0
    %v249 = vadd.f32 0.0, %v248
    %v250 = vpop.f32.mrb[0].mxu0
    %251 = vmatprep.mubr.bf16.mxu0 0
    %252 = vmatmul.mubr.bf16.gmra.mrb[0].mxu0 %v172
    %v253 = vpop.f32.mrb[0].mxu0
    %v254 = vadd.f32 0.0, %v253
    %v255 = vpop.f32.mrb[0].mxu0
    %v256 = vpop.f32.mrb[0].mxu0
    %v257 = vadd.f32 0.0, %v256
    %v258 = vpop.f32.mrb[0].mxu0
    %259 = vmatprep.mubr.bf16.mxu0 0
    %260 = vmatmul.mubr.bf16.gmra.mrb[0].mxu0 %v175
    %v261 = vpop.f32.mrb[0].mxu0
    %v262 = vadd.f32 0.0, %v261
    %v263 = vpop.f32.mrb[0].mxu0
    %v264 = vpop.f32.mrb[0].mxu0
    %v265 = vadd.f32 0.0, %v264
    %v266 = vpop.f32.mrb[0].mxu0
    %267 = vmatprep.mubr.bf16.mxu0 0
    %268 = vmatmul.mubr.bf16.gmra.mrb[0].mxu0 %v178
    %v269 = vpop.f32.mrb[0].mxu0
    %v270 = vadd.f32 0.0, %v269
    %v271 = vpop.f32.mrb[0].mxu0
    %v272 = vpop.f32.mrb[0].mxu0
    %v273 = vadd.f32 0.0, %v272
    %v274 = vpop.f32.mrb[0].mxu0
    %275 = vmatprep.mubr.bf16.mxu0 0
    %276 = vmatmul.mubr.bf16.gmra.mrb[0].mxu0 %v181
    %v277 = vpop.f32.mrb[0].mxu0
    %v278 = vadd.f32 0.0, %v277
    %v279 = vpop.f32.mrb[0].mxu0
    %v280 = vpop.f32.mrb[0].mxu0
    %v281 = vadd.f32 0.0, %v280
    %v282 = vpop.f32.mrb[0].mxu0
    %283 = vdwg.mxu0
    %v284 = vld [vmem:[#allocation7] sm:$0x1]
    %v286 = vlaneseq
    %v287 = vshrl.u32 %v286, 7
    %v288 = vsub.s32 0, %v287
    %v289 = vrot.slane %v284, %v288
    %v291 = vmul.f32 %v222, %v289
    %v292 = vmul.f32 %v225, %v289
    %v293 = vmul.f32 %v230, %v289
    %v294 = vmul.f32 %v233, %v289
    %v295 = vmul.f32 %v238, %v289
    %v296 = vmul.f32 %v241, %v289
    %v297 = vmul.f32 %v246, %v289
    %v298 = vmul.f32 %v249, %v289
    %v299 = vmul.f32 %v254, %v289
    %v300 = vmul.f32 %v257, %v289
    %v301 = vmul.f32 %v262, %v289
    %v302 = vmul.f32 %v265, %v289
    %v303 = vmul.f32 %v270, %v289
    %v304 = vmul.f32 %v273, %v289
    %v305 = vmul.f32 %v278, %v289
    %v306 = vmul.f32 %v281, %v289
    %v307 = vld [vmem:[#allocation8] sm:$0x1]
    %v309 = vlaneseq
    %v310 = vshrl.u32 %v309, 7
    %v311 = vsub.s32 0, %v310
    %v312 = vrot.slane %v307, %v311
    %v314 = vadd.f32 %v291, %v312
    %v315 = vadd.f32 %v292, %v312
    %v316 = vadd.f32 %v293, %v312
    %v317 = vadd.f32 %v294, %v312
    %v318 = vadd.f32 %v295, %v312
    %v319 = vadd.f32 %v296, %v312
    %v320 = vadd.f32 %v297, %v312
    %v321 = vadd.f32 %v298, %v312
    %v322 = vadd.f32 %v299, %v312
    %v323 = vadd.f32 %v300, %v312
    %v324 = vadd.f32 %v301, %v312
    %v325 = vadd.f32 %v302, %v312
    %v326 = vadd.f32 %v303, %v312
    %v327 = vadd.f32 %v304, %v312
    %v328 = vadd.f32 %v305, %v312
    %v329 = vadd.f32 %v306, %v312
    %v330 = vld [vmem:[#allocation10] sm:$0xf]
    %v331 = vld [vmem:[#allocation10 + $0x4] sm:$0xf]
    %v332 = vld [vmem:[#allocation10 + $0x8] sm:$0xf]
    %v333 = vld [vmem:[#allocation10 + $0xc] sm:$0xf]
    %v334 = vld [vmem:[#allocation10 + $0x10] sm:$0xf]
    %v335 = vld [vmem:[#allocation10 + $0x14] sm:$0xf]
    %v336 = vld [vmem:[#allocation10 + $0x18] sm:$0xf]
    %v337 = vld [vmem:[#allocation10 + $0x1c] sm:$0xf]
    %v338 = vld [vmem:[#allocation10 + $0x20] sm:$0xf]
    %v339 = vld [vmem:[#allocation10 + $0x24] sm:$0xf]
    %v340 = vld [vmem:[#allocation10 + $0x28] sm:$0xf]
    %v341 = vld [vmem:[#allocation10 + $0x2c] sm:$0xf]
    %v342 = vld [vmem:[#allocation10 + $0x30] sm:$0xf]
    %v343 = vld [vmem:[#allocation10 + $0x34] sm:$0xf]
    %v344 = vld [vmem:[#allocation10 + $0x38] sm:$0xf]
    %v345 = vld [vmem:[#allocation10 + $0x3c] sm:$0xf]
    %v346 = vld [vmem:[#allocation11] sm:$0xf]
    %v347 = vld [vmem:[#allocation11 + $0x4] sm:$0xf]
    %v364 = vunpack.c.l.b16 %v330
    %v365 = vunpack.c.l.b16 %v331
    %v366 = vunpack.c.l.b16 %v332
    %v367 = vunpack.c.l.b16 %v333
    %v368 = vunpack.c.l.b16 %v334
    %v369 = vunpack.c.l.b16 %v335
    %v370 = vunpack.c.l.b16 %v336
    %v371 = vunpack.c.l.b16 %v337
    %v372 = vunpack.c.l.b16 %v338
    %v373 = vunpack.c.l.b16 %v339
    %v374 = vunpack.c.l.b16 %v340
    %v375 = vunpack.c.l.b16 %v341
    %v376 = vunpack.c.l.b16 %v342
    %v377 = vunpack.c.l.b16 %v343
    %v378 = vunpack.c.l.b16 %v344
    %v379 = vunpack.c.l.b16 %v345
    %v380 = vpack.c.b16 %v365, %v364
    %v381 = vpack.c.b16 %v367, %v366
    %v382 = vpack.c.b16 %v369, %v368
    %v383 = vpack.c.b16 %v371, %v370
    %v384 = vpack.c.b16 %v373, %v372
    %v385 = vpack.c.b16 %v375, %v374
    %v386 = vpack.c.b16 %v377, %v376
    %v387 = vpack.c.b16 %v379, %v378
    %v390 = vunpack.c.l.b16 %v346
    %v391 = vunpack.c.l.b16 %v347
    %v392 = vpack.c.b16 %v391, %v390
    %vm394 = vcmask 130048
    %v396 = vsel %vm394, %v380, 0
    %v399 = vsel %vm394, %v381, 0
    %v402 = vsel %vm394, %v382, 0
    %v405 = vsel %vm394, %v383, 0
    %v408 = vsel %vm394, %v384, 0
    %v411 = vsel %vm394, %v385, 0
    %v414 = vsel %vm394, %v386, 0
    %v417 = vsel %vm394, %v387, 0
    %419 = vmatprep.subr.bf16.mxu0 0
    %420 = vmatpush1.bf16.msra.mxu0 %v392
    %421 = vmatprep.subr.bf16.mxu0 0
    %422 = vmatpush1.bf16.msra.mxu0 0
    %423 = vmatprep.subr.bf16.mxu0 0
    %424 = vmatpush1.bf16.msra.mxu0 0
    %425 = vmatprep.subr.bf16.mxu0 0
    %426 = vmatpush1.bf16.msra.mxu0 0
    %427 = vmatprep.subr.bf16.mxu0 0
    %428 = vmatpush1.bf16.msra.mxu0 0
    %429 = vmatprep.subr.bf16.mxu0 0
    %430 = vmatpush1.bf16.msra.mxu0 0
    %431 = vmatprep.subr.bf16.mxu0 0
    %432 = vmatpush1.bf16.msra.mxu0 0
    %433 = vmatprep.subr.bf16.mxu0 0
    %434 = vmatpush1.bf16.msra.mxu0 0
    %435 = vmatprep.subr.bf16.mxu0 0
    %436 = vmatpush1.bf16.msra.mxu0 0
    %437 = vmatprep.subr.bf16.mxu0 0
    %438 = vmatpush1.bf16.msra.mxu0 0
    %439 = vmatprep.subr.bf16.mxu0 0
    %440 = vmatpush1.bf16.msra.mxu0 0
    %441 = vmatprep.subr.bf16.mxu0 0
    %442 = vmatpush1.bf16.msra.mxu0 0
    %443 = vmatprep.subr.bf16.mxu0 0
    %444 = vmatpush1.bf16.msra.mxu0 0
    %445 = vmatprep.subr.bf16.mxu0 0
    %446 = vmatpush1.bf16.msra.mxu0 0
    %447 = vmatprep.subr.bf16.mxu0 0
    %448 = vmatpush1.bf16.msra.mxu0 0
    %449 = vmatprep.subr.bf16.mxu0 0
    %450 = vmatpush1.bf16.msra.mxu0 0
    %451 = vmatprep.mubr.bf16.mxu0 0
    %452 = vmatmul.mubr.bf16.gmra.mrb[0].mxu0 %v396
    %v453 = vpop.f32.mrb[0].mxu0
    %v454 = vadd.f32 0.0, %v453
    %v455 = vpop.f32.mrb[0].mxu0
    %v456 = vpop.f32.mrb[0].mxu0
    %v457 = vadd.f32 0.0, %v456
    %v458 = vpop.f32.mrb[0].mxu0
    %459 = vmatprep.mubr.bf16.mxu0 0
    %460 = vmatmul.mubr.bf16.gmra.mrb[0].mxu0 %v399
    %v461 = vpop.f32.mrb[0].mxu0
    %v462 = vadd.f32 0.0, %v461
    %v463 = vpop.f32.mrb[0].mxu0
    %v464 = vpop.f32.mrb[0].mxu0
    %v465 = vadd.f32 0.0, %v464
    %v466 = vpop.f32.mrb[0].mxu0
    %467 = vmatprep.mubr.bf16.mxu0 0
    %468 = vmatmul.mubr.bf16.gmra.mrb[0].mxu0 %v402
    %v469 = vpop.f32.mrb[0].mxu0
    %v470 = vadd.f32 0.0, %v469
    %v471 = vpop.f32.mrb[0].mxu0
    %v472 = vpop.f32.mrb[0].mxu0
    %v473 = vadd.f32 0.0, %v472
    %v474 = vpop.f32.mrb[0].mxu0
    %475 = vmatprep.mubr.bf16.mxu0 0
    %476 = vmatmul.mubr.bf16.gmra.mrb[0].mxu0 %v405
    %v477 = vpop.f32.mrb[0].mxu0
    %v478 = vadd.f32 0.0, %v477
    %v479 = vpop.f32.mrb[0].mxu0
    %v480 = vpop.f32.mrb[0].mxu0
    %v481 = vadd.f32 0.0, %v480
    %v482 = vpop.f32.mrb[0].mxu0
    %483 = vmatprep.mubr.bf16.mxu0 0
    %484 = vmatmul.mubr.bf16.gmra.mrb[0].mxu0 %v408
    %v485 = vpop.f32.mrb[0].mxu0
    %v486 = vadd.f32 0.0, %v485
    %v487 = vpop.f32.mrb[0].mxu0
    %v488 = vpop.f32.mrb[0].mxu0
    %v489 = vadd.f32 0.0, %v488
    %v490 = vpop.f32.mrb[0].mxu0
    %491 = vmatprep.mubr.bf16.mxu0 0
    %492 = vmatmul.mubr.bf16.gmra.mrb[0].mxu0 %v411
    %v493 = vpop.f32.mrb[0].mxu0
    %v494 = vadd.f32 0.0, %v493
    %v495 = vpop.f32.mrb[0].mxu0
    %v496 = vpop.f32.mrb[0].mxu0
    %v497 = vadd.f32 0.0, %v496
    %v498 = vpop.f32.mrb[0].mxu0
    %499 = vmatprep.mubr.bf16.mxu0 0
    %500 = vmatmul.mubr.bf16.gmra.mrb[0].mxu0 %v414
    %v501 = vpop.f32.mrb[0].mxu0
    %v502 = vadd.f32 0.0, %v501
    %v503 = vpop.f32.mrb[0].mxu0
    %v504 = vpop.f32.mrb[0].mxu0
    %v505 = vadd.f32 0.0, %v504
    %v506 = vpop.f32.mrb[0].mxu0
    %507 = vmatprep.mubr.bf16.mxu0 0
    %508 = vmatmul.mubr.bf16.gmra.mrb[0].mxu0 %v417
    %v509 = vpop.f32.mrb[0].mxu0
    %v510 = vadd.f32 0.0, %v509
    %v511 = vpop.f32.mrb[0].mxu0
    %v512 = vpop.f32.mrb[0].mxu0
    %v513 = vadd.f32 0.0, %v512
    %v514 = vpop.f32.mrb[0].mxu0
    %515 = vdwg.mxu0
    %v516 = vadd.f32 %v314, %v454
    %v517 = vadd.f32 %v315, %v457
    %v518 = vadd.f32 %v316, %v462
    %v519 = vadd.f32 %v317, %v465
    %v520 = vadd.f32 %v318, %v470
    %v521 = vadd.f32 %v319, %v473
    %v522 = vadd.f32 %v320, %v478
    %v523 = vadd.f32 %v321, %v481
    %v524 = vadd.f32 %v322, %v486
    %v525 = vadd.f32 %v323, %v489
    %v526 = vadd.f32 %v324, %v494
    %v527 = vadd.f32 %v325, %v497
    %v528 = vadd.f32 %v326, %v502
    %v529 = vadd.f32 %v327, %v505
    %v530 = vadd.f32 %v328, %v510
    %v531 = vadd.f32 %v329, %v513
    %v532 = vmax.f32 %v516, 0.0
    %v533 = vmax.f32 %v517, 0.0
    %v534 = vmax.f32 %v518, 0.0
    %v535 = vmax.f32 %v519, 0.0
    %v536 = vmax.f32 %v520, 0.0
    %v537 = vmax.f32 %v521, 0.0
    %v538 = vmax.f32 %v522, 0.0
    %v539 = vmax.f32 %v523, 0.0
    %v540 = vmax.f32 %v524, 0.0
    %v541 = vmax.f32 %v525, 0.0
    %v542 = vmax.f32 %v526, 0.0
    %v543 = vmax.f32 %v527, 0.0
    %v544 = vmax.f32 %v528, 0.0
    %v545 = vmax.f32 %v529, 0.0
    %v546 = vmax.f32 %v530, 0.0
    %v547 = vmax.f32 %v531, 0.0
    %v548 = vpack.c.bf16 %v533, %v532
    %v549 = vpack.c.bf16 %v535, %v534
    %v550 = vpack.c.bf16 %v537, %v536
    %v551 = vpack.c.bf16 %v539, %v538
    %v552 = vpack.c.bf16 %v541, %v540
    %v553 = vpack.c.bf16 %v543, %v542
    %v554 = vpack.c.bf16 %v545, %v544
    %v555 = vpack.c.bf16 %v547, %v546
    %v564 = vunpack.c.l.b16 %v548
    %v565 = vunpack.c.h.b16 %v548
    %v566 = vunpack.c.l.b16 %v549
    %v567 = vunpack.c.h.b16 %v549
    %v568 = vunpack.c.l.b16 %v550
    %v569 = vunpack.c.h.b16 %v550
    %v570 = vunpack.c.l.b16 %v551
    %v571 = vunpack.c.h.b16 %v551
    %v572 = vunpack.c.l.b16 %v552
    %v573 = vunpack.c.h.b16 %v552
    %v574 = vunpack.c.l.b16 %v553
    %v575 = vunpack.c.h.b16 %v553
    %v576 = vunpack.c.l.b16 %v554
    %v577 = vunpack.c.h.b16 %v554
    %v578 = vunpack.c.l.b16 %v555
    %v579 = vunpack.c.h.b16 %v555
    %v580 = vpack.c.b16 %v564, %v564
    %v581 = vpack.c.b16 %v565, %v565
    %v582 = vpack.c.b16 %v566, %v566
    %v583 = vpack.c.b16 %v567, %v567
    %v584 = vpack.c.b16 %v568, %v568
    %v585 = vpack.c.b16 %v569, %v569
    %v586 = vpack.c.b16 %v570, %v570
    %v587 = vpack.c.b16 %v571, %v571
    %v588 = vpack.c.b16 %v572, %v572
    %v589 = vpack.c.b16 %v573, %v573
    %v590 = vpack.c.b16 %v574, %v574
    %v591 = vpack.c.b16 %v575, %v575
    %v592 = vpack.c.b16 %v576, %v576
    %v593 = vpack.c.b16 %v577, %v577
    %v594 = vpack.c.b16 %v578, %v578
    %v595 = vpack.c.b16 %v579, %v579
    %vm612 = vcmask 257024
    %613 = vst.msk [vmem:[#allocation13] sm:$0xf] %vm612, %v580
    %614 = vst.msk [vmem:[#allocation13 + $0x4] sm:$0xf] %vm612, %v581
    %615 = vst.msk [vmem:[#allocation13 + $0x8] sm:$0xf] %vm612, %v582
    %616 = vst.msk [vmem:[#allocation13 + $0xc] sm:$0xf] %vm612, %v583
    %617 = vst.msk [vmem:[#allocation13 + $0x10] sm:$0xf] %vm612, %v584
    %618 = vst.msk [vmem:[#allocation13 + $0x14] sm:$0xf] %vm612, %v585
    %619 = vst.msk [vmem:[#allocation13 + $0x18] sm:$0xf] %vm612, %v586
    %620 = vst.msk [vmem:[#allocation13 + $0x1c] sm:$0xf] %vm612, %v587
    %621 = vst.msk [vmem:[#allocation13 + $0x20] sm:$0xf] %vm612, %v588
    %622 = vst.msk [vmem:[#allocation13 + $0x24] sm:$0xf] %vm612, %v589
    %623 = vst.msk [vmem:[#allocation13 + $0x28] sm:$0xf] %vm612, %v590
    %624 = vst.msk [vmem:[#allocation13 + $0x2c] sm:$0xf] %vm612, %v591
    %625 = vst.msk [vmem:[#allocation13 + $0x30] sm:$0xf] %vm612, %v592
    %626 = vst.msk [vmem:[#allocation13 + $0x34] sm:$0xf] %vm612, %v593
    %627 = vst.msk [vmem:[#allocation13 + $0x38] sm:$0xf] %vm612, %v594
    %628 = vst.msk [vmem:[#allocation13 + $0x3c] sm:$0xf] %vm612, %v595
    // Predicated region
    $region50: #{bottleneck_forward.5} parent=1 // pred_check
      _
    $region51: #{bottleneck_forward.5} parent=1 // pred_check_branch
      %630 = sbr.rel (0) target = $region53
    $region52: #{bottleneck_forward.5} parent=1 // pred_region
      %s632 = ssub.s32 1024, 1024
      %633 = vsyncadd [#allocation4], %s632
      %s634 = sshll.u32 [#allocation13], 4
      %s635 = int_to_ptr.vmem [resolvable:$true] %s634
      %640 = dma.vmem_to_hbm [thread:$0]  %s635, 1024, %s6, [#allocation4], 64, 64, 4
    $region53: #{bottleneck_forward.5} parent=1 // pred_fallthru
      _
    // Predicated region
    $region54: #{bottleneck_forward.5} parent=1 // pred_check
      _
    $region55: #{bottleneck_forward.5} parent=1 // pred_check_branch
      %642 = sbr.rel (0) target = $region57
    $region56: #{bottleneck_forward.5} parent=1 // pred_region
      %643 = dma.done [#allocation4], 1024
    $region57: #{bottleneck_forward.5} parent=1 // pred_fallthru
      _
    %644 = vsyncpa [#allocation3], 1
    %645 = vsyncpa [#allocation6], 1
    %646 = vsyncpa [#allocation9], 1
    %647 = vsyncpa [#allocation12], 1
    %648 = vsyncpa [#allocation4], 1

// kernel: bottleneck_forward.4
$region0: #{bottleneck_forward.4}
  #allocation0 [shape = 'u32[]', space=smem, size = 0x4, offset = 0x4, fixed_abs, tag = 'smem constant byte address 0x4 - core index']
  #allocation1 [shape = 'u32[144,128]{1,0:T(1,128)}', space=vmem, size = 0x12000, scoped, tag = 'internal scratch']
  #allocation2 [shape = 'f32[72,8]{1,0:T(8,128)}', space=vmem, size = 0x9000, scoped, tag = 'scratch operand']
  %s0 = inlined_call_operand.hbm [shape: bf16[2,1,90,32], index: 0, kind: input, shape index: {}]
  %s1 = inlined_call_operand.hbm [shape: bf16[72,8], index: 1, kind: input, shape index: {}]
  %s2 = inlined_call_operand.hbm [shape: f32[1,8], index: 2, kind: input, shape index: {}]
  %s3 = inlined_call_operand.hbm [shape: f32[1,8], index: 3, kind: input, shape index: {}]
  %s4 = inlined_call_operand.hbm [shape: bf16[2,8,8,8], index: 4, kind: output, shape index: {}]
  %s5 = sld [smem:[#allocation0]]
  $region65: #{bottleneck_forward.4} parent=0
    _
  %s7 = ssub.s32 1, %s5
  %s8 = scalar_select 0, %s7, %s5
  $region1: #{bottleneck_forward.4} parent=0
    #allocation3 [shape = 'u8[49152]{0}', space=vmem, size = 0xc000, scoped, tag = 'input window, operand 0']
    #allocation4 [shape = 's32[2]{0}', space=sflag, size = 0x8, scoped, tag = 'scoped memory for bottleneck_forward.4']
    #allocation5 [shape = 's32[2]{0}', space=sflag, size = 0x8, scoped, tag = 'scoped memory for bottleneck_forward.4']
    #allocation6 [shape = 'u8[18432]{0}', space=vmem, size = 0x4800, scoped, tag = 'input window, operand 1, single buffered']
    #allocation7 [shape = 's32[1]{0}', space=sflag, size = 0x4, scoped, tag = 'scoped memory for bottleneck_forward.4']
    #allocation8 [shape = 'u8[512]{0}', space=vmem, size = 0x400, scoped, tag = 'input window, operand 2, single buffered']
    #allocation9 [shape = 'u8[512]{0}', space=vmem, size = 0x400, scoped, tag = 'input window, operand 3, single buffered']
    #allocation10 [shape = 's32[1]{0}', space=sflag, size = 0x4, scoped, tag = 'scoped memory for bottleneck_forward.4']
    #allocation11 [shape = 'u8[32768]{0}', space=vmem, size = 0x8000, scoped, tag = 'output window, operand 0']
    %9 = vsyncpa [#allocation4], 0
    %s10 = scalar_lea.sflag [#allocation4], 1
    %11 = vsyncpa %s10, 0
    %12 = vsyncpa [#allocation7], 0
    %13 = vsyncpa [#allocation10], 0
    %14 = vsyncpa [#allocation5], 0
    %s15 = scalar_lea.sflag [#allocation5], 1
    %16 = vsyncpa %s15, 0
    loop: start=0, step=1, limit=4
    $region2: #{bottleneck_forward.4} parent=1 // loop_pre_header
      _
    $region3: #{bottleneck_forward.4} parent=1 // loop_header
      %s18 = sphi 0, %s22
      %p19 = scmp.ge.s32.totalorder %s18, 4
      %s25 = sphi 0, %s44
      %s26 = sphi 0, %s40
      %s27 = sphi 0, %s36
      %s28 = sphi 0, %s25
      %s29 = sphi 0, %s26
      %s30 = sphi 0, %s27
      %s31 = sphi 0, %s28
      %s32 = sphi 0, %s29
      %s33 = sphi 0, %s30
      %s49 = sphi 0, %s51
      %s52 = sphi 0, %s49
      %s53 = sphi 0, %s52
      %s69 = sphi 0, %s53
      %s75 = sphi 0, %s77
      %s78 = sphi 0, %s75
      %s79 = sphi 0, %s78
      %s95 = sphi 0, %s79
      %s101 = sphi 0, %s103
      %s104 = sphi 0, %s101
      %s105 = sphi 0, %s104
      %s121 = sphi 0, %s105
      %s127 = sphi 0, %s129
      %s130 = sphi 0, %s127
      %s131 = sphi 0, %s130
      %s147 = sphi 0, %s131
      %s157 = sphi 0, %s159
      %s160 = sphi 0, %s157
      %s161 = sphi 0, %s160
      %s177 = sphi 0, %s161
    $region4: #{bottleneck_forward.4} parent=1 // loop_header_branch
      %21 = sbr.rel (%p19) target = $region8
    $region5: #{bottleneck_forward.4} parent=1 // loop_body
      %s23 = ssub.s32 %s18, 1
      %s24 = ssub.s32 %s18, 2
      %s34 = sadd.s32 1, %s27
      %p35 = scmp.ge.s32.totalorder %s34, 1
      %s36 = scalar_select %p35, 0, %s34
      %s37 = sadd.s32 1, %s26
      %s38 = scalar_select %p35, %s37, %s26
      %p39 = scmp.ge.s32.totalorder %s38, 1
      %s40 = scalar_select %p39, 0, %s38
      %s41 = sadd.s32 1, %s25
      %s42 = scalar_select %p39, %s41, %s25
      %p43 = scmp.ge.s32.totalorder %s42, 2
      %s44 = scalar_select %p43, 0, %s42
      %s45 = ssub.s32 %s25, %s44
      %s46 = ssub.s32 %s26, %s40
      %s47 = sor.u32 %s45, %s46
      %p48 = scmp.eq.s32.totalorder %s47, 0
      %s50 = sadd.s32 %s49, 1
      %s51 = scalar_select %p48, %s49, %s50
      %p54 = pneg %p48
      %p55 = scmp.eq.s32.totalorder %s18, 1
      %p56 = por %p54, %p55
      %p57 = scmp.ne.s32.totalorder %s49, %s52
      %p58 = scmp.eq.s32.totalorder %s18, 0
      %p59 = por %p57, %p58
      %p60 = scmp.ne.s32.totalorder %s49, %s52
      %p61 = scmp.eq.s32.totalorder %s23, 1
      %p62 = por %p60, %p61
      %p63 = scmp.ne.s32.totalorder %s52, %s53
      %p64 = scmp.eq.s32.totalorder %s23, 0
      %p65 = por %p63, %p64
      %p66 = scmp.ne.s32.totalorder %s52, %s53
      %p67 = scmp.eq.s32.totalorder %s24, 1
      %p68 = por %p66, %p67
      %p70 = scmp.ne.s32.totalorder %s53, %s69
      %p71 = scmp.eq.s32.totalorder %s24, 0
      %p72 = por %p70, %p71
      %s73 = ssub.s32 %s27, %s36
      %p74 = scmp.eq.s32.totalorder %s73, 0
      %s76 = sadd.s32 %s75, 1
      %s77 = scalar_select %p74, %s75, %s76
      %p80 = pneg %p74
      %p81 = scmp.eq.s32.totalorder %s18, 1
      %p82 = por %p80, %p81
      %p83 = scmp.ne.s32.totalorder %s75, %s78
      %p84 = scmp.eq.s32.totalorder %s18, 0
      %p85 = por %p83, %p84
      %p86 = scmp.ne.s32.totalorder %s75, %s78
      %p87 = scmp.eq.s32.totalorder %s23, 1
      %p88 = por %p86, %p87
      %p89 = scmp.ne.s32.totalorder %s78, %s79
      %p90 = scmp.eq.s32.totalorder %s23, 0
      %p91 = por %p89, %p90
      %p92 = scmp.ne.s32.totalorder %s78, %s79
      %p93 = scmp.eq.s32.totalorder %s24, 1
      %p94 = por %p92, %p93
      %p96 = scmp.ne.s32.totalorder %s79, %s95
      %p97 = scmp.eq.s32.totalorder %s24, 0
      %p98 = por %p96, %p97
      %s99 = ssub.s32 %s27, %s36
      %p100 = scmp.eq.s32.totalorder %s99, 0
      %s102 = sadd.s32 %s101, 1
      %s103 = scalar_select %p100, %s101, %s102
      %p106 = pneg %p100
      %p107 = scmp.eq.s32.totalorder %s18, 1
      %p108 = por %p106, %p107
      %p109 = scmp.ne.s32.totalorder %s101, %s104
      %p110 = scmp.eq.s32.totalorder %s18, 0
      %p111 = por %p109, %p110
      %p112 = scmp.ne.s32.totalorder %s101, %s104
      %p113 = scmp.eq.s32.totalorder %s23, 1
      %p114 = por %p112, %p113
      %p115 = scmp.ne.s32.totalorder %s104, %s105
      %p116 = scmp.eq.s32.totalorder %s23, 0
      %p117 = por %p115, %p116
      %p118 = scmp.ne.s32.totalorder %s104, %s105
      %p119 = scmp.eq.s32.totalorder %s24, 1
      %p120 = por %p118, %p119
      %p122 = scmp.ne.s32.totalorder %s105, %s121
      %p123 = scmp.eq.s32.totalorder %s24, 0
      %p124 = por %p122, %p123
      %s125 = ssub.s32 %s27, %s36
      %p126 = scmp.eq.s32.totalorder %s125, 0
      %s128 = sadd.s32 %s127, 1
      %s129 = scalar_select %p126, %s127, %s128
      %p132 = pneg %p126
      %p133 = scmp.eq.s32.totalorder %s18, 1
      %p134 = por %p132, %p133
      %p135 = scmp.ne.s32.totalorder %s127, %s130
      %p136 = scmp.eq.s32.totalorder %s18, 0
      %p137 = por %p135, %p136
      %p138 = scmp.ne.s32.totalorder %s127, %s130
      %p139 = scmp.eq.s32.totalorder %s23, 1
      %p140 = por %p138, %p139
      %p141 = scmp.ne.s32.totalorder %s130, %s131
      %p142 = scmp.eq.s32.totalorder %s23, 0
      %p143 = por %p141, %p142
      %p144 = scmp.ne.s32.totalorder %s130, %s131
      %p145 = scmp.eq.s32.totalorder %s24, 1
      %p146 = por %p144, %p145
      %p148 = scmp.ne.s32.totalorder %s131, %s147
      %p149 = scmp.eq.s32.totalorder %s24, 0
      %p150 = por %p148, %p149
      %s151 = ssub.s32 %s25, %s44
      %s152 = ssub.s32 %s26, %s40
      %s153 = sor.u32 %s151, %s152
      %s154 = ssub.s32 %s27, %s36
      %s155 = sor.u32 %s153, %s154
      %p156 = scmp.eq.s32.totalorder %s155, 0
      %s158 = sadd.s32 %s157, 1
      %s159 = scalar_select %p156, %s157, %s158
      %p162 = pneg %p156
      %p163 = scmp.eq.s32.totalorder %s18, 1
      %p164 = por %p162, %p163
      %p165 = scmp.ne.s32.totalorder %s157, %s160
      %p166 = scmp.eq.s32.totalorder %s18, 0
      %p167 = por %p165, %p166
      %p168 = scmp.ne.s32.totalorder %s157, %s160
      %p169 = scmp.eq.s32.totalorder %s23, 1
      %p170 = por %p168, %p169
      %p171 = scmp.ne.s32.totalorder %s160, %s161
      %p172 = scmp.eq.s32.totalorder %s23, 0
      %p173 = por %p171, %p172
      %p174 = scmp.ne.s32.totalorder %s160, %s161
      %p175 = scmp.eq.s32.totalorder %s24, 1
      %p176 = por %p174, %p175
      %p178 = scmp.ne.s32.totalorder %s161, %s177
      %p179 = scmp.eq.s32.totalorder %s24, 0
      %p180 = por %p178, %p179
      %p181 = scmp.le.s32.totalorder 1, %s18
      %p182 = scmp.lt.s32.totalorder %s18, 3
      %p183 = pnand %p181, %p182
      %p184 = pneg %p183
      // Predicated region
      $region9: #{bottleneck_forward.4} parent=5 // pred_check
        _
      $region10: #{bottleneck_forward.4} parent=5 // pred_check_branch
        %186 = sbr.rel (%p183) target = $region12
      $region11: #{bottleneck_forward.4} parent=5 // pred_region
        %s187 = ssub.s32 %s18, 1
        // Predicated region
        $region13: #{bottleneck_forward.4} parent=11 // pred_check
          %p188 = pneg %p91
        $region14: #{bottleneck_forward.4} parent=11 // pred_check_branch
          %190 = sbr.rel (%p188) target = $region16
        $region15: #{bottleneck_forward.4} parent=11 // pred_region
          %s192 = ssub.s32 576, 576
          %193 = vsyncadd [#allocation7], %s192
          %s194 = smul.addr %s30, 64
          %s195 = scalar_lea.hbm %s1, %s194
          %s196 = sshll.u32 [#allocation6], 4
          %s197 = int_to_ptr.vmem [resolvable:$true] %s196
          %202 = dma.hbm_to_vmem [thread:$0]  %s195, 576, %s197, [#allocation7], 64, 64, 4
        $region16: #{bottleneck_forward.4} parent=11 // pred_fallthru
          _
        // Predicated region
        $region17: #{bottleneck_forward.4} parent=11 // pred_check
          %p203 = pneg %p117
        $region18: #{bottleneck_forward.4} parent=11 // pred_check_branch
          %205 = sbr.rel (%p203) target = $region20
        $region19: #{bottleneck_forward.4} parent=11 // pred_region
          %s207 = ssub.s32 16, 16
          %208 = vsyncadd [#allocation7], %s207
          %s209 = smul.addr %s30, 16
          %s210 = scalar_lea.hbm %s2, %s209
          %s212 = sshll.u32 [#allocation8], 4
          %s213 = int_to_ptr.vmem [resolvable:$true] %s212
          %215 = dma.hbm_to_vmem [thread:$0]  %s210, 16, %s213, [#allocation7]
        $region20: #{bottleneck_forward.4} parent=11 // pred_fallthru
          _
        // Predicated region
        $region21: #{bottleneck_forward.4} parent=11 // pred_check
          %p216 = pneg %p143
        $region22: #{bottleneck_forward.4} parent=11 // pred_check_branch
          %218 = sbr.rel (%p216) target = $region24
        $region23: #{bottleneck_forward.4} parent=11 // pred_region
          %s220 = ssub.s32 16, 16
          %221 = vsyncadd [#allocation10], %s220
          %s222 = smul.addr %s30, 16
          %s223 = scalar_lea.hbm %s3, %s222
          %s225 = sshll.u32 [#allocation9], 4
          %s226 = int_to_ptr.vmem [resolvable:$true] %s225
          %228 = dma.hbm_to_vmem [thread:$0]  %s223, 16, %s226, [#allocation10]
        $region24: #{bottleneck_forward.4} parent=11 // pred_fallthru
          _
      $region12: #{bottleneck_forward.4} parent=5 // pred_fallthru
        _
      %p229 = scmp.lt.s32.totalorder %s18, 2
      // Predicated region
      $region25: #{bottleneck_forward.4} parent=5 // pred_check
        %p230 = pneg %p229
      $region26: #{bottleneck_forward.4} parent=5 // pred_check_branch
        %232 = sbr.rel (%p230) target = $region28
      $region27: #{bottleneck_forward.4} parent=5 // pred_region
        // Predicated region
        $region29: #{bottleneck_forward.4} parent=27 // pred_check
          %p233 = pneg %p59
        $region30: #{bottleneck_forward.4} parent=27 // pred_check_branch
          %235 = sbr.rel (%p233) target = $region32
        $region31: #{bottleneck_forward.4} parent=27 // pred_region
          %s236 = sand.u32 %s49, 1
          %s237 = scalar_lea.sflag [#allocation4], %s236
          %s238 = sand.u32 %s49, 1
          %s239 = smul.addr %s238, 48
          %s240 = scalar_lea.vmem [#allocation3], %s239
          %s242 = ssub.s32 768, 768
          %243 = vsyncadd %s237, %s242
          %s244 = smul.addr %s26, 12
          %s245 = smul.addr %s25, 12
          %s246 = sadd.s32 %s244, %s245
          %s247 = smul.addr %s246, 64
          %s248 = scalar_lea.hbm %s0, %s247
          %s249 = sshll.u32 %s240, 4
          %s250 = int_to_ptr.vmem [resolvable:$true] %s249
          %255 = dma.hbm_to_vmem [thread:$0]  %s248, 768, %s250, %s237, 64, 64, 4
        $region32: #{bottleneck_forward.4} parent=27 // pred_fallthru
          _
      $region28: #{bottleneck_forward.4} parent=5 // pred_fallthru
        _
      %p256 = scmp.le.s32.totalorder 1, %s18
      %p257 = scmp.lt.s32.totalorder %s18, 3
      %p258 = pnand %p256, %p257
      %p259 = pneg %p258
      // Predicated region
      $region33: #{bottleneck_forward.4} parent=5 // pred_check
        _
      $region34: #{bottleneck_forward.4} parent=5 // pred_check_branch
        %261 = sbr.rel (%p258) target = $region36
      $region35: #{bottleneck_forward.4} parent=5 // pred_region
        %s262 = ssub.s32 %s18, 1
        %s263 = sand.u32 %s52, 1
        %s264 = scalar_lea.sflag [#allocation4], %s263
        %s265 = sand.u32 %s52, 1
        %s266 = smul.addr %s265, 48
        %s267 = scalar_lea.vmem [#allocation3], %s266
        // Predicated region
        $region37: #{bottleneck_forward.4} parent=35 // pred_check
          %p268 = pneg %p65
        $region38: #{bottleneck_forward.4} parent=35 // pred_check_branch
          %270 = sbr.rel (%p268) target = $region40
        $region39: #{bottleneck_forward.4} parent=35 // pred_region
          %271 = dma.done %s264, 768
        $region40: #{bottleneck_forward.4} parent=35 // pred_fallthru
          _
        // Predicated region
        $region41: #{bottleneck_forward.4} parent=35 // pred_check
          %p272 = pneg %p91
        $region42: #{bottleneck_forward.4} parent=35 // pred_check_branch
          %274 = sbr.rel (%p272) target = $region44
        $region43: #{bottleneck_forward.4} parent=35 // pred_region
          %275 = dma.done [#allocation7], 576
        $region44: #{bottleneck_forward.4} parent=35 // pred_fallthru
          _
        // Predicated region
        $region45: #{bottleneck_forward.4} parent=35 // pred_check
          %p276 = pneg %p117
        $region46: #{bottleneck_forward.4} parent=35 // pred_check_branch
          %278 = sbr.rel (%p276) target = $region48
        $region47: #{bottleneck_forward.4} parent=35 // pred_region
          %279 = dma.done [#allocation7], 16
        $region48: #{bottleneck_forward.4} parent=35 // pred_fallthru
          _
        // Predicated region
        $region49: #{bottleneck_forward.4} parent=35 // pred_check
          %p280 = pneg %p143
        $region50: #{bottleneck_forward.4} parent=35 // pred_check_branch
          %282 = sbr.rel (%p280) target = $region52
        $region51: #{bottleneck_forward.4} parent=35 // pred_region
          %283 = dma.done [#allocation10], 16
        $region52: #{bottleneck_forward.4} parent=35 // pred_fallthru
          _
        %s284 = sand.u32 %s52, 1
        %s285 = scalar_lea.sflag [#allocation4], %s284
        %s286 = sand.u32 %s52, 1
        %s287 = smul.addr %s286, 48
        %s288 = scalar_lea.vmem [#allocation3], %s287
        %p289 = pneg %p65
        %p290 = pneg %p62
        %p291 = pneg %p91
        %p292 = pneg %p88
        %p293 = pneg %p117
        %p294 = pneg %p114
        %p295 = pneg %p143
        %p296 = pneg %p140
        %p297 = pneg %p173
        %p298 = pneg %p170
        %s299 = sand.u32 %s160, 1
        %s300 = scalar_lea.sflag [#allocation5], %s299
        %s301 = sand.u32 %s160, 1
        %s302 = smul.addr %s301, 32
        %s303 = scalar_lea.vmem [#allocation11], %s302
        %s304 = smul.u32 8, %s29
        %v306 = vld [vmem:[%s267] sm:$0xf]
        %v307 = vld [vmem:[%s267 + $0x4] sm:$0xf]
        %v308 = vld [vmem:[%s267 + $0x8] sm:$0xf]
        %v309 = vld [vmem:[%s267 + $0xc] sm:$0xf]
        %v310 = vld [vmem:[%s267 + $0x10] sm:$0xf]
        %v311 = vld [vmem:[%s267 + $0x14] sm:$0xf]
        %v312 = vld [vmem:[%s267 + $0x18] sm:$0xf]
        %v313 = vld [vmem:[%s267 + $0x1c] sm:$0xf]
        %v314 = vld [vmem:[%s267 + $0x20] sm:$0xf]
        %v315 = vld [vmem:[#allocation6] sm:$0xf]
        %v316 = vld [vmem:[#allocation6 + $0x4] sm:$0xf]
        %v317 = vld [vmem:[#allocation6 + $0x8] sm:$0xf]
        %v318 = vld [vmem:[#allocation6 + $0xc] sm:$0xf]
        %v328 = vunpack.c.l.b16 %v306
        %v329 = vunpack.c.l.b16 %v307
        %v330 = vunpack.c.l.b16 %v308
        %v331 = vunpack.c.l.b16 %v309
        %v332 = vunpack.c.l.b16 %v310
        %v333 = vunpack.c.l.b16 %v311
        %v334 = vunpack.c.l.b16 %v312
        %v335 = vunpack.c.l.b16 %v313
        %v336 = vunpack.c.l.b16 %v314
        %v337 = vpack.c.b16 %v329, %v328
        %v338 = vpack.c.b16 %v331, %v330
        %v339 = vpack.c.b16 %v333, %v332
        %v340 = vpack.c.b16 %v335, %v334
        %v341 = vpack.c.b16 %v336, %v336
        %v346 = vunpack.c.l.b16 %v315
        %v347 = vunpack.c.l.b16 %v316
        %v348 = vunpack.c.l.b16 %v317
        %v349 = vunpack.c.l.b16 %v318
        %v350 = vpack.c.b16 %v347, %v346
        %v351 = vpack.c.b16 %v349, %v348
        %vm354 = vcmask 261120
        %v356 = vsel %vm354, %v337, 0
        %v359 = vsel %vm354, %v338, 0
        %v362 = vsel %vm354, %v339, 0
        %v365 = vsel %vm354, %v340, 0
        %v368 = vsel %vm354, %v341, 0
        %370 = vmatprep.subr.bf16.mxu0 0
        %371 = vmatpush1.bf16.msra.mxu0 %v350
        %372 = vmatprep.subr.bf16.mxu0 0
        %373 = vmatpush1.bf16.msra.mxu0 %v351
        %374 = vmatprep.subr.bf16.mxu0 0
        %375 = vmatpush1.bf16.msra.mxu0 0
        %376 = vmatprep.subr.bf16.mxu0 0
        %377 = vmatpush1.bf16.msra.mxu0 0
        %378 = vmatprep.subr.bf16.mxu0 0
        %379 = vmatpush1.bf16.msra.mxu0 0
        %380 = vmatprep.subr.bf16.mxu0 0
        %381 = vmatpush1.bf16.msra.mxu0 0
        %382 = vmatprep.subr.bf16.mxu0 0
        %383 = vmatpush1.bf16.msra.mxu0 0
        %384 = vmatprep.subr.bf16.mxu0 0
        %385 = vmatpush1.bf16.msra.mxu0 0
        %386 = vmatprep.subr.bf16.mxu0 0
        %387 = vmatpush1.bf16.msra.mxu0 0
        %388 = vmatprep.subr.bf16.mxu0 0
        %389 = vmatpush1.bf16.msra.mxu0 0
        %390 = vmatprep.subr.bf16.mxu0 0
        %391 = vmatpush1.bf16.msra.mxu0 0
        %392 = vmatprep.subr.bf16.mxu0 0
        %393 = vmatpush1.bf16.msra.mxu0 0
        %394 = vmatprep.subr.bf16.mxu0 0
        %395 = vmatpush1.bf16.msra.mxu0 0
        %396 = vmatprep.subr.bf16.mxu0 0
        %397 = vmatpush1.bf16.msra.mxu0 0
        %398 = vmatprep.subr.bf16.mxu0 0
        %399 = vmatpush1.bf16.msra.mxu0 0
        %400 = vmatprep.subr.bf16.mxu0 0
        %401 = vmatpush1.bf16.msra.mxu0 0
        %402 = vmatprep.mubr.bf16.mxu0 0
        %403 = vmatmul.mubr.bf16.gmra.mrb[0].mxu0 %v356
        %v404 = vpop.f32.mrb[0].mxu0
        %v405 = vadd.f32 0.0, %v404
        %v406 = vpop.f32.mrb[0].mxu0
        %v407 = vpop.f32.mrb[0].mxu0
        %v408 = vadd.f32 0.0, %v407
        %v409 = vpop.f32.mrb[0].mxu0
        %410 = vmatprep.mubr.bf16.mxu0 0
        %411 = vmatmul.mubr.bf16.gmra.mrb[0].mxu0 %v359
        %v412 = vpop.f32.mrb[0].mxu0
        %v413 = vadd.f32 0.0, %v412
        %v414 = vpop.f32.mrb[0].mxu0
        %v415 = vpop.f32.mrb[0].mxu0
        %v416 = vadd.f32 0.0, %v415
        %v417 = vpop.f32.mrb[0].mxu0
        %418 = vmatprep.mubr.bf16.mxu0 0
        %419 = vmatmul.mubr.bf16.gmra.mrb[0].mxu0 %v362
        %v420 = vpop.f32.mrb[0].mxu0
        %v421 = vadd.f32 0.0, %v420
        %v422 = vpop.f32.mrb[0].mxu0
        %v423 = vpop.f32.mrb[0].mxu0
        %v424 = vadd.f32 0.0, %v423
        %v425 = vpop.f32.mrb[0].mxu0
        %426 = vmatprep.mubr.bf16.mxu0 0
        %427 = vmatmul.mubr.bf16.gmra.mrb[0].mxu0 %v365
        %v428 = vpop.f32.mrb[0].mxu0
        %v429 = vadd.f32 0.0, %v428
        %v430 = vpop.f32.mrb[0].mxu0
        %v431 = vpop.f32.mrb[0].mxu0
        %v432 = vadd.f32 0.0, %v431
        %v433 = vpop.f32.mrb[0].mxu0
        %434 = vmatprep.mubr.bf16.mxu0 0
        %435 = vmatmul.mubr.bf16.gmra.mrb[0].mxu0 %v368
        %v436 = vpop.f32.mrb[0].mxu0
        %v437 = vadd.f32 0.0, %v436
        %v438 = vpop.f32.mrb[0].mxu0
        %v439 = vpop.f32.mrb[0].mxu0
        %v440 = vpop.f32.mrb[0].mxu0
        %441 = vdwg.mxu0
        %vm442 = vcmask 64512
        %443 = vst.msk [vmem:[#allocation2] sm:$0xff] %vm442, %v405
        %444 = vst.msk [vmem:[#allocation2 + $0x8] sm:$0xff] %vm442, %v408
        %445 = vst.msk [vmem:[#allocation2 + $0x10] sm:$0xff] %vm442, %v413
        %446 = vst.msk [vmem:[#allocation2 + $0x18] sm:$0xff] %vm442, %v416
        %447 = vst.msk [vmem:[#allocation2 + $0x20] sm:$0xff] %vm442, %v421
        %448 = vst.msk [vmem:[#allocation2 + $0x28] sm:$0xff] %vm442, %v424
        %449 = vst.msk [vmem:[#allocation2 + $0x30] sm:$0xff] %vm442, %v429
        %450 = vst.msk [vmem:[#allocation2 + $0x38] sm:$0xff] %vm442, %v432
        %451 = vst.msk [vmem:[#allocation2 + $0x40] sm:$0xff] %vm442, %v437
        %v452 = vld [vmem:[%s267] sm:$0xf]
        %v453 = vld [vmem:[%s267 + $0x4] sm:$0xf]
        %v454 = vld [vmem:[%s267 + $0x8] sm:$0xf]
        %v455 = vld [vmem:[%s267 + $0xc] sm:$0xf]
        %v456 = vld [vmem:[%s267 + $0x10] sm:$0xf]
        %v457 = vld [vmem:[%s267 + $0x14] sm:$0xf]
        %v458 = vld [vmem:[%s267 + $0x18] sm:$0xf]
        %v459 = vld [vmem:[%s267 + $0x1c] sm:$0xf]
        %v460 = vld [vmem:[%s267 + $0x20] sm:$0xf]
        %v461 = vld [vmem:[%s267 + $0x24] sm:$0x1]
        %v462 = vld [vmem:[#allocation6 + $0x10] sm:$0xf]
        %v473 = vunpack.c.l.b16 %v452
        %v474 = vunpack.c.l.b16 %v453
        %v475 = vunpack.c.l.b16 %v454
        %v476 = vunpack.c.l.b16 %v455
        %v477 = vunpack.c.l.b16 %v456
        %v478 = vunpack.c.l.b16 %v457
        %v479 = vunpack.c.l.b16 %v458
        %v480 = vunpack.c.l.b16 %v459
        %v481 = vunpack.c.l.b16 %v460
        %v482 = vunpack.c.l.b16 %v461
        %v483 = vpack.c.b16 %v474, %v473
        %v484 = vpack.c.b16 %v476, %v475
        %v485 = vpack.c.b16 %v478, %v477
        %v486 = vpack.c.b16 %v480, %v479
        %v487 = vpack.c.b16 %v482, %v481
        %vm488 = vsmask.f32 7424
        %v490 = vshrl.u32 %v483, 16
        %v492 = vshll.u32 %v483, 16
        %v494 = vrot.slane %v492, 1
        %v495 = vor.u32 %v490, %v494
        %v497 = vshll.u32 %v484, 16
        %v499 = vrot.slane %v497, 1
        %v500 = vsel %vm488, %v495, %v499
        %v501 = vshrl.u32 %v484, 16
        %v503 = vor.u32 %v501, %v499
        %v505 = vshll.u32 %v485, 16
        %v507 = vrot.slane %v505, 1
        %v508 = vsel %vm488, %v503, %v507
        %v509 = vshrl.u32 %v485, 16
        %v511 = vor.u32 %v509, %v507
        %v513 = vshll.u32 %v486, 16
        %v515 = vrot.slane %v513, 1
        %v516 = vsel %vm488, %v511, %v515
        %v517 = vshrl.u32 %v486, 16
        %v519 = vor.u32 %v517, %v515
        %v521 = vshll.u32 %v487, 16
        %v523 = vrot.slane %v521, 1
        %v524 = vsel %vm488, %v519, %v523
        %v525 = vshrl.u32 %v487, 16
        %v527 = vor.u32 %v525, %v523
        %v529 = vsel %vm442, %v500, 0
        %v532 = vsel %vm442, %v508, 0
        %v535 = vsel %vm442, %v516, 0
        %v538 = vsel %vm442, %v524, 0
        %v541 = vsel %vm442, %v527, 0
        %vm543 = vcmask 1043456
        %v545 = vsel %vm543, %v462, 0
        %547 = vmatprep.subr.bf16.mxu0 0
        %548 = vmatpush1.bf16.msra.mxu0 %v545
        %549 = vmatprep.subr.bf16.mxu0 0
        %550 = vmatpush1.bf16.msra.mxu0 0
        %551 = vmatprep.subr.bf16.mxu0 0
        %552 = vmatpush1.bf16.msra.mxu0 0
        %553 = vmatprep.subr.bf16.mxu0 0
        %554 = vmatpush1.bf16.msra.mxu0 0
        %555 = vmatprep.subr.bf16.mxu0 0
        %556 = vmatpush1.bf16.msra.mxu0 0
        %557 = vmatprep.subr.bf16.mxu0 0
        %558 = vmatpush1.bf16.msra.mxu0 0
        %559 = vmatprep.subr.bf16.mxu0 0
        %560 = vmatpush1.bf16.msra.mxu0 0
        %561 = vmatprep.subr.bf16.mxu0 0
        %562 = vmatpush1.bf16.msra.mxu0 0
        %563 = vmatprep.subr.bf16.mxu0 0
        %564 = vmatpush1.bf16.msra.mxu0 0
        %565 = vmatprep.subr.bf16.mxu0 0
        %566 = vmatpush1.bf16.msra.mxu0 0
        %567 = vmatprep.subr.bf16.mxu0 0
        %568 = vmatpush1.bf16.msra.mxu0 0
        %569 = vmatprep.subr.bf16.mxu0 0
        %570 = vmatpush1.bf16.msra.mxu0 0
        %571 = vmatprep.subr.bf16.mxu0 0
        %572 = vmatpush1.bf16.msra.mxu0 0
        %573 = vmatprep.subr.bf16.mxu0 0
        %574 = vmatpush1.bf16.msra.mxu0 0
        %575 = vmatprep.subr.bf16.mxu0 0
        %576 = vmatpush1.bf16.msra.mxu0 0
        %577 = vmatprep.subr.bf16.mxu0 0
        %578 = vmatpush1.bf16.msra.mxu0 0
        %579 = vmatprep.mubr.bf16.mxu0 0
        %580 = vmatmul.mubr.bf16.gmra.mrb[0].mxu0 %v529
        %v581 = vpop.f32.mrb[0].mxu0
        %v582 = vadd.f32 0.0, %v581
        %v583 = vpop.f32.mrb[0].mxu0
        %v584 = vpop.f32.mrb[0].mxu0
        %v585 = vadd.f32 0.0, %v584
        %v586 = vpop.f32.mrb[0].mxu0
        %587 = vmatprep.mubr.bf16.mxu0 0
        %588 = vmatmul.mubr.bf16.gmra.mrb[0].mxu0 %v532
        %v589 = vpop.f32.mrb[0].mxu0
        %v590 = vadd.f32 0.0, %v589
        %v591 = vpop.f32.mrb[0].mxu0
        %v592 = vpop.f32.mrb[0].mxu0
        %v593 = vadd.f32 0.0, %v592
        %v594 = vpop.f32.mrb[0].mxu0
        %595 = vmatprep.mubr.bf16.mxu0 0
        %596 = vmatmul.mubr.bf16.gmra.mrb[0].mxu0 %v535
        %v597 = vpop.f32.mrb[0].mxu0
        %v598 = vadd.f32 0.0, %v597
        %v599 = vpop.f32.mrb[0].mxu0
        %v600 = vpop.f32.mrb[0].mxu0
        %v601 = vadd.f32 0.0, %v600
        %v602 = vpop.f32.mrb[0].mxu0
        %603 = vmatprep.mubr.bf16.mxu0 0
        %604 = vmatmul.mubr.bf16.gmra.mrb[0].mxu0 %v538
        %v605 = vpop.f32.mrb[0].mxu0
        %v606 = vadd.f32 0.0, %v605
        %v607 = vpop.f32.mrb[0].mxu0
        %v608 = vpop.f32.mrb[0].mxu0
        %v609 = vadd.f32 0.0, %v608
        %v610 = vpop.f32.mrb[0].mxu0
        %611 = vmatprep.mubr.bf16.mxu0 0
        %612 = vmatmul.mubr.bf16.gmra.mrb[0].mxu0 %v541
        %v613 = vpop.f32.mrb[0].mxu0
        %v614 = vadd.f32 0.0, %v613
        %v615 = vpop.f32.mrb[0].mxu0
        %v616 = vpop.f32.mrb[0].mxu0
        %v617 = vpop.f32.mrb[0].mxu0
        %618 = vdwg.mxu0
        %v619 = vld [vmem:[#allocation2] sm:$0xff]
        %v620 = vld [vmem:[#allocation2 + $0x8] sm:$0xff]
        %v621 = vld [vmem:[#allocation2 + $0x10] sm:$0xff]
        %v622 = vld [vmem:[#allocation2 + $0x18] sm:$0xff]
        %v623 = vld [vmem:[#allocation2 + $0x20] sm:$0xff]
        %v624 = vld [vmem:[#allocation2 + $0x28] sm:$0xff]
        %v625 = vld [vmem:[#allocation2 + $0x30] sm:$0xff]
        %v626 = vld [vmem:[#allocation2 + $0x38] sm:$0xff]
        %v627 = vld [vmem:[#allocation2 + $0x40] sm:$0xff]
        %v628 = vadd.f32 %v619, %v582
        %v629 = vadd.f32 %v620, %v585
        %v630 = vadd.f32 %v621, %v590
        %v631 = vadd.f32 %v622, %v593
        %v632 = vadd.f32 %v623, %v598
        %v633 = vadd.f32 %v624, %v601
        %v634 = vadd.f32 %v625, %v606
        %v635 = vadd.f32 %v626, %v609
        %v636 = vadd.f32 %v627, %v614
        %637 = vst.msk [vmem:[#allocation2] sm:$0xff] %vm442, %v628
        %638 = vst.msk [vmem:[#allocation2 + $0x8] sm:$0xff] %vm442, %v629
        %639 = vst.msk [vmem:[#allocation2 + $0x10] sm:$0xff] %vm442, %v630
        %640 = vst.msk [vmem:[#allocation2 + $0x18] sm:$0xff] %vm442, %v631
        %641 = vst.msk [vmem:[#allocation2 + $0x20] sm:$0xff] %vm442, %v632
        %642 = vst.msk [vmem:[#allocation2 + $0x28] sm:$0xff] %vm442, %v633
        %643 = vst.msk [vmem:[#allocation2 + $0x30] sm:$0xff] %vm442, %v634
        %644 = vst.msk [vmem:[#allocation2 + $0x38] sm:$0xff] %vm442, %v635
        %645 = vst.msk [vmem:[#allocation2 + $0x40] sm:$0xff] %vm442, %v636
        %v646 = vld [vmem:[%s267] sm:$0xf]
        %v647 = vld [vmem:[%s267 + $0x4] sm:$0xf]
        %v648 = vld [vmem:[%s267 + $0x8] sm:$0xf]
        %v649 = vld [vmem:[%s267 + $0xc] sm:$0xf]
        %v650 = vld [vmem:[%s267 + $0x10] sm:$0xf]
        %v651 = vld [vmem:[%s267 + $0x14] sm:$0xf]
        %v652 = vld [vmem:[%s267 + $0x18] sm:$0xf]
        %v653 = vld [vmem:[%s267 + $0x1c] sm:$0xf]
        %v654 = vld [vmem:[%s267 + $0x20] sm:$0xf]
        %v655 = vld [vmem:[%s267 + $0x24] sm:$0x1]
        %v656 = vld [vmem:[#allocation6 + $0x14] sm:$0xf]
        %v667 = vunpack.c.l.b16 %v646
        %v668 = vunpack.c.l.b16 %v647
        %v669 = vunpack.c.l.b16 %v648
        %v670 = vunpack.c.l.b16 %v649
        %v671 = vunpack.c.l.b16 %v650
        %v672 = vunpack.c.l.b16 %v651
        %v673 = vunpack.c.l.b16 %v652
        %v674 = vunpack.c.l.b16 %v653
        %v675 = vunpack.c.l.b16 %v654
        %v676 = vunpack.c.l.b16 %v655
        %v677 = vpack.c.b16 %v668, %v667
        %v678 = vpack.c.b16 %v670, %v669
        %v679 = vpack.c.b16 %v672, %v671
        %v680 = vpack.c.b16 %v674, %v673
        %v681 = vpack.c.b16 %v676, %v675
        %v683 = vshrl.u32 %v677, 16
        %v685 = vshll.u32 %v677, 16
        %v687 = vrot.slane %v685, 1
        %v688 = vor.u32 %v683, %v687
        %v690 = vshll.u32 %v678, 16
        %v692 = vrot.slane %v690, 1
        %v693 = vsel %vm488, %v688, %v692
        %v694 = vshrl.u32 %v678, 16
        %v696 = vor.u32 %v694, %v692
        %v698 = vshll.u32 %v679, 16
        %v700 = vrot.slane %v698, 1
        %v701 = vsel %vm488, %v696, %v700
        %v702 = vshrl.u32 %v679, 16
        %v704 = vor.u32 %v702, %v700
        %v706 = vshll.u32 %v680, 16
        %v708 = vrot.slane %v706, 1
        %v709 = vsel %vm488, %v704, %v708
        %v710 = vshrl.u32 %v680, 16
        %v712 = vor.u32 %v710, %v708
        %v714 = vshll.u32 %v681, 16
        %v716 = vrot.slane %v714, 1
        %v717 = vsel %vm488, %v712, %v716
        %v718 = vshrl.u32 %v681, 16
        %v720 = vor.u32 %v718, %v716
        %721 = vrot.lane.b32.xlu0 %v693, 112
        %v722 = vpop.permute.xlu0 %721
        %723 = vrot.lane.b32.xlu0 %v701, 112
        %v724 = vpop.permute.xlu0 %723
        %725 = vrot.lane.b32.xlu0 %v709, 112
        %v726 = vpop.permute.xlu0 %725
        %727 = vrot.lane.b32.xlu0 %v717, 112
        %v728 = vpop.permute.xlu0 %727
        %729 = vrot.lane.b32.xlu0 %v720, 112
        %v730 = vpop.permute.xlu0 %729
        %v732 = vsel %vm442, %v722, 0
        %v735 = vsel %vm442, %v724, 0
        %v738 = vsel %vm442, %v726, 0
        %v741 = vsel %vm442, %v728, 0
        %v744 = vsel %vm442, %v730, 0
        %v747 = vsel %vm543, %v656, 0
        %749 = vmatprep.subr.bf16.mxu0 0
        %750 = vmatpush1.bf16.msra.mxu0 %v747
        %751 = vmatprep.subr.bf16.mxu0 0
        %752 = vmatpush1.bf16.msra.mxu0 0
        %753 = vmatprep.subr.bf16.mxu0 0
        %754 = vmatpush1.bf16.msra.mxu0 0
        %755 = vmatprep.subr.bf16.mxu0 0
        %756 = vmatpush1.bf16.msra.mxu0 0
        %757 = vmatprep.subr.bf16.mxu0 0
        %758 = vmatpush1.bf16.msra.mxu0 0
        %759 = vmatprep.subr.bf16.mxu0 0
        %760 = vmatpush1.bf16.msra.mxu0 0
        %761 = vmatprep.subr.bf16.mxu0 0
        %762 = vmatpush1.bf16.msra.mxu0 0
        %763 = vmatprep.subr.bf16.mxu0 0
        %764 = vmatpush1.bf16.msra.mxu0 0
        %765 = vmatprep.subr.bf16.mxu0 0
        %766 = vmatpush1.bf16.msra.mxu0 0
        %767 = vmatprep.subr.bf16.mxu0 0
        %768 = vmatpush1.bf16.msra.mxu0 0
        %769 = vmatprep.subr.bf16.mxu0 0
        %770 = vmatpush1.bf16.msra.mxu0 0
        %771 = vmatprep.subr.bf16.mxu0 0
        %772 = vmatpush1.bf16.msra.mxu0 0
        %773 = vmatprep.subr.bf16.mxu0 0
        %774 = vmatpush1.bf16.msra.mxu0 0
        %775 = vmatprep.subr.bf16.mxu0 0
        %776 = vmatpush1.bf16.msra.mxu0 0
        %777 = vmatprep.subr.bf16.mxu0 0
        %778 = vmatpush1.bf16.msra.mxu0 0
        %779 = vmatprep.subr.bf16.mxu0 0
        %780 = vmatpush1.bf16.msra.mxu0 0
        %781 = vmatprep.mubr.bf16.mxu0 0
        %782 = vmatmul.mubr.bf16.gmra.mrb[0].mxu0 %v732
        %v783 = vpop.f32.mrb[0].mxu0
        %v784 = vadd.f32 0.0, %v783
        %v785 = vpop.f32.mrb[0].mxu0
        %v786 = vpop.f32.mrb[0].mxu0
        %v787 = vadd.f32 0.0, %v786
        %v788 = vpop.f32.mrb[0].mxu0
        %789 = vmatprep.mubr.bf16.mxu0 0
        %790 = vmatmul.mubr.bf16.gmra.mrb[0].mxu0 %v735
        %v791 = vpop.f32.mrb[0].mxu0
        %v792 = vadd.f32 0.0, %v791
        %v793 = vpop.f32.mrb[0].mxu0
        %v794 = vpop.f32.mrb[0].mxu0
        %v795 = vadd.f32 0.0, %v794
        %v796 = vpop.f32.mrb[0].mxu0
        %797 = vmatprep.mubr.bf16.mxu0 0
        %798 = vmatmul.mubr.bf16.gmra.mrb[0].mxu0 %v738
        %v799 = vpop.f32.mrb[0].mxu0
        %v800 = vadd.f32 0.0, %v799
        %v801 = vpop.f32.mrb[0].mxu0
        %v802 = vpop.f32.mrb[0].mxu0
        %v803 = vadd.f32 0.0, %v802
        %v804 = vpop.f32.mrb[0].mxu0
        %805 = vmatprep.mubr.bf16.mxu0 0
        %806 = vmatmul.mubr.bf16.gmra.mrb[0].mxu0 %v741
        %v807 = vpop.f32.mrb[0].mxu0
        %v808 = vadd.f32 0.0, %v807
        %v809 = vpop.f32.mrb[0].mxu0
        %v810 = vpop.f32.mrb[0].mxu0
        %v811 = vadd.f32 0.0, %v810
        %v812 = vpop.f32.mrb[0].mxu0
        %813 = vmatprep.mubr.bf16.mxu0 0
        %814 = vmatmul.mubr.bf16.gmra.mrb[0].mxu0 %v744
        %v815 = vpop.f32.mrb[0].mxu0
        %v816 = vadd.f32 0.0, %v815
        %v817 = vpop.f32.mrb[0].mxu0
        %v818 = vpop.f32.mrb[0].mxu0
        %v819 = vpop.f32.mrb[0].mxu0
        %820 = vdwg.mxu0
        %v821 = vld [vmem:[#allocation2] sm:$0xff]
        %v822 = vld [vmem:[#allocation2 + $0x8] sm:$0xff]
        %v823 = vld [vmem:[#allocation2 + $0x10] sm:$0xff]
        %v824 = vld [vmem:[#allocation2 + $0x18] sm:$0xff]
        %v825 = vld [vmem:[#allocation2 + $0x20] sm:$0xff]
        %v826 = vld [vmem:[#allocation2 + $0x28] sm:$0xff]
        %v827 = vld [vmem:[#allocation2 + $0x30] sm:$0xff]
        %v828 = vld [vmem:[#allocation2 + $0x38] sm:$0xff]
        %v829 = vld [vmem:[#allocation2 + $0x40] sm:$0xff]
        %v830 = vadd.f32 %v821, %v784
        %v831 = vadd.f32 %v822, %v787
        %v832 = vadd.f32 %v823, %v792
        %v833 = vadd.f32 %v824, %v795
        %v834 = vadd.f32 %v825, %v800
        %v835 = vadd.f32 %v826, %v803
        %v836 = vadd.f32 %v827, %v808
        %v837 = vadd.f32 %v828, %v811
        %v838 = vadd.f32 %v829, %v816
        %839 = vst.msk [vmem:[#allocation2] sm:$0xff] %vm442, %v830
        %840 = vst.msk [vmem:[#allocation2 + $0x8] sm:$0xff] %vm442, %v831
        %841 = vst.msk [vmem:[#allocation2 + $0x10] sm:$0xff] %vm442, %v832
        %842 = vst.msk [vmem:[#allocation2 + $0x18] sm:$0xff] %vm442, %v833
        %843 = vst.msk [vmem:[#allocation2 + $0x20] sm:$0xff] %vm442, %v834
        %844 = vst.msk [vmem:[#allocation2 + $0x28] sm:$0xff] %vm442, %v835
        %845 = vst.msk [vmem:[#allocation2 + $0x30] sm:$0xff] %vm442, %v836
        %846 = vst.msk [vmem:[#allocation2 + $0x38] sm:$0xff] %vm442, %v837
        %847 = vst.msk [vmem:[#allocation2 + $0x40] sm:$0xff] %vm442, %v838
        %v848 = vld [vmem:[%s267 + $0x4] sm:$0xf]
        %v849 = vld [vmem:[%s267 + $0x8] sm:$0xf]
        %v850 = vld [vmem:[%s267 + $0xc] sm:$0xf]
        %v851 = vld [vmem:[%s267 + $0x10] sm:$0xf]
        %v852 = vld [vmem:[%s267 + $0x14] sm:$0xf]
        %v853 = vld [vmem:[%s267 + $0x18] sm:$0xf]
        %v854 = vld [vmem:[%s267 + $0x1c] sm:$0xf]
        %v855 = vld [vmem:[%s267 + $0x20] sm:$0xf]
        %v856 = vld [vmem:[%s267 + $0x24] sm:$0xf]
        %v857 = vld [vmem:[%s267 + $0x28] sm:$0x1]
        %v858 = vld [vmem:[#allocation6 + $0x18] sm:$0xf]
        %v859 = vld [vmem:[#allocation6 + $0x1c] sm:$0xf]
        %v870 = vunpack.c.l.b16 %v848
        %v871 = vunpack.c.l.b16 %v849
        %v872 = vunpack.c.l.b16 %v850
        %v873 = vunpack.c.l.b16 %v851
        %v874 = vunpack.c.l.b16 %v852
        %v875 = vunpack.c.l.b16 %v853
        %v876 = vunpack.c.l.b16 %v854
        %v877 = vunpack.c.l.b16 %v855
        %v878 = vunpack.c.l.b16 %v856
        %v879 = vunpack.c.l.b16 %v857
        %v880 = vpack.c.b16 %v871, %v870
        %v881 = vpack.c.b16 %v873, %v872
        %v882 = vpack.c.b16 %v875, %v874
        %v883 = vpack.c.b16 %v877, %v876
        %v884 = vpack.c.b16 %v879, %v878
        %v886 = vshrl.u32 %v880, 16
        %v888 = vshll.u32 %v880, 16
        %v890 = vrot.slane %v888, 1
        %v891 = vor.u32 %v886, %v890
        %v893 = vshll.u32 %v881, 16
        %v895 = vrot.slane %v893, 1
        %v896 = vsel %vm488, %v891, %v895
        %v897 = vshrl.u32 %v881, 16
        %v899 = vor.u32 %v897, %v895
        %v901 = vshll.u32 %v882, 16
        %v903 = vrot.slane %v901, 1
        %v904 = vsel %vm488, %v899, %v903
        %v905 = vshrl.u32 %v882, 16
        %v907 = vor.u32 %v905, %v903
        %v909 = vshll.u32 %v883, 16
        %v911 = vrot.slane %v909, 1
        %v912 = vsel %vm488, %v907, %v911
        %v913 = vshrl.u32 %v883, 16
        %v915 = vor.u32 %v913, %v911
        %v917 = vshll.u32 %v884, 16
        %v919 = vrot.slane %v917, 1
        %v920 = vsel %vm488, %v915, %v919
        %v921 = vshrl.u32 %v884, 16
        %v923 = vor.u32 %v921, %v919
        %v926 = vunpack.c.l.b16 %v858
        %v927 = vunpack.c.l.b16 %v859
        %v928 = vpack.c.b16 %v927, %v926
        %vm930 = vcmask 130048
        %v932 = vsel %vm930, %v896, 0
        %v935 = vsel %vm930, %v904, 0
        %v938 = vsel %vm930, %v912, 0
        %v941 = vsel %vm930, %v920, 0
        %v944 = vsel %vm930, %v923, 0
        %946 = vmatprep.subr.bf16.mxu0 0
        %947 = vmatpush1.bf16.msra.mxu0 %v928
        %948 = vmatprep.subr.bf16.mxu0 0
        %949 = vmatpush1.bf16.msra.mxu0 0
        %950 = vmatprep.subr.bf16.mxu0 0
        %951 = vmatpush1.bf16.msra.mxu0 0
        %952 = vmatprep.subr.bf16.mxu0 0
        %953 = vmatpush1.bf16.msra.mxu0 0
        %954 = vmatprep.subr.bf16.mxu0 0
        %955 = vmatpush1.bf16.msra.mxu0 0
        %956 = vmatprep.subr.bf16.mxu0 0
        %957 = vmatpush1.bf16.msra.mxu0 0
        %958 = vmatprep.subr.bf16.mxu0 0
        %959 = vmatpush1.bf16.msra.mxu0 0
        %960 = vmatprep.subr.bf16.mxu0 0
        %961 = vmatpush1.bf16.msra.mxu0 0
        %962 = vmatprep.subr.bf16.mxu0 0
        %963 = vmatpush1.bf16.msra.mxu0 0
        %964 = vmatprep.subr.bf16.mxu0 0
        %965 = vmatpush1.bf16.msra.mxu0 0
        %966 = vmatprep.subr.bf16.mxu0 0
        %967 = vmatpush1.bf16.msra.mxu0 0
        %968 = vmatprep.subr.bf16.mxu0 0
        %969 = vmatpush1.bf16.msra.mxu0 0
        %970 = vmatprep.subr.bf16.mxu0 0
        %971 = vmatpush1.bf16.msra.mxu0 0
        %972 = vmatprep.subr.bf16.mxu0 0
        %973 = vmatpush1.bf16.msra.mxu0 0
        %974 = vmatprep.subr.bf16.mxu0 0
        %975 = vmatpush1.bf16.msra.mxu0 0
        %976 = vmatprep.subr.bf16.mxu0 0
        %977 = vmatpush1.bf16.msra.mxu0 0
        %978 = vmatprep.mubr.bf16.mxu0 0
        %979 = vmatmul.mubr.bf16.gmra.mrb[0].mxu0 %v932
        %v980 = vpop.f32.mrb[0].mxu0
        %v981 = vadd.f32 0.0, %v980
        %v982 = vpop.f32.mrb[0].mxu0
        %v983 = vpop.f32.mrb[0].mxu0
        %v984 = vadd.f32 0.0, %v983
        %v985 = vpop.f32.mrb[0].mxu0
        %986 = vmatprep.mubr.bf16.mxu0 0
        %987 = vmatmul.mubr.bf16.gmra.mrb[0].mxu0 %v935
        %v988 = vpop.f32.mrb[0].mxu0
        %v989 = vadd.f32 0.0, %v988
        %v990 = vpop.f32.mrb[0].mxu0
        %v991 = vpop.f32.mrb[0].mxu0
        %v992 = vadd.f32 0.0, %v991
        %v993 = vpop.f32.mrb[0].mxu0
        %994 = vmatprep.mubr.bf16.mxu0 0
        %995 = vmatmul.mubr.bf16.gmra.mrb[0].mxu0 %v938
        %v996 = vpop.f32.mrb[0].mxu0
        %v997 = vadd.f32 0.0, %v996
        %v998 = vpop.f32.mrb[0].mxu0
        %v999 = vpop.f32.mrb[0].mxu0
        %v1000 = vadd.f32 0.0, %v999
        %v1001 = vpop.f32.mrb[0].mxu0
        %1002 = vmatprep.mubr.bf16.mxu0 0
        %1003 = vmatmul.mubr.bf16.gmra.mrb[0].mxu0 %v941
        %v1004 = vpop.f32.mrb[0].mxu0
        %v1005 = vadd.f32 0.0, %v1004
        %v1006 = vpop.f32.mrb[0].mxu0
        %v1007 = vpop.f32.mrb[0].mxu0
        %v1008 = vadd.f32 0.0, %v1007
        %v1009 = vpop.f32.mrb[0].mxu0
        %1010 = vmatprep.mubr.bf16.mxu0 0
        %1011 = vmatmul.mubr.bf16.gmra.mrb[0].mxu0 %v944
        %v1012 = vpop.f32.mrb[0].mxu0
        %v1013 = vadd.f32 0.0, %v1012
        %v1014 = vpop.f32.mrb[0].mxu0
        %v1015 = vpop.f32.mrb[0].mxu0
        %v1016 = vpop.f32.mrb[0].mxu0
        %1017 = vdwg.mxu0
        %v1018 = vld [vmem:[#allocation2] sm:$0xff]
        %v1019 = vld [vmem:[#allocation2 + $0x8] sm:$0xff]
        %v1020 = vld [vmem:[#allocation2 + $0x10] sm:$0xff]
        %v1021 = vld [vmem:[#allocation2 + $0x18] sm:$0xff]
        %v1022 = vld [vmem:[#allocation2 + $0x20] sm:$0xff]
        %v1023 = vld [vmem:[#allocation2 + $0x28] sm:$0xff]
        %v1024 = vld [vmem:[#allocation2 + $0x30] sm:$0xff]
        %v1025 = vld [vmem:[#allocation2 + $0x38] sm:$0xff]
        %v1026 = vld [vmem:[#allocation2 + $0x40] sm:$0xff]
        %v1027 = vadd.f32 %v1018, %v981
        %v1028 = vadd.f32 %v1019, %v984
        %v1029 = vadd.f32 %v1020, %v989
        %v1030 = vadd.f32 %v1021, %v992
        %v1031 = vadd.f32 %v1022, %v997
        %v1032 = vadd.f32 %v1023, %v1000
        %v1033 = vadd.f32 %v1024, %v1005
        %v1034 = vadd.f32 %v1025, %v1008
        %v1035 = vadd.f32 %v1026, %v1013
        %1036 = vst.msk [vmem:[#allocation2] sm:$0xff] %vm442, %v1027
        %1037 = vst.msk [vmem:[#allocation2 + $0x8] sm:$0xff] %vm442, %v1028
        %1038 = vst.msk [vmem:[#allocation2 + $0x10] sm:$0xff] %vm442, %v1029
        %1039 = vst.msk [vmem:[#allocation2 + $0x18] sm:$0xff] %vm442, %v1030
        %1040 = vst.msk [vmem:[#allocation2 + $0x20] sm:$0xff] %vm442, %v1031
        %1041 = vst.msk [vmem:[#allocation2 + $0x28] sm:$0xff] %vm442, %v1032
        %1042 = vst.msk [vmem:[#allocation2 + $0x30] sm:$0xff] %vm442, %v1033
        %1043 = vst.msk [vmem:[#allocation2 + $0x38] sm:$0xff] %vm442, %v1034
        %1044 = vst.msk [vmem:[#allocation2 + $0x40] sm:$0xff] %vm442, %v1035
        %v1045 = vld [vmem:[%s267 + $0x4] sm:$0xe]
        %v1046 = vld [vmem:[%s267 + $0x8] sm:$0xf]
        %v1047 = vld [vmem:[%s267 + $0xc] sm:$0xf]
        %v1048 = vld [vmem:[%s267 + $0x10] sm:$0xf]
        %v1049 = vld [vmem:[%s267 + $0x14] sm:$0xf]
        %v1050 = vld [vmem:[%s267 + $0x18] sm:$0xf]
        %v1051 = vld [vmem:[%s267 + $0x1c] sm:$0xf]
        %v1052 = vld [vmem:[%s267 + $0x20] sm:$0xf]
        %v1053 = vld [vmem:[%s267 + $0x24] sm:$0xf]
        %v1054 = vld [vmem:[%s267 + $0x28] sm:$0x1]
        %v1055 = vld [vmem:[#allocation6 + $0x20] sm:$0xf]
        %v1066 = vunpack.c.l.b16 %v1045
        %v1067 = vunpack.c.l.b16 %v1046
        %v1068 = vunpack.c.l.b16 %v1047
        %v1069 = vunpack.c.l.b16 %v1048
        %v1070 = vunpack.c.l.b16 %v1049
        %v1071 = vunpack.c.l.b16 %v1050
        %v1072 = vunpack.c.l.b16 %v1051
        %v1073 = vunpack.c.l.b16 %v1052
        %v1074 = vunpack.c.l.b16 %v1053
        %v1075 = vunpack.c.l.b16 %v1054
        %v1076 = vpack.c.b16 %v1067, %v1066
        %v1077 = vpack.c.b16 %v1069, %v1068
        %v1078 = vpack.c.b16 %v1071, %v1070
        %v1079 = vpack.c.b16 %v1073, %v1072
        %v1080 = vpack.c.b16 %v1075, %v1074
        %vm1081 = vcmask 1046528
        %v1082 = vrot.slane %v1076, 1
        %v1083 = vrot.slane %v1077, 1
        %v1084 = vsel %vm1081, %v1082, %v1083
        %v1085 = vrot.slane %v1078, 1
        %v1086 = vsel %vm1081, %v1083, %v1085
        %v1087 = vrot.slane %v1079, 1
        %v1088 = vsel %vm1081, %v1085, %v1087
        %v1089 = vrot.slane %v1080, 1
        %v1090 = vsel %vm1081, %v1087, %v1089
        %v1092 = vsel %vm442, %v1084, 0
        %v1095 = vsel %vm442, %v1086, 0
        %v1098 = vsel %vm442, %v1088, 0
        %v1101 = vsel %vm442, %v1090, 0
        %v1104 = vsel %vm442, %v1089, 0
        %v1107 = vsel %vm543, %v1055, 0
        %1109 = vmatprep.subr.bf16.mxu0 0
        %1110 = vmatpush1.bf16.msra.mxu0 %v1107
        %1111 = vmatprep.subr.bf16.mxu0 0
        %1112 = vmatpush1.bf16.msra.mxu0 0
        %1113 = vmatprep.subr.bf16.mxu0 0
        %1114 = vmatpush1.bf16.msra.mxu0 0
        %1115 = vmatprep.subr.bf16.mxu0 0
        %1116 = vmatpush1.bf16.msra.mxu0 0
        %1117 = vmatprep.subr.bf16.mxu0 0
        %1118 = vmatpush1.bf16.msra.mxu0 0
        %1119 = vmatprep.subr.bf16.mxu0 0
        %1120 = vmatpush1.bf16.msra.mxu0 0
        %1121 = vmatprep.subr.bf16.mxu0 0
        %1122 = vmatpush1.bf16.msra.mxu0 0
        %1123 = vmatprep.subr.bf16.mxu0 0
        %1124 = vmatpush1.bf16.msra.mxu0 0
        %1125 = vmatprep.subr.bf16.mxu0 0
        %1126 = vmatpush1.bf16.msra.mxu0 0
        %1127 = vmatprep.subr.bf16.mxu0 0
        %1128 = vmatpush1.bf16.msra.mxu0 0
        %1129 = vmatprep.subr.bf16.mxu0 0
        %1130 = vmatpush1.bf16.msra.mxu0 0
        %1131 = vmatprep.subr.bf16.mxu0 0
        %1132 = vmatpush1.bf16.msra.mxu0 0
        %1133 = vmatprep.subr.bf16.mxu0 0
        %1134 = vmatpush1.bf16.msra.mxu0 0
        %1135 = vmatprep.subr.bf16.mxu0 0
        %1136 = vmatpush1.bf16.msra.mxu0 0
        %1137 = vmatprep.subr.bf16.mxu0 0
        %1138 = vmatpush1.bf16.msra.mxu0 0
        %1139 = vmatprep.subr.bf16.mxu0 0
        %1140 = vmatpush1.bf16.msra.mxu0 0
        %1141 = vmatprep.mubr.bf16.mxu0 0
        %1142 = vmatmul.mubr.bf16.gmra.mrb[0].mxu0 %v1092
        %v1143 = vpop.f32.mrb[0].mxu0
        %v1144 = vadd.f32 0.0, %v1143
        %v1145 = vpop.f32.mrb[0].mxu0
        %v1146 = vpop.f32.mrb[0].mxu0
        %v1147 = vadd.f32 0.0, %v1146
        %v1148 = vpop.f32.mrb[0].mxu0
        %1149 = vmatprep.mubr.bf16.mxu0 0
        %1150 = vmatmul.mubr.bf16.gmra.mrb[0].mxu0 %v1095
        %v1151 = vpop.f32.mrb[0].mxu0
        %v1152 = vadd.f32 0.0, %v1151
        %v1153 = vpop.f32.mrb[0].mxu0
        %v1154 = vpop.f32.mrb[0].mxu0
        %v1155 = vadd.f32 0.0, %v1154
        %v1156 = vpop.f32.mrb[0].mxu0
        %1157 = vmatprep.mubr.bf16.mxu0 0
        %1158 = vmatmul.mubr.bf16.gmra.mrb[0].mxu0 %v1098
        %v1159 = vpop.f32.mrb[0].mxu0
        %v1160 = vadd.f32 0.0, %v1159
        %v1161 = vpop.f32.mrb[0].mxu0
        %v1162 = vpop.f32.mrb[0].mxu0
        %v1163 = vadd.f32 0.0, %v1162
        %v1164 = vpop.f32.mrb[0].mxu0
        %1165 = vmatprep.mubr.bf16.mxu0 0
        %1166 = vmatmul.mubr.bf16.gmra.mrb[0].mxu0 %v1101
        %v1167 = vpop.f32.mrb[0].mxu0
        %v1168 = vadd.f32 0.0, %v1167
        %v1169 = vpop.f32.mrb[0].mxu0
        %v1170 = vpop.f32.mrb[0].mxu0
        %v1171 = vadd.f32 0.0, %v1170
        %v1172 = vpop.f32.mrb[0].mxu0
        %1173 = vmatprep.mubr.bf16.mxu0 0
        %1174 = vmatmul.mubr.bf16.gmra.mrb[0].mxu0 %v1104
        %v1175 = vpop.f32.mrb[0].mxu0
        %v1176 = vadd.f32 0.0, %v1175
        %v1177 = vpop.f32.mrb[0].mxu0
        %v1178 = vpop.f32.mrb[0].mxu0
        %v1179 = vpop.f32.mrb[0].mxu0
        %1180 = vdwg.mxu0
        %v1181 = vld [vmem:[#allocation2] sm:$0xff]
        %v1182 = vld [vmem:[#allocation2 + $0x8] sm:$0xff]
        %v1183 = vld [vmem:[#allocation2 + $0x10] sm:$0xff]
        %v1184 = vld [vmem:[#allocation2 + $0x18] sm:$0xff]
        %v1185 = vld [vmem:[#allocation2 + $0x20] sm:$0xff]
        %v1186 = vld [vmem:[#allocation2 + $0x28] sm:$0xff]
        %v1187 = vld [vmem:[#allocation2 + $0x30] sm:$0xff]
        %v1188 = vld [vmem:[#allocation2 + $0x38] sm:$0xff]
        %v1189 = vld [vmem:[#allocation2 + $0x40] sm:$0xff]
        %v1190 = vadd.f32 %v1181, %v1144
        %v1191 = vadd.f32 %v1182, %v1147
        %v1192 = vadd.f32 %v1183, %v1152
        %v1193 = vadd.f32 %v1184, %v1155
        %v1194 = vadd.f32 %v1185, %v1160
        %v1195 = vadd.f32 %v1186, %v1163
        %v1196 = vadd.f32 %v1187, %v1168
        %v1197 = vadd.f32 %v1188, %v1171
        %v1198 = vadd.f32 %v1189, %v1176
        %1199 = vst.msk [vmem:[#allocation2] sm:$0xff] %vm442, %v1190
        %1200 = vst.msk [vmem:[#allocation2 + $0x8] sm:$0xff] %vm442, %v1191
        %1201 = vst.msk [vmem:[#allocation2 + $0x10] sm:$0xff] %vm442, %v1192
        %1202 = vst.msk [vmem:[#allocation2 + $0x18] sm:$0xff] %vm442, %v1193
        %1203 = vst.msk [vmem:[#allocation2 + $0x20] sm:$0xff] %vm442, %v1194
        %1204 = vst.msk [vmem:[#allocation2 + $0x28] sm:$0xff] %vm442, %v1195
        %1205 = vst.msk [vmem:[#allocation2 + $0x30] sm:$0xff] %vm442, %v1196
        %1206 = vst.msk [vmem:[#allocation2 + $0x38] sm:$0xff] %vm442, %v1197
        %1207 = vst.msk [vmem:[#allocation2 + $0x40] sm:$0xff] %vm442, %v1198
        %v1208 = vld [vmem:[#allocation2] sm:$0xff]
        %v1209 = vld [vmem:[#allocation2 + $0x8] sm:$0xff]
        %v1210 = vld [vmem:[#allocation2 + $0x10] sm:$0xff]
        %v1211 = vld [vmem:[#allocation2 + $0x18] sm:$0xff]
        %v1212 = vld [vmem:[#allocation2 + $0x20] sm:$0xff]
        %v1213 = vld [vmem:[#allocation2 + $0x28] sm:$0xff]
        %v1214 = vld [vmem:[#allocation2 + $0x30] sm:$0xff]
        %v1215 = vld [vmem:[#allocation2 + $0x38] sm:$0xff]
        %v1216 = vld [vmem:[#allocation2 + $0x40] sm:$0xff]
        %v1217 = vld [vmem:[#allocation8] sm:$0x1]
        %v1219 = vlaneseq
        %v1220 = vshrl.u32 %v1219, 7
        %v1221 = vsub.s32 0, %v1220
        %v1222 = vrot.slane %v1217, %v1221
        %v1224 = vmul.f32 %v1208, %v1222
        %v1225 = vmul.f32 %v1209, %v1222
        %v1226 = vmul.f32 %v1210, %v1222
        %v1227 = vmul.f32 %v1211, %v1222
        %v1228 = vmul.f32 %v1212, %v1222
        %v1229 = vmul.f32 %v1213, %v1222
        %v1230 = vmul.f32 %v1214, %v1222
        %v1231 = vmul.f32 %v1215, %v1222
        %v1232 = vmul.f32 %v1216, %v1222
        %v1233 = vld [vmem:[#allocation9] sm:$0x1]
        %v1235 = vlaneseq
        %v1236 = vshrl.u32 %v1235, 7
        %v1237 = vsub.s32 0, %v1236
        %v1238 = vrot.slane %v1233, %v1237
        %v1240 = vadd.f32 %v1224, %v1238
        %v1241 = vadd.f32 %v1225, %v1238
        %v1242 = vadd.f32 %v1226, %v1238
        %v1243 = vadd.f32 %v1227, %v1238
        %v1244 = vadd.f32 %v1228, %v1238
        %v1245 = vadd.f32 %v1229, %v1238
        %v1246 = vadd.f32 %v1230, %v1238
        %v1247 = vadd.f32 %v1231, %v1238
        %v1248 = vadd.f32 %v1232, %v1238
        %v1249 = vmax.f32 %v1240, 0.0
        %v1250 = vmax.f32 %v1241, 0.0
        %v1251 = vmax.f32 %v1242, 0.0
        %v1252 = vmax.f32 %v1243, 0.0
        %v1253 = vmax.f32 %v1244, 0.0
        %v1254 = vmax.f32 %v1245, 0.0
        %v1255 = vmax.f32 %v1246, 0.0
        %v1256 = vmax.f32 %v1247, 0.0
        %v1257 = vmax.f32 %v1248, 0.0
        %v1267 = vcombine.high %v1249, %v1249
        %v1269 = vunpack.c.l.s4 1966171168
        %v1270 = vunpack.c.0.s8 %v1269
        %v1271 = vlaneseq
        %v1272 = vshrl.u32 %v1271, 7
        %v1273 = vsub.s32 %v1270, %v1272
        %v1274 = vrot.slane %v1249, %v1273
        %v1276 = vunpack.c.l.s4 1966171168
        %v1277 = vunpack.c.0.s8 %v1276
        %v1278 = vlaneseq
        %v1279 = vshrl.u32 %v1278, 7
        %v1280 = vsub.s32 %v1277, %v1279
        %v1281 = vrot.slane %v1267, %v1280
        %v1282 = vcombine.high %v1274, %v1274
        %v1283 = vcombine.high %v1281, %v1281
        %v1285 = vunpack.c.l.s4 1966171168
        %v1286 = vunpack.c.0.s8 %v1285
        %v1287 = vlaneseq
        %v1288 = vshrl.u32 %v1287, 7
        %v1289 = vsub.s32 %v1286, %v1288
        %v1290 = vrot.slane %v1274, %v1289
        %v1292 = vunpack.c.l.s4 1966171168
        %v1293 = vunpack.c.0.s8 %v1292
        %v1294 = vlaneseq
        %v1295 = vshrl.u32 %v1294, 7
        %v1296 = vsub.s32 %v1293, %v1295
        %v1297 = vrot.slane %v1281, %v1296
        %v1299 = vunpack.c.l.s4 1966171168
        %v1300 = vunpack.c.0.s8 %v1299
        %v1301 = vlaneseq
        %v1302 = vshrl.u32 %v1301, 7
        %v1303 = vsub.s32 %v1300, %v1302
        %v1304 = vrot.slane %v1282, %v1303
        %v1306 = vunpack.c.l.s4 1966171168
        %v1307 = vunpack.c.0.s8 %v1306
        %v1308 = vlaneseq
        %v1309 = vshrl.u32 %v1308, 7
        %v1310 = vsub.s32 %v1307, %v1309
        %v1311 = vrot.slane %v1283, %v1310
        %v1312 = vcombine.high %v1290, %v1290
        %v1313 = vcombine.high %v1297, %v1297
        %v1314 = vcombine.high %v1304, %v1304
        %v1315 = vcombine.high %v1311, %v1311
        %v1316 = vcombine.high %v1250, %v1250
        %v1318 = vunpack.c.l.s4 1966171168
        %v1319 = vunpack.c.0.s8 %v1318
        %v1320 = vlaneseq
        %v1321 = vshrl.u32 %v1320, 7
        %v1322 = vsub.s32 %v1319, %v1321
        %v1323 = vrot.slane %v1250, %v1322
        %v1325 = vunpack.c.l.s4 1966171168
        %v1326 = vunpack.c.0.s8 %v1325
        %v1327 = vlaneseq
        %v1328 = vshrl.u32 %v1327, 7
        %v1329 = vsub.s32 %v1326, %v1328
        %v1330 = vrot.slane %v1316, %v1329
        %v1331 = vcombine.high %v1323, %v1323
        %v1332 = vcombine.high %v1330, %v1330
        %v1334 = vunpack.c.l.s4 1966171168
        %v1335 = vunpack.c.0.s8 %v1334
        %v1336 = vlaneseq
        %v1337 = vshrl.u32 %v1336, 7
        %v1338 = vsub.s32 %v1335, %v1337
        %v1339 = vrot.slane %v1323, %v1338
        %v1341 = vunpack.c.l.s4 1966171168
        %v1342 = vunpack.c.0.s8 %v1341
        %v1343 = vlaneseq
        %v1344 = vshrl.u32 %v1343, 7
        %v1345 = vsub.s32 %v1342, %v1344
        %v1346 = vrot.slane %v1330, %v1345
        %v1348 = vunpack.c.l.s4 1966171168
        %v1349 = vunpack.c.0.s8 %v1348
        %v1350 = vlaneseq
        %v1351 = vshrl.u32 %v1350, 7
        %v1352 = vsub.s32 %v1349, %v1351
        %v1353 = vrot.slane %v1331, %v1352
        %v1355 = vunpack.c.l.s4 1966171168
        %v1356 = vunpack.c.0.s8 %v1355
        %v1357 = vlaneseq
        %v1358 = vshrl.u32 %v1357, 7
        %v1359 = vsub.s32 %v1356, %v1358
        %v1360 = vrot.slane %v1332, %v1359
        %v1361 = vcombine.high %v1339, %v1339
        %v1362 = vcombine.high %v1346, %v1346
        %v1363 = vcombine.high %v1353, %v1353
        %v1364 = vcombine.high %v1360, %v1360
        %v1365 = vcombine.high %v1251, %v1251
        %v1367 = vunpack.c.l.s4 1966171168
        %v1368 = vunpack.c.0.s8 %v1367
        %v1369 = vlaneseq
        %v1370 = vshrl.u32 %v1369, 7
        %v1371 = vsub.s32 %v1368, %v1370
        %v1372 = vrot.slane %v1251, %v1371
        %v1374 = vunpack.c.l.s4 1966171168
        %v1375 = vunpack.c.0.s8 %v1374
        %v1376 = vlaneseq
        %v1377 = vshrl.u32 %v1376, 7
        %v1378 = vsub.s32 %v1375, %v1377
        %v1379 = vrot.slane %v1365, %v1378
        %v1380 = vcombine.high %v1372, %v1372
        %v1381 = vcombine.high %v1379, %v1379
        %v1383 = vunpack.c.l.s4 1966171168
        %v1384 = vunpack.c.0.s8 %v1383
        %v1385 = vlaneseq
        %v1386 = vshrl.u32 %v1385, 7
        %v1387 = vsub.s32 %v1384, %v1386
        %v1388 = vrot.slane %v1372, %v1387
        %v1390 = vunpack.c.l.s4 1966171168
        %v1391 = vunpack.c.0.s8 %v1390
        %v1392 = vlaneseq
        %v1393 = vshrl.u32 %v1392, 7
        %v1394 = vsub.s32 %v1391, %v1393
        %v1395 = vrot.slane %v1379, %v1394
        %v1397 = vunpack.c.l.s4 1966171168
        %v1398 = vunpack.c.0.s8 %v1397
        %v1399 = vlaneseq
        %v1400 = vshrl.u32 %v1399, 7
        %v1401 = vsub.s32 %v1398, %v1400
        %v1402 = vrot.slane %v1380, %v1401
        %v1404 = vunpack.c.l.s4 1966171168
        %v1405 = vunpack.c.0.s8 %v1404
        %v1406 = vlaneseq
        %v1407 = vshrl.u32 %v1406, 7
        %v1408 = vsub.s32 %v1405, %v1407
        %v1409 = vrot.slane %v1381, %v1408
        %v1410 = vcombine.high %v1388, %v1388
        %v1411 = vcombine.high %v1395, %v1395
        %v1412 = vcombine.high %v1402, %v1402
        %v1413 = vcombine.high %v1409, %v1409
        %v1414 = vcombine.high %v1252, %v1252
        %v1416 = vunpack.c.l.s4 1966171168
        %v1417 = vunpack.c.0.s8 %v1416
        %v1418 = vlaneseq
        %v1419 = vshrl.u32 %v1418, 7
        %v1420 = vsub.s32 %v1417, %v1419
        %v1421 = vrot.slane %v1252, %v1420
        %v1423 = vunpack.c.l.s4 1966171168
        %v1424 = vunpack.c.0.s8 %v1423
        %v1425 = vlaneseq
        %v1426 = vshrl.u32 %v1425, 7
        %v1427 = vsub.s32 %v1424, %v1426
        %v1428 = vrot.slane %v1414, %v1427
        %v1429 = vcombine.high %v1421, %v1421
        %v1430 = vcombine.high %v1428, %v1428
        %v1432 = vunpack.c.l.s4 1966171168
        %v1433 = vunpack.c.0.s8 %v1432
        %v1434 = vlaneseq
        %v1435 = vshrl.u32 %v1434, 7
        %v1436 = vsub.s32 %v1433, %v1435
        %v1437 = vrot.slane %v1421, %v1436
        %v1439 = vunpack.c.l.s4 1966171168
        %v1440 = vunpack.c.0.s8 %v1439
        %v1441 = vlaneseq
        %v1442 = vshrl.u32 %v1441, 7
        %v1443 = vsub.s32 %v1440, %v1442
        %v1444 = vrot.slane %v1428, %v1443
        %v1446 = vunpack.c.l.s4 1966171168
        %v1447 = vunpack.c.0.s8 %v1446
        %v1448 = vlaneseq
        %v1449 = vshrl.u32 %v1448, 7
        %v1450 = vsub.s32 %v1447, %v1449
        %v1451 = vrot.slane %v1429, %v1450
        %v1453 = vunpack.c.l.s4 1966171168
        %v1454 = vunpack.c.0.s8 %v1453
        %v1455 = vlaneseq
        %v1456 = vshrl.u32 %v1455, 7
        %v1457 = vsub.s32 %v1454, %v1456
        %v1458 = vrot.slane %v1430, %v1457
        %v1459 = vcombine.high %v1444, %v1444
        %v1460 = vcombine.high %v1451, %v1451
        %v1461 = vcombine.high %v1458, %v1458
        %v1462 = vcombine.high %v1253, %v1253
        %v1464 = vunpack.c.l.s4 1966171168
        %v1465 = vunpack.c.0.s8 %v1464
        %v1466 = vlaneseq
        %v1467 = vshrl.u32 %v1466, 7
        %v1468 = vsub.s32 %v1465, %v1467
        %v1469 = vrot.slane %v1253, %v1468
        %v1471 = vunpack.c.l.s4 1966171168
        %v1472 = vunpack.c.0.s8 %v1471
        %v1473 = vlaneseq
        %v1474 = vshrl.u32 %v1473, 7
        %v1475 = vsub.s32 %v1472, %v1474
        %v1476 = vrot.slane %v1462, %v1475
        %v1477 = vcombine.high %v1469, %v1469
        %v1478 = vcombine.high %v1476, %v1476
        %v1480 = vunpack.c.l.s4 1966171168
        %v1481 = vunpack.c.0.s8 %v1480
        %v1482 = vlaneseq
        %v1483 = vshrl.u32 %v1482, 7
        %v1484 = vsub.s32 %v1481, %v1483
        %v1485 = vrot.slane %v1469, %v1484
        %v1487 = vunpack.c.l.s4 1966171168
        %v1488 = vunpack.c.0.s8 %v1487
        %v1489 = vlaneseq
        %v1490 = vshrl.u32 %v1489, 7
        %v1491 = vsub.s32 %v1488, %v1490
        %v1492 = vrot.slane %v1476, %v1491
        %v1494 = vunpack.c.l.s4 1966171168
        %v1495 = vunpack.c.0.s8 %v1494
        %v1496 = vlaneseq
        %v1497 = vshrl.u32 %v1496, 7
        %v1498 = vsub.s32 %v1495, %v1497
        %v1499 = vrot.slane %v1477, %v1498
        %v1501 = vunpack.c.l.s4 1966171168
        %v1502 = vunpack.c.0.s8 %v1501
        %v1503 = vlaneseq
        %v1504 = vshrl.u32 %v1503, 7
        %v1505 = vsub.s32 %v1502, %v1504
        %v1506 = vrot.slane %v1478, %v1505
        %v1507 = vcombine.high %v1485, %v1485
        %v1508 = vcombine.high %v1492, %v1492
        %v1509 = vcombine.high %v1506, %v1506
        %v1510 = vcombine.high %v1254, %v1254
        %v1512 = vunpack.c.l.s4 1966171168
        %v1513 = vunpack.c.0.s8 %v1512
        %v1514 = vlaneseq
        %v1515 = vshrl.u32 %v1514, 7
        %v1516 = vsub.s32 %v1513, %v1515
        %v1517 = vrot.slane %v1254, %v1516
        %v1519 = vunpack.c.l.s4 1966171168
        %v1520 = vunpack.c.0.s8 %v1519
        %v1521 = vlaneseq
        %v1522 = vshrl.u32 %v1521, 7
        %v1523 = vsub.s32 %v1520, %v1522
        %v1524 = vrot.slane %v1510, %v1523
        %v1525 = vcombine.high %v1517, %v1517
        %v1526 = vcombine.high %v1524, %v1524
        %v1528 = vunpack.c.l.s4 1966171168
        %v1529 = vunpack.c.0.s8 %v1528
        %v1530 = vlaneseq
        %v1531 = vshrl.u32 %v1530, 7
        %v1532 = vsub.s32 %v1529, %v1531
        %v1533 = vrot.slane %v1517, %v1532
        %v1535 = vunpack.c.l.s4 1966171168
        %v1536 = vunpack.c.0.s8 %v1535
        %v1537 = vlaneseq
        %v1538 = vshrl.u32 %v1537, 7
        %v1539 = vsub.s32 %v1536, %v1538
        %v1540 = vrot.slane %v1524, %v1539
        %v1542 = vunpack.c.l.s4 1966171168
        %v1543 = vunpack.c.0.s8 %v1542
        %v1544 = vlaneseq
        %v1545 = vshrl.u32 %v1544, 7
        %v1546 = vsub.s32 %v1543, %v1545
        %v1547 = vrot.slane %v1525, %v1546
        %v1549 = vunpack.c.l.s4 1966171168
        %v1550 = vunpack.c.0.s8 %v1549
        %v1551 = vlaneseq
        %v1552 = vshrl.u32 %v1551, 7
        %v1553 = vsub.s32 %v1550, %v1552
        %v1554 = vrot.slane %v1526, %v1553
        %v1555 = vcombine.high %v1533, %v1533
        %v1556 = vcombine.high %v1540, %v1540
        %v1557 = vcombine.high %v1547, %v1547
        %v1558 = vcombine.high %v1554, %v1554
        %v1559 = vcombine.high %v1255, %v1255
        %v1561 = vunpack.c.l.s4 1966171168
        %v1562 = vunpack.c.0.s8 %v1561
        %v1563 = vlaneseq
        %v1564 = vshrl.u32 %v1563, 7
        %v1565 = vsub.s32 %v1562, %v1564
        %v1566 = vrot.slane %v1255, %v1565
        %v1568 = vunpack.c.l.s4 1966171168
        %v1569 = vunpack.c.0.s8 %v1568
        %v1570 = vlaneseq
        %v1571 = vshrl.u32 %v1570, 7
        %v1572 = vsub.s32 %v1569, %v1571
        %v1573 = vrot.slane %v1559, %v1572
        %v1574 = vcombine.high %v1566, %v1566
        %v1575 = vcombine.high %v1573, %v1573
        %v1577 = vunpack.c.l.s4 1966171168
        %v1578 = vunpack.c.0.s8 %v1577
        %v1579 = vlaneseq
        %v1580 = vshrl.u32 %v1579, 7
        %v1581 = vsub.s32 %v1578, %v1580
        %v1582 = vrot.slane %v1566, %v1581
        %v1584 = vunpack.c.l.s4 1966171168
        %v1585 = vunpack.c.0.s8 %v1584
        %v1586 = vlaneseq
        %v1587 = vshrl.u32 %v1586, 7
        %v1588 = vsub.s32 %v1585, %v1587
        %v1589 = vrot.slane %v1573, %v1588
        %v1591 = vunpack.c.l.s4 1966171168
        %v1592 = vunpack.c.0.s8 %v1591
        %v1593 = vlaneseq
        %v1594 = vshrl.u32 %v1593, 7
        %v1595 = vsub.s32 %v1592, %v1594
        %v1596 = vrot.slane %v1574, %v1595
        %v1598 = vunpack.c.l.s4 1966171168
        %v1599 = vunpack.c.0.s8 %v1598
        %v1600 = vlaneseq
        %v1601 = vshrl.u32 %v1600, 7
        %v1602 = vsub.s32 %v1599, %v1601
        %v1603 = vrot.slane %v1575, %v1602
        %v1604 = vcombine.high %v1582, %v1582
        %v1605 = vcombine.high %v1589, %v1589
        %v1606 = vcombine.high %v1596, %v1596
        %v1607 = vcombine.high %v1603, %v1603
        %v1608 = vcombine.high %v1256, %v1256
        %v1610 = vunpack.c.l.s4 1966171168
        %v1611 = vunpack.c.0.s8 %v1610
        %v1612 = vlaneseq
        %v1613 = vshrl.u32 %v1612, 7
        %v1614 = vsub.s32 %v1611, %v1613
        %v1615 = vrot.slane %v1256, %v1614
        %v1617 = vunpack.c.l.s4 1966171168
        %v1618 = vunpack.c.0.s8 %v1617
        %v1619 = vlaneseq
        %v1620 = vshrl.u32 %v1619, 7
        %v1621 = vsub.s32 %v1618, %v1620
        %v1622 = vrot.slane %v1608, %v1621
        %v1623 = vcombine.high %v1615, %v1615
        %v1624 = vcombine.high %v1622, %v1622
        %v1626 = vunpack.c.l.s4 1966171168
        %v1627 = vunpack.c.0.s8 %v1626
        %v1628 = vlaneseq
        %v1629 = vshrl.u32 %v1628, 7
        %v1630 = vsub.s32 %v1627, %v1629
        %v1631 = vrot.slane %v1615, %v1630
        %v1633 = vunpack.c.l.s4 1966171168
        %v1634 = vunpack.c.0.s8 %v1633
        %v1635 = vlaneseq
        %v1636 = vshrl.u32 %v1635, 7
        %v1637 = vsub.s32 %v1634, %v1636
        %v1638 = vrot.slane %v1622, %v1637
        %v1640 = vunpack.c.l.s4 1966171168
        %v1641 = vunpack.c.0.s8 %v1640
        %v1642 = vlaneseq
        %v1643 = vshrl.u32 %v1642, 7
        %v1644 = vsub.s32 %v1641, %v1643
        %v1645 = vrot.slane %v1623, %v1644
        %v1647 = vunpack.c.l.s4 1966171168
        %v1648 = vunpack.c.0.s8 %v1647
        %v1649 = vlaneseq
        %v1650 = vshrl.u32 %v1649, 7
        %v1651 = vsub.s32 %v1648, %v1650
        %v1652 = vrot.slane %v1624, %v1651
        %v1653 = vcombine.high %v1631, %v1631
        %v1654 = vcombine.high %v1645, %v1645
        %v1655 = vcombine.high %v1652, %v1652
        %v1656 = vcombine.high %v1257, %v1257
        %v1658 = vunpack.c.l.s4 1966171168
        %v1659 = vunpack.c.0.s8 %v1658
        %v1660 = vlaneseq
        %v1661 = vshrl.u32 %v1660, 7
        %v1662 = vsub.s32 %v1659, %v1661
        %v1663 = vrot.slane %v1257, %v1662
        %v1665 = vunpack.c.l.s4 1966171168
        %v1666 = vunpack.c.0.s8 %v1665
        %v1667 = vlaneseq
        %v1668 = vshrl.u32 %v1667, 7
        %v1669 = vsub.s32 %v1666, %v1668
        %v1670 = vrot.slane %v1656, %v1669
        %v1671 = vcombine.high %v1663, %v1663
        %v1672 = vcombine.high %v1670, %v1670
        %v1674 = vunpack.c.l.s4 1966171168
        %v1675 = vunpack.c.0.s8 %v1674
        %v1676 = vlaneseq
        %v1677 = vshrl.u32 %v1676, 7
        %v1678 = vsub.s32 %v1675, %v1677
        %v1679 = vrot.slane %v1663, %v1678
        %v1681 = vunpack.c.l.s4 1966171168
        %v1682 = vunpack.c.0.s8 %v1681
        %v1683 = vlaneseq
        %v1684 = vshrl.u32 %v1683, 7
        %v1685 = vsub.s32 %v1682, %v1684
        %v1686 = vrot.slane %v1670, %v1685
        %v1688 = vunpack.c.l.s4 1966171168
        %v1689 = vunpack.c.0.s8 %v1688
        %v1690 = vlaneseq
        %v1691 = vshrl.u32 %v1690, 7
        %v1692 = vsub.s32 %v1689, %v1691
        %v1693 = vrot.slane %v1671, %v1692
        %v1695 = vunpack.c.l.s4 1966171168
        %v1696 = vunpack.c.0.s8 %v1695
        %v1697 = vlaneseq
        %v1698 = vshrl.u32 %v1697, 7
        %v1699 = vsub.s32 %v1696, %v1698
        %v1700 = vrot.slane %v1672, %v1699
        %v1701 = vcombine.high %v1679, %v1679
        %v1702 = vcombine.high %v1686, %v1686
        %v1703 = vcombine.high %v1693, %v1693
        %v1704 = vcombine.low %v1290, %v1304
        %v1705 = vcombine.low %v1312, %v1314
        %v1706 = vcombine.low %v1297, %v1311
        %v1707 = vcombine.low %v1313, %v1315
        %v1709 = vunpack.c.l.s4 1966171168
        %v1710 = vunpack.c.0.s8 %v1709
        %v1711 = vlaneseq
        %v1712 = vshrl.u32 %v1711, 7
        %v1713 = vsub.s32 %v1710, %v1712
        %v1714 = vrot.slane %v1704, %v1713
        %v1716 = vunpack.c.l.s4 1966171168
        %v1717 = vunpack.c.0.s8 %v1716
        %v1718 = vlaneseq
        %v1719 = vshrl.u32 %v1718, 7
        %v1720 = vsub.s32 %v1717, %v1719
        %v1721 = vrot.slane %v1705, %v1720
        %v1723 = vunpack.c.l.s4 1966171168
        %v1724 = vunpack.c.0.s8 %v1723
        %v1725 = vlaneseq
        %v1726 = vshrl.u32 %v1725, 7
        %v1727 = vsub.s32 %v1724, %v1726
        %v1728 = vrot.slane %v1706, %v1727
        %v1730 = vunpack.c.l.s4 1966171168
        %v1731 = vunpack.c.0.s8 %v1730
        %v1732 = vlaneseq
        %v1733 = vshrl.u32 %v1732, 7
        %v1734 = vsub.s32 %v1731, %v1733
        %v1735 = vrot.slane %v1707, %v1734
        %v1736 = vcombine.low %v1714, %v1721
        %v1737 = vcombine.low %v1728, %v1735
        %v1739 = vunpack.c.l.s4 1966171168
        %v1740 = vunpack.c.0.s8 %v1739
        %v1741 = vlaneseq
        %v1742 = vshrl.u32 %v1741, 7
        %v1743 = vsub.s32 %v1740, %v1742
        %v1744 = vrot.slane %v1736, %v1743
        %v1746 = vunpack.c.l.s4 1966171168
        %v1747 = vunpack.c.0.s8 %v1746
        %v1748 = vlaneseq
        %v1749 = vshrl.u32 %v1748, 7
        %v1750 = vsub.s32 %v1747, %v1749
        %v1751 = vrot.slane %v1737, %v1750
        %v1752 = vcombine.low %v1744, %v1751
        %v1753 = vcombine.low %v1353, %v1361
        %v1754 = vcombine.low %v1363, %v1346
        %v1755 = vcombine.low %v1360, %v1362
        %v1756 = vcombine.low %v1364, %v1388
        %v1758 = vunpack.c.l.s4 1966171168
        %v1759 = vunpack.c.0.s8 %v1758
        %v1760 = vlaneseq
        %v1761 = vshrl.u32 %v1760, 7
        %v1762 = vsub.s32 %v1759, %v1761
        %v1763 = vrot.slane %v1753, %v1762
        %v1765 = vunpack.c.l.s4 1966171168
        %v1766 = vunpack.c.0.s8 %v1765
        %v1767 = vlaneseq
        %v1768 = vshrl.u32 %v1767, 7
        %v1769 = vsub.s32 %v1766, %v1768
        %v1770 = vrot.slane %v1754, %v1769
        %v1772 = vunpack.c.l.s4 1966171168
        %v1773 = vunpack.c.0.s8 %v1772
        %v1774 = vlaneseq
        %v1775 = vshrl.u32 %v1774, 7
        %v1776 = vsub.s32 %v1773, %v1775
        %v1777 = vrot.slane %v1755, %v1776
        %v1779 = vunpack.c.l.s4 1966171168
        %v1780 = vunpack.c.0.s8 %v1779
        %v1781 = vlaneseq
        %v1782 = vshrl.u32 %v1781, 7
        %v1783 = vsub.s32 %v1780, %v1782
        %v1784 = vrot.slane %v1756, %v1783
        %v1785 = vcombine.low %v1763, %v1770
        %v1786 = vcombine.low %v1777, %v1784
        %v1788 = vunpack.c.l.s4 1966171168
        %v1789 = vunpack.c.0.s8 %v1788
        %v1790 = vlaneseq
        %v1791 = vshrl.u32 %v1790, 7
        %v1792 = vsub.s32 %v1789, %v1791
        %v1793 = vrot.slane %v1785, %v1792
        %v1795 = vunpack.c.l.s4 1966171168
        %v1796 = vunpack.c.0.s8 %v1795
        %v1797 = vlaneseq
        %v1798 = vshrl.u32 %v1797, 7
        %v1799 = vsub.s32 %v1796, %v1798
        %v1800 = vrot.slane %v1786, %v1799
        %v1801 = vcombine.low %v1793, %v1800
        %v1802 = vcombine.low %v1410, %v1412
        %v1803 = vcombine.low %v1395, %v1409
        %v1804 = vcombine.low %v1411, %v1413
        %v1805 = vcombine.low %v1437, %v1451
        %v1807 = vunpack.c.l.s4 1966171168
        %v1808 = vunpack.c.0.s8 %v1807
        %v1809 = vlaneseq
        %v1810 = vshrl.u32 %v1809, 7
        %v1811 = vsub.s32 %v1808, %v1810
        %v1812 = vrot.slane %v1802, %v1811
        %v1814 = vunpack.c.l.s4 1966171168
        %v1815 = vunpack.c.0.s8 %v1814
        %v1816 = vlaneseq
        %v1817 = vshrl.u32 %v1816, 7
        %v1818 = vsub.s32 %v1815, %v1817
        %v1819 = vrot.slane %v1803, %v1818
        %v1821 = vunpack.c.l.s4 1966171168
        %v1822 = vunpack.c.0.s8 %v1821
        %v1823 = vlaneseq
        %v1824 = vshrl.u32 %v1823, 7
        %v1825 = vsub.s32 %v1822, %v1824
        %v1826 = vrot.slane %v1804, %v1825
        %v1828 = vunpack.c.l.s4 1966171168
        %v1829 = vunpack.c.0.s8 %v1828
        %v1830 = vlaneseq
        %v1831 = vshrl.u32 %v1830, 7
        %v1832 = vsub.s32 %v1829, %v1831
        %v1833 = vrot.slane %v1805, %v1832
        %v1834 = vcombine.low %v1812, %v1819
        %v1835 = vcombine.low %v1826, %v1833
        %v1837 = vunpack.c.l.s4 1966171168
        %v1838 = vunpack.c.0.s8 %v1837
        %v1839 = vlaneseq
        %v1840 = vshrl.u32 %v1839, 7
        %v1841 = vsub.s32 %v1838, %v1840
        %v1842 = vrot.slane %v1834, %v1841
        %v1844 = vunpack.c.l.s4 1966171168
        %v1845 = vunpack.c.0.s8 %v1844
        %v1846 = vlaneseq
        %v1847 = vshrl.u32 %v1846, 7
        %v1848 = vsub.s32 %v1845, %v1847
        %v1849 = vrot.slane %v1835, %v1848
        %v1850 = vcombine.low %v1842, %v1849
        %v1851 = vcombine.low %v1460, %v1444
        %v1852 = vcombine.low %v1458, %v1459
        %v1853 = vcombine.low %v1461, %v1485
        %v1854 = vcombine.low %v1499, %v1507
        %v1856 = vunpack.c.l.s4 1966171168
        %v1857 = vunpack.c.0.s8 %v1856
        %v1858 = vlaneseq
        %v1859 = vshrl.u32 %v1858, 7
        %v1860 = vsub.s32 %v1857, %v1859
        %v1861 = vrot.slane %v1851, %v1860
        %v1863 = vunpack.c.l.s4 1966171168
        %v1864 = vunpack.c.0.s8 %v1863
        %v1865 = vlaneseq
        %v1866 = vshrl.u32 %v1865, 7
        %v1867 = vsub.s32 %v1864, %v1866
        %v1868 = vrot.slane %v1852, %v1867
        %v1870 = vunpack.c.l.s4 1966171168
        %v1871 = vunpack.c.0.s8 %v1870
        %v1872 = vlaneseq
        %v1873 = vshrl.u32 %v1872, 7
        %v1874 = vsub.s32 %v1871, %v1873
        %v1875 = vrot.slane %v1853, %v1874
        %v1877 = vunpack.c.l.s4 1966171168
        %v1878 = vunpack.c.0.s8 %v1877
        %v1879 = vlaneseq
        %v1880 = vshrl.u32 %v1879, 7
        %v1881 = vsub.s32 %v1878, %v1880
        %v1882 = vrot.slane %v1854, %v1881
        %v1883 = vcombine.low %v1861, %v1868
        %v1884 = vcombine.low %v1875, %v1882
        %v1886 = vunpack.c.l.s4 1966171168
        %v1887 = vunpack.c.0.s8 %v1886
        %v1888 = vlaneseq
        %v1889 = vshrl.u32 %v1888, 7
        %v1890 = vsub.s32 %v1887, %v1889
        %v1891 = vrot.slane %v1883, %v1890
        %v1893 = vunpack.c.l.s4 1966171168
        %v1894 = vunpack.c.0.s8 %v1893
        %v1895 = vlaneseq
        %v1896 = vshrl.u32 %v1895, 7
        %v1897 = vsub.s32 %v1894, %v1896
        %v1898 = vrot.slane %v1884, %v1897
        %v1899 = vcombine.low %v1891, %v1898
        %v1900 = vcombine.low %v1492, %v1506
        %v1901 = vcombine.low %v1508, %v1509
        %v1902 = vcombine.low %v1533, %v1547
        %v1903 = vcombine.low %v1555, %v1557
        %v1905 = vunpack.c.l.s4 1966171168
        %v1906 = vunpack.c.0.s8 %v1905
        %v1907 = vlaneseq
        %v1908 = vshrl.u32 %v1907, 7
        %v1909 = vsub.s32 %v1906, %v1908
        %v1910 = vrot.slane %v1900, %v1909
        %v1912 = vunpack.c.l.s4 1966171168
        %v1913 = vunpack.c.0.s8 %v1912
        %v1914 = vlaneseq
        %v1915 = vshrl.u32 %v1914, 7
        %v1916 = vsub.s32 %v1913, %v1915
        %v1917 = vrot.slane %v1901, %v1916
        %v1919 = vunpack.c.l.s4 1966171168
        %v1920 = vunpack.c.0.s8 %v1919
        %v1921 = vlaneseq
        %v1922 = vshrl.u32 %v1921, 7
        %v1923 = vsub.s32 %v1920, %v1922
        %v1924 = vrot.slane %v1902, %v1923
        %v1926 = vunpack.c.l.s4 1966171168
        %v1927 = vunpack.c.0.s8 %v1926
        %v1928 = vlaneseq
        %v1929 = vshrl.u32 %v1928, 7
        %v1930 = vsub.s32 %v1927, %v1929
        %v1931 = vrot.slane %v1903, %v1930
        %v1932 = vcombine.low %v1910, %v1917
        %v1933 = vcombine.low %v1924, %v1931
        %v1935 = vunpack.c.l.s4 1966171168
        %v1936 = vunpack.c.0.s8 %v1935
        %v1937 = vlaneseq
        %v1938 = vshrl.u32 %v1937, 7
        %v1939 = vsub.s32 %v1936, %v1938
        %v1940 = vrot.slane %v1932, %v1939
        %v1942 = vunpack.c.l.s4 1966171168
        %v1943 = vunpack.c.0.s8 %v1942
        %v1944 = vlaneseq
        %v1945 = vshrl.u32 %v1944, 7
        %v1946 = vsub.s32 %v1943, %v1945
        %v1947 = vrot.slane %v1933, %v1946
        %v1948 = vcombine.low %v1940, %v1947
        %v1949 = vcombine.low %v1554, %v1556
        %v1950 = vcombine.low %v1558, %v1582
        %v1951 = vcombine.low %v1596, %v1604
        %v1952 = vcombine.low %v1606, %v1589
        %v1954 = vunpack.c.l.s4 1966171168
        %v1955 = vunpack.c.0.s8 %v1954
        %v1956 = vlaneseq
        %v1957 = vshrl.u32 %v1956, 7
        %v1958 = vsub.s32 %v1955, %v1957
        %v1959 = vrot.slane %v1949, %v1958
        %v1961 = vunpack.c.l.s4 1966171168
        %v1962 = vunpack.c.0.s8 %v1961
        %v1963 = vlaneseq
        %v1964 = vshrl.u32 %v1963, 7
        %v1965 = vsub.s32 %v1962, %v1964
        %v1966 = vrot.slane %v1950, %v1965
        %v1968 = vunpack.c.l.s4 1966171168
        %v1969 = vunpack.c.0.s8 %v1968
        %v1970 = vlaneseq
        %v1971 = vshrl.u32 %v1970, 7
        %v1972 = vsub.s32 %v1969, %v1971
        %v1973 = vrot.slane %v1951, %v1972
        %v1975 = vunpack.c.l.s4 1966171168
        %v1976 = vunpack.c.0.s8 %v1975
        %v1977 = vlaneseq
        %v1978 = vshrl.u32 %v1977, 7
        %v1979 = vsub.s32 %v1976, %v1978
        %v1980 = vrot.slane %v1952, %v1979
        %v1981 = vcombine.low %v1959, %v1966
        %v1982 = vcombine.low %v1973, %v1980
        %v1984 = vunpack.c.l.s4 1966171168
        %v1985 = vunpack.c.0.s8 %v1984
        %v1986 = vlaneseq
        %v1987 = vshrl.u32 %v1986, 7
        %v1988 = vsub.s32 %v1985, %v1987
        %v1989 = vrot.slane %v1981, %v1988
        %v1991 = vunpack.c.l.s4 1966171168
        %v1992 = vunpack.c.0.s8 %v1991
        %v1993 = vlaneseq
        %v1994 = vshrl.u32 %v1993, 7
        %v1995 = vsub.s32 %v1992, %v1994
        %v1996 = vrot.slane %v1982, %v1995
        %v1997 = vcombine.low %v1989, %v1996
        %v1998 = vcombine.low %v1605, %v1607
        %v1999 = vcombine.low %v1631, %v1645
        %v2000 = vcombine.low %v1653, %v1654
        %v2001 = vcombine.low %v1638, %v1652
        %v2003 = vunpack.c.l.s4 1966171168
        %v2004 = vunpack.c.0.s8 %v2003
        %v2005 = vlaneseq
        %v2006 = vshrl.u32 %v2005, 7
        %v2007 = vsub.s32 %v2004, %v2006
        %v2008 = vrot.slane %v1998, %v2007
        %v2010 = vunpack.c.l.s4 1966171168
        %v2011 = vunpack.c.0.s8 %v2010
        %v2012 = vlaneseq
        %v2013 = vshrl.u32 %v2012, 7
        %v2014 = vsub.s32 %v2011, %v2013
        %v2015 = vrot.slane %v1999, %v2014
        %v2017 = vunpack.c.l.s4 1966171168
        %v2018 = vunpack.c.0.s8 %v2017
        %v2019 = vlaneseq
        %v2020 = vshrl.u32 %v2019, 7
        %v2021 = vsub.s32 %v2018, %v2020
        %v2022 = vrot.slane %v2000, %v2021
        %v2024 = vunpack.c.l.s4 1966171168
        %v2025 = vunpack.c.0.s8 %v2024
        %v2026 = vlaneseq
        %v2027 = vshrl.u32 %v2026, 7
        %v2028 = vsub.s32 %v2025, %v2027
        %v2029 = vrot.slane %v2001, %v2028
        %v2030 = vcombine.low %v2008, %v2015
        %v2031 = vcombine.low %v2022, %v2029
        %v2033 = vunpack.c.l.s4 1966171168
        %v2034 = vunpack.c.0.s8 %v2033
        %v2035 = vlaneseq
        %v2036 = vshrl.u32 %v2035, 7
        %v2037 = vsub.s32 %v2034, %v2036
        %v2038 = vrot.slane %v2030, %v2037
        %v2040 = vunpack.c.l.s4 1966171168
        %v2041 = vunpack.c.0.s8 %v2040
        %v2042 = vlaneseq
        %v2043 = vshrl.u32 %v2042, 7
        %v2044 = vsub.s32 %v2041, %v2043
        %v2045 = vrot.slane %v2031, %v2044
        %v2046 = vcombine.low %v2038, %v2045
        %v2047 = vcombine.low %v1655, %v1679
        %v2048 = vcombine.low %v1693, %v1701
        %v2049 = vcombine.low %v1703, %v1686
        %v2050 = vcombine.low %v1700, %v1702
        %v2052 = vunpack.c.l.s4 1966171168
        %v2053 = vunpack.c.0.s8 %v2052
        %v2054 = vlaneseq
        %v2055 = vshrl.u32 %v2054, 7
        %v2056 = vsub.s32 %v2053, %v2055
        %v2057 = vrot.slane %v2047, %v2056
        %v2059 = vunpack.c.l.s4 1966171168
        %v2060 = vunpack.c.0.s8 %v2059
        %v2061 = vlaneseq
        %v2062 = vshrl.u32 %v2061, 7
        %v2063 = vsub.s32 %v2060, %v2062
        %v2064 = vrot.slane %v2048, %v2063
        %v2066 = vunpack.c.l.s4 1966171168
        %v2067 = vunpack.c.0.s8 %v2066
        %v2068 = vlaneseq
        %v2069 = vshrl.u32 %v2068, 7
        %v2070 = vsub.s32 %v2067, %v2069
        %v2071 = vrot.slane %v2049, %v2070
        %v2073 = vunpack.c.l.s4 1966171168
        %v2074 = vunpack.c.0.s8 %v2073
        %v2075 = vlaneseq
        %v2076 = vshrl.u32 %v2075, 7
        %v2077 = vsub.s32 %v2074, %v2076
        %v2078 = vrot.slane %v2050, %v2077
        %v2079 = vcombine.low %v2057, %v2064
        %v2080 = vcombine.low %v2071, %v2078
        %v2082 = vunpack.c.l.s4 1966171168
        %v2083 = vunpack.c.0.s8 %v2082
        %v2084 = vlaneseq
        %v2085 = vshrl.u32 %v2084, 7
        %v2086 = vsub.s32 %v2083, %v2085
        %v2087 = vrot.slane %v2079, %v2086
        %v2089 = vunpack.c.l.s4 1966171168
        %v2090 = vunpack.c.0.s8 %v2089
        %v2091 = vlaneseq
        %v2092 = vshrl.u32 %v2091, 7
        %v2093 = vsub.s32 %v2090, %v2092
        %v2094 = vrot.slane %v2080, %v2093
        %v2095 = vcombine.low %v2087, %v2094
        %v2104 = vpack.c.bf16 %v1752, %v1752
        %v2105 = vpack.c.bf16 %v1801, %v1801
        %v2106 = vpack.c.bf16 %v1850, %v1850
        %v2107 = vpack.c.bf16 %v1899, %v1899
        %v2108 = vpack.c.bf16 %v1948, %v1948
        %v2109 = vpack.c.bf16 %v1997, %v1997
        %v2110 = vpack.c.bf16 %v2046, %v2046
        %v2111 = vpack.c.bf16 %v2095, %v2095
        %vm2112 = vcmask 60416
        %2113 = vst.msk [vmem:[%s303] sm:$0xf] %vm2112, %v2104
        %2114 = vst.msk [vmem:[%s303 + $0x4] sm:$0xf] %vm2112, %v2105
        %2115 = vst.msk [vmem:[%s303 + $0x8] sm:$0xf] %vm2112, %v2106
        %2116 = vst.msk [vmem:[%s303 + $0xc] sm:$0xf] %vm2112, %v2107
        %2117 = vst.msk [vmem:[%s303 + $0x10] sm:$0xf] %vm2112, %v2108
        %2118 = vst.msk [vmem:[%s303 + $0x14] sm:$0xf] %vm2112, %v2109
        %2119 = vst.msk [vmem:[%s303 + $0x18] sm:$0xf] %vm2112, %v2110
        %2120 = vst.msk [vmem:[%s303 + $0x1c] sm:$0xf] %vm2112, %v2111
        %s2121 = sand.u32 %s160, 1
        %s2122 = scalar_lea.sflag [#allocation5], %s2121
        %s2123 = sand.u32 %s160, 1
        %s2124 = smul.addr %s2123, 32
        %s2125 = scalar_lea.vmem [#allocation11], %s2124
        // Predicated region
        $region53: #{bottleneck_forward.4} parent=35 // pred_check
          %p2126 = pneg %p170
        $region54: #{bottleneck_forward.4} parent=35 // pred_check_branch
          %2128 = sbr.rel (%p2126) target = $region56
        $region55: #{bottleneck_forward.4} parent=35 // pred_region
          %s2129 = smul.u32 8, %s29
          %s2131 = ssub.s32 512, 512
          %2132 = vsyncadd %s2122, %s2131
          %s2133 = sadd.s32 %s30, %s2129
          %s2134 = smul.addr %s28, 8
          %s2135 = sadd.s32 %s2133, %s2134
          %s2136 = smul.addr %s2135, 64
          %s2137 = scalar_lea.hbm %s4, %s2136
          %s2138 = sshll.u32 %s2125, 4
          %s2139 = int_to_ptr.vmem [resolvable:$true] %s2138
          %2144 = dma.vmem_to_hbm [thread:$0]  %s2139, 512, %s2137, %s2122, 64, 64, 4
        $region56: #{bottleneck_forward.4} parent=35 // pred_fallthru
          _
      $region36: #{bottleneck_forward.4} parent=5 // pred_fallthru
        _
      %p2145 = scmp.le.s32.totalorder 2, %s18
      // Predicated region
      $region57: #{bottleneck_forward.4} parent=5 // pred_check
        %p2146 = pneg %p2145
      $region58: #{bottleneck_forward.4} parent=5 // pred_check_branch
        %2148 = sbr.rel (%p2146) target = $region60
      $region59: #{bottleneck_forward.4} parent=5 // pred_region
        %s2149 = ssub.s32 %s18, 2
        // Predicated region
        $region61: #{bottleneck_forward.4} parent=59 // pred_check
          %p2150 = pneg %p176
        $region62: #{bottleneck_forward.4} parent=59 // pred_check_branch
          %2152 = sbr.rel (%p2150) target = $region64
        $region63: #{bottleneck_forward.4} parent=59 // pred_region
          %s2153 = sand.u32 %s161, 1
          %s2154 = scalar_lea.sflag [#allocation5], %s2153
          %s2155 = sand.u32 %s161, 1
          %s2156 = smul.addr %s2155, 32
          %s2157 = scalar_lea.vmem [#allocation11], %s2156
          %2158 = dma.done %s2154, 512
        $region64: #{bottleneck_forward.4} parent=59 // pred_fallthru
          _
      $region60: #{bottleneck_forward.4} parent=5 // pred_fallthru
        _
    $region6: #{bottleneck_forward.4} parent=1 // loop_footer
      %s22 = sadd.s32 1, %s18
    $region7: #{bottleneck_forward.4} parent=1 // loop_footer_branch
      %17 = sbr.rel target = $region3
    $region8: #{bottleneck_forward.4} parent=1 // loop_exit
      _
    %2159 = vsyncpa [#allocation4], 1
    %s2160 = scalar_lea.sflag [#allocation4], 1
    %2161 = vsyncpa %s2160, 1
    %2162 = vsyncpa [#allocation7], 1
    %2163 = vsyncpa [#allocation10], 1
    %2164 = vsyncpa [#allocation5], 1
    %s2165 = scalar_lea.sflag [#allocation5], 1
    %2166 = vsyncpa %s2165, 1

</llo_original>
